<compile_context>
chip_gen: v5e
topology: v5e:2x2
jax: 0.10.0
libtpu: 0.0.40
codegen_flags: <defaults>
</compile_context>

<pallas_src>
import math
from functools import partial

import jax
import jax.numpy as jnp
from jax.experimental import pallas as pl
from jax.experimental.pallas import tpu as pltpu


# ----------------------------------------------------------------------------
# helpers
# ----------------------------------------------------------------------------
def _silu(x):
    return x * jax.nn.sigmoid(x)


def _num_batch_tiles(batch):
    """2 parallel batch tiles on v7x (2 TensorCores/chip), else 1 (max weight reuse)."""
    try:
        kind = jax.devices()[0].device_kind.lower()
    except Exception:  # pragma: no cover
        kind = ""
    if ("v7" in kind or "tpu7" in kind) and batch % 2 == 0:
        return 2
    return 1


# ----------------------------------------------------------------------------
# Fused kernel: preamble (at n == 0) + all PerceiverAttentionBlocks
# ----------------------------------------------------------------------------
def _fused_kernel(tf_ref, x_ref, lat_ref,
                  te_w1_ref, te_w2_ref, tal_w_ref, pi_w_ref, pre_b_ref,
                  adaw_ref, bigw_ref, pjw_ref, blkb_ref,
                  out_ref,
                  ste_s, xw_s, kvin_s,
                  *, heads):
    f32, bf = jnp.float32, jnp.bfloat16
    Bt, L, D = out_ref.shape
    S = xw_s.shape[1]
    De = ste_s.shape[-1]
    dh = D // heads
    n = pl.program_id(1)

    # ---------------- preamble: once per batch tile (block n == 0) ----------
    @pl.when(n == 0)
    def _():
        b1    = pre_b_ref[:, 0:De]                       # (1, De) f32
        b2    = pre_b_ref[:, De:2 * De]
        tal_b = pre_b_ref[:, 2 * De:2 * De + D]
        pi_b  = pre_b_ref[:, 2 * De + D:2 * De + 2 * D]

        # TimestepEmbedding: linear_1 -> SiLU -> linear_2
        tf = tf_ref[:, 0, :].astype(bf)                  # (Bt, Ct)
        h = jnp.dot(tf, te_w1_ref[...], preferred_element_type=f32) + b1
        h = _silu(h)
        te = jnp.dot(h.astype(bf), te_w2_ref[...],
                     preferred_element_type=f32) + b2    # (Bt, De)
        ste = _silu(te)
        ste_s[...] = ste.astype(bf)                      # reused by every block

        # latents + time_aware_linear(silu(te))  -> seed carried output block
        tal = jnp.dot(ste.astype(bf), tal_w_ref[...],
                      preferred_element_type=f32) + tal_b          # (Bt, D)
        lat0 = lat_ref[...].astype(f32)[None, :, :] + tal[:, None, :]
        out_ref[...] = lat0.astype(out_ref.dtype)

        # proj_in(x)
        xflat = x_ref[...].reshape(Bt * S, -1).astype(bf)
        xw = jnp.dot(xflat, pi_w_ref[...], preferred_element_type=f32) + pi_b
        xw_s[...] = xw.reshape(Bt, S, D).astype(xw_s.dtype)

    # ---------------- per-block body -----------------------------------------
    ste_b = ste_s[...]                                   # (Bt, De) bf16
    lat = out_ref[...].astype(f32)                       # (Bt, L, D) carried latents
    xw = xw_s[...].astype(f32)                           # (Bt, S, D)

    # All three AdaLayerNorm modulations from ONE matmul on the packed slab.
    ada = jnp.dot(ste_b, adaw_ref[0], preferred_element_type=f32) \
        + blkb_ref[0, :, 0:6 * D]                        # (Bt, 6D) f32

    def _ln(v):                                          # eps matches reference
        mu = jnp.mean(v, axis=-1, keepdims=True)
        var = jnp.mean(jnp.square(v - mu), axis=-1, keepdims=True)
        return (v - mu) * jax.lax.rsqrt(var + 1e-6)

    def _mod(v, lo):                                     # torch chunk order: shift, scale
        shift = ada[:, None, lo:lo + D]
        scale = ada[:, None, lo + D:lo + 2 * D]
        return _ln(v) * (1.0 + scale) + shift

    nl = _mod(lat, 0)                                    # ln_1(latents)  (Bt, L, D)
    nx = _mod(xw, 2 * D)                                 # ln_2(x)        (Bt, S, D)

    # Stage [nl ; nx] into a persistent VMEM slab (no per-step concat copy).
    kvin_s[:, :L, :] = nl.astype(bf)
    kvin_s[:, L:, :] = nx.astype(bf)

    nl_flat = nl.reshape(Bt * L, D).astype(bf)
    kv_flat = kvin_s[...].reshape(Bt * (L + S), D)

    # Q / fused K|V projections. (Wq, bq were pre-scaled by 1/sqrt(dh) at init.)
    q = jnp.dot(nl_flat, bigw_ref[0, :, 0:D],
                preferred_element_type=f32) + blkb_ref[0, :, 6 * D:7 * D]
    kv = jnp.dot(kv_flat, bigw_ref[0, :, D:3 * D],
                 preferred_element_type=f32) + blkb_ref[0, :, 7 * D:9 * D]

    q_b = q.astype(bf).reshape(Bt, L, D)
    k_b = kv[:, :D].astype(bf).reshape(Bt, L + S, D)
    v_b = kv[:, D:].astype(bf).reshape(Bt, L + S, D)

    # Per-head attention; out-projection accumulated per head (no lane concat).
    acc = jnp.zeros((Bt * L, D), f32)
    for h_i in range(heads):                             # static unroll
        lo = h_i * dh
        s = jnp.einsum('bqd,bkd->bqk',
                       q_b[:, :, lo:lo + dh], k_b[:, :, lo:lo + dh],
                       preferred_element_type=f32)
        s = s - jnp.max(s, axis=-1, keepdims=True)
        p = jnp.exp(s)
        p = p / jnp.sum(p, axis=-1, keepdims=True)       # exact softmax divide
        ho = jnp.einsum('bqk,bkd->bqd',
                        p.astype(bf), v_b[:, :, lo:lo + dh],
                        preferred_element_type=f32)      # (Bt, L, dh)
        acc = acc + jnp.dot(ho.reshape(Bt * L, dh).astype(bf),
                            bigw_ref[0, lo:lo + dh, 3 * D:4 * D],
                            preferred_element_type=f32)
    lat_flat = lat.reshape(Bt * L, D) + acc + blkb_ref[0, :, 9 * D:10 * D]   # residual #1

    # MLP: c_fc -> squared ReLU -> c_proj, + residual #2
    ff = _mod(lat_flat.reshape(Bt, L, D), 4 * D)
    h1 = jnp.dot(ff.reshape(Bt * L, D).astype(bf), bigw_ref[0, :, 4 * D:8 * D],
                 preferred_element_type=f32) + blkb_ref[0, :, 10 * D:14 * D]
    h1 = jnp.square(jnp.maximum(h1, 0.0))
    h2 = jnp.dot(h1.astype(bf), pjw_ref[0],
                 preferred_element_type=f32) + blkb_ref[0, :, 14 * D:15 * D]

    out_ref[...] = (lat_flat + h2).reshape(Bt, L, D).astype(out_ref.dtype)


def _fused_call(tf, x, p, cfg):
    heads = cfg["heads"]
    B, S, Cin = x.shape
    Ct = tf.shape[-1]
    L, D = p["latents"].shape
    De = p["te_w2"].shape[-1]
    NB = p["adaw"].shape[0]
    dt = x.dtype

    nbt = _num_batch_tiles(B)
    Bt = B // nbt

    per_bt = lambda shp: pl.BlockSpec(shp, lambda b, n: (b, 0, 0))   # per batch tile
    shared = lambda shp: pl.BlockSpec(shp, lambda b, n: (0, 0))      # fetched once
    per_blk = lambda shp: pl.BlockSpec(shp, lambda b, n: (n, 0, 0))  # per block

    return pl.pallas_call(
        partial(_fused_kernel, heads=heads),
        grid=(nbt, NB),
        in_specs=[
            per_bt((Bt, 1, Ct)),             # sinusoidal time feature
            per_bt((Bt, S, Cin)),            # x
            shared((L, D)),                  # learnable latents
            shared((Ct, De)),                # te linear_1 weight (bf16)
            shared((De, De)),                # te linear_2 weight (bf16)
            shared((De, D)),                 # time_aware_linear weight (bf16)
            shared((Cin, D)),                # proj_in weight (bf16)
            shared((1, 2 * De + 2 * D)),     # packed preamble biases (f32)
            per_blk((1, De, 6 * D)),         # packed AdaLN weights (bf16)
            per_blk((1, D, 8 * D)),          # packed [Wq|Wk|Wv|Wo|W_fc] (bf16)
            per_blk((1, 4 * D, D)),          # W_cproj (bf16)
            per_blk((1, 1, 15 * D)),         # packed block biases (f32)
        ],
        out_specs=pl.BlockSpec((Bt, L, D), lambda b, n: (b, 0, 0)),
        out_shape=jax.ShapeDtypeStruct((B, L, D), dt),
        scratch_shapes=[
            pltpu.VMEM((Bt, De), jnp.bfloat16),        # silu(time embedding)
            pltpu.VMEM((Bt, S, D), jnp.float32),       # proj_in(x)
            pltpu.VMEM((Bt, L + S, D), jnp.bfloat16),  # staged [nl ; nx]
        ],
        compiler_params=pltpu.CompilerParams(
            dimension_semantics=("parallel", "arbitrary")),
    )(tf, x, p["latents"], p["te_w1"], p["te_w2"], p["tal_w"], p["pi_w"],
      p["pre_b"], p["adaw"], p["bigw"], p["pjw"], p["blkb"])


# ----------------------------------------------------------------------------
# Plain-JAX glue
# ----------------------------------------------------------------------------
def get_timestep_embedding(timesteps, dim, flip_sin_to_cos=True,
                           downscale_freq_shift=0.0, max_period=10000.0):
    # TODO(synk): sinusoidal Timesteps kept in plain JAX (tiny per-scalar glue).
    half = dim // 2
    exponent = -math.log(max_period) * jnp.arange(half, dtype=jnp.float32)
    exponent = exponent / (half - downscale_freq_shift)
    freqs = jnp.exp(exponent)
    emb = timesteps.astype(jnp.float32)[:, None] * freqs[None, :]
    emb = jnp.concatenate([jnp.sin(emb), jnp.cos(emb)], axis=-1)
    if flip_sin_to_cos:
        emb = jnp.concatenate([emb[:, half:], emb[:, :half]], axis=-1)
    return emb


def artdapter_forward(params, x, timestep, cfg):
    B = x.shape[0]
    Ct = cfg["time_channel"]
    tf = get_timestep_embedding(timestep.reshape(-1), Ct)          # (B, Ct)
    tf = tf.reshape(B, 1, Ct).astype(x.dtype)
    # output_dim is None in the reference default -> no proj_out
    return _fused_call(tf, x, params, cfg)


# ----------------------------------------------------------------------------
# Deterministic parameter init (bf16 weights, packed / stacked layout)
# ----------------------------------------------------------------------------
def init_params(key, cfg):
    Ct, De = cfg["time_channel"], cfg["time_embed_dim"]
    D, L = cfg["width"], cfg["latents"]
    Cin, NB = cfg["in_dim"], cfg["blocks"]
    heads = cfg["heads"]
    sm_scale = 1.0 / math.sqrt(D // heads)
    bf = jnp.bfloat16

    keys = iter(jax.random.split(key, 8 + 10 * NB))

    def lin(k, din, dout, scale=0.02):
        kw, kb = jax.random.split(k)
        w = scale * jax.random.normal(kw, (din, dout), jnp.float32)
        b = scale * jax.random.normal(kb, (1, dout), jnp.float32)
        return w, b

    p = {}
    te_w1, te_b1 = lin(next(keys), Ct, De)
    te_w2, te_b2 = lin(next(keys), De, De)
    tal_w, tal_b = lin(next(keys), De, D)
    pi_w, pi_b = lin(next(keys), Cin, D)
    p["latents"] = (D ** -0.5) * jax.random.normal(next(keys), (L, D), jnp.float32)
    p["te_w1"], p["te_w2"] = te_w1.astype(bf), te_w2.astype(bf)
    p["tal_w"], p["pi_w"] = tal_w.astype(bf), pi_w.astype(bf)
    p["pre_b"] = jnp.concatenate([te_b1, te_b2, tal_b, pi_b], axis=-1)   # (1, 2De+2D)

    adaw, bigw, pjw, blkb = [], [], [], []
    for _ in range(NB):
        # NOTE: the PyTorch reference zero-inits the AdaLayerNorm linears; small
        # random values are used here so the modulation path is exercised.
        ln1_w, ln1_b = lin(next(keys), De, 2 * D)
        ln2_w, ln2_b = lin(next(keys), De, 2 * D)
        lnff_w, lnff_b = lin(next(keys), De, 2 * D)
        wq, bq = lin(next(keys), D, D)
        wk, bk = lin(next(keys), D, D)
        wv, bv = lin(next(keys), D, D)
        wo, bo = lin(next(keys), D, D)
        fc_w, fc_b = lin(next(keys), D, 4 * D)
        pj_w, pj_b = lin(next(keys), 4 * D, D)
        # fold the softmax scale into the Q projection (no per-head mul in-kernel)
        wq, bq = wq * sm_scale, bq * sm_scale
        adaw.append(jnp.concatenate([ln1_w, ln2_w, lnff_w], axis=-1))          # (De, 6D)
        bigw.append(jnp.concatenate([wq, wk, wv, wo, fc_w], axis=-1))          # (D, 8D)
        pjw.append(pj_w)                                                       # (4D, D)
        blkb.append(jnp.concatenate([ln1_b, ln2_b, lnff_b, bq, bk, bv, bo,
                                     fc_b, pj_b], axis=-1))                    # (1, 15D)

    p["adaw"] = jnp.stack(adaw).astype(bf)
    p["bigw"] = jnp.stack(bigw).astype(bf)
    p["pjw"] = jnp.stack(pjw).astype(bf)
    p["blkb"] = jnp.stack(blkb)                                                # f32 biases
    return p


# ----------------------------------------------------------------------------
if __name__ == "__main__":
    cfg = dict(time_channel=64, time_embed_dim=128, width=128, heads=4,
               latents=16, in_dim=256, blocks=2)
    B, S = 2, 16

    key = jax.random.PRNGKey(0)
    kx, kt, kp = jax.random.split(key, 3)
    x = jax.random.normal(kx, (B, S, cfg["in_dim"]), jnp.float32)
    timestep = jax.random.uniform(kt, (B,), jnp.float32, 0.0, 1000.0)
    params = init_params(kp, cfg)

    fwd = jax.jit(partial(artdapter_forward, cfg=cfg))
    out = jax.block_until_ready(fwd(params, x, timestep))

    assert out.shape == (B, cfg["latents"], cfg["width"]), out.shape
    assert bool(jnp.all(jnp.isfinite(out)))
    print("KERNEL_OK")
</pallas_src>

<mosaic_0001>
module attributes {stable_mosaic.version = 11 : i64} {
  func.func @_fused_kernel(%arg0: i32, %arg1: i32, %arg2: memref<2x1x64xf32, #tpu.memory_space<vmem>>, %arg3: memref<2x16x256xf32, #tpu.memory_space<vmem>>, %arg4: memref<16x128xf32, #tpu.memory_space<vmem>>, %arg5: memref<64x128xbf16, #tpu.memory_space<vmem>>, %arg6: memref<128x128xbf16, #tpu.memory_space<vmem>>, %arg7: memref<128x128xbf16, #tpu.memory_space<vmem>>, %arg8: memref<256x128xbf16, #tpu.memory_space<vmem>>, %arg9: memref<1x512xf32, #tpu.memory_space<vmem>>, %arg10: memref<1x128x768xbf16, #tpu.memory_space<vmem>>, %arg11: memref<1x128x1024xbf16, #tpu.memory_space<vmem>>, %arg12: memref<1x512x128xbf16, #tpu.memory_space<vmem>>, %arg13: memref<1x1x1920xf32, #tpu.memory_space<vmem>>, %arg14: memref<2x16x128xf32, #tpu.memory_space<vmem>>, %arg15: memref<2x128xbf16, #tpu.memory_space<vmem>>, %arg16: memref<2x16x128xf32, #tpu.memory_space<vmem>>, %arg17: memref<2x32x128xbf16, #tpu.memory_space<vmem>>) attributes {dimension_semantics = [#tpu.dimension_semantics<parallel>, #tpu.dimension_semantics<arbitrary>], iteration_bounds = array<i64: 1, 2>, scalar_prefetch = 0 : i64, scratch_operands = 3 : i64, tpu.core_type = #tpu.core_type<tc>, window_params = [{transform_indices = @transform_0, window_bounds = array<i64: 2, 1, 64>}, {transform_indices = @transform_1, window_bounds = array<i64: 2, 16, 256>}, {pipeline_mode = #tpu.pipeline_mode<synchronous>, transform_indices = @transform_2, window_bounds = array<i64: 16, 128>}, {pipeline_mode = #tpu.pipeline_mode<synchronous>, transform_indices = @transform_3, window_bounds = array<i64: 64, 128>}, {pipeline_mode = #tpu.pipeline_mode<synchronous>, transform_indices = @transform_4, window_bounds = array<i64: 128, 128>}, {pipeline_mode = #tpu.pipeline_mode<synchronous>, transform_indices = @transform_5, window_bounds = array<i64: 128, 128>}, {pipeline_mode = #tpu.pipeline_mode<synchronous>, transform_indices = @transform_6, window_bounds = array<i64: 256, 128>}, {pipeline_mode = #tpu.pipeline_mode<synchronous>, transform_indices = @transform_7, window_bounds = array<i64: 1, 512>}, {transform_indices = @transform_8, window_bounds = array<i64: 1, 128, 768>}, {transform_indices = @transform_9, window_bounds = array<i64: 1, 128, 1024>}, {transform_indices = @transform_10, window_bounds = array<i64: 1, 512, 128>}, {transform_indices = @transform_11, window_bounds = array<i64: 1, 1, 1920>}, {transform_indices = @transform_12, window_bounds = array<i64: 2, 16, 128>}]} {
    %c0_i32 = arith.constant 0 : i32
    %0 = arith.cmpi eq, %arg1, %c0_i32 : i32
    %1 = arith.extui %0 : i1 to i32
    %c0_i32_0 = arith.constant 0 : i32
    %2 = arith.cmpi ne, %1, %c0_i32_0 : i32
    scf.if %2 {
      %c0_97 = arith.constant 0 : index
      %c0_98 = arith.constant 0 : index
      %242 = vector.load %arg9[%c0_97, %c0_98] : memref<1x512xf32, #tpu.memory_space<vmem>>, vector<1x128xf32>
      %c0_99 = arith.constant 0 : index
      %c128_100 = arith.constant 128 : index
      %243 = vector.load %arg9[%c0_99, %c128_100] : memref<1x512xf32, #tpu.memory_space<vmem>>, vector<1x128xf32>
      %c0_101 = arith.constant 0 : index
      %c256 = arith.constant 256 : index
      %244 = vector.load %arg9[%c0_101, %c256] : memref<1x512xf32, #tpu.memory_space<vmem>>, vector<1x128xf32>
      %c0_102 = arith.constant 0 : index
      %c384_103 = arith.constant 384 : index
      %245 = vector.load %arg9[%c0_102, %c384_103] : memref<1x512xf32, #tpu.memory_space<vmem>>, vector<1x128xf32>
      %c0_104 = arith.constant 0 : index
      %c0_105 = arith.constant 0 : index
      %c0_106 = arith.constant 0 : index
      %246 = vector.load %arg2[%c0_104, %c0_105, %c0_106] : memref<2x1x64xf32, #tpu.memory_space<vmem>>, vector<2x1x64xf32>
      %247 = vector.shape_cast %246 : vector<2x1x64xf32> to vector<2x64xf32>
      %248 = arith.truncf %247 : vector<2x64xf32> to vector<2x64xbf16>
      %c0_107 = arith.constant 0 : index
      %c0_108 = arith.constant 0 : index
      %249 = vector.load %arg5[%c0_107, %c0_108] : memref<64x128xbf16, #tpu.memory_space<vmem>>, vector<64x128xbf16>
      %cst_109 = arith.constant dense<0.000000e+00> : vector<2x128xf32>
      %250 = tpu.matmul %248, %249, %cst_109 {dimension_numbers = #tpu.dot_dimension_numbers<[1], [0], [0], [1], [0, 0, 1, 1], [], []>} : vector<2x64xbf16>, vector<64x128xbf16>, vector<2x128xf32> -> vector<2x128xf32>
      %251 = vector.broadcast %242 : vector<1x128xf32> to vector<2x128xf32>
      %252 = arith.addf %250, %251 : vector<2x128xf32>
      %253 = arith.negf %252 : vector<2x128xf32>
      %254 = math.exp %253 : vector<2x128xf32>
      %cst_110 = arith.constant 1.000000e+00 : f32
      %255 = vector.broadcast %cst_110 : f32 to vector<2x128xf32>
      %256 = arith.addf %255, %254 : vector<2x128xf32>
      %257 = arith.divf %255, %256 : vector<2x128xf32>
      %258 = arith.mulf %252, %257 : vector<2x128xf32>
      %259 = arith.truncf %258 : vector<2x128xf32> to vector<2x128xbf16>
      %c0_111 = arith.constant 0 : index
      %c0_112 = arith.constant 0 : index
      %260 = vector.load %arg6[%c0_111, %c0_112] : memref<128x128xbf16, #tpu.memory_space<vmem>>, vector<128x128xbf16>
      %cst_113 = arith.constant dense<0.000000e+00> : vector<2x128xf32>
      %261 = tpu.matmul %259, %260, %cst_113 {dimension_numbers = #tpu.dot_dimension_numbers<[1], [0], [0], [1], [0, 0, 1, 1], [], []>} : vector<2x128xbf16>, vector<128x128xbf16>, vector<2x128xf32> -> vector<2x128xf32>
      %262 = vector.broadcast %243 : vector<1x128xf32> to vector<2x128xf32>
      %263 = arith.addf %261, %262 : vector<2x128xf32>
      %264 = arith.negf %263 : vector<2x128xf32>
      %265 = math.exp %264 : vector<2x128xf32>
      %cst_114 = arith.constant 1.000000e+00 : f32
      %266 = vector.broadcast %cst_114 : f32 to vector<2x128xf32>
      %267 = arith.addf %266, %265 : vector<2x128xf32>
      %268 = arith.divf %266, %267 : vector<2x128xf32>
      %269 = arith.mulf %263, %268 : vector<2x128xf32>
      %270 = arith.truncf %269 : vector<2x128xf32> to vector<2x128xbf16>
      %c0_115 = arith.constant 0 : index
      %c0_116 = arith.constant 0 : index
      %271 = vector.load %arg15[%c0_115, %c0_116] : memref<2x128xbf16, #tpu.memory_space<vmem>>, vector<2x128xbf16>
      tpu.vector_store %arg15[%c0_115, %c0_116], %270 {strides = array<i32>} : memref<2x128xbf16, #tpu.memory_space<vmem>>, vector<2x128xbf16>,
      %272 = arith.truncf %269 : vector<2x128xf32> to vector<2x128xbf16>
      %c0_117 = arith.constant 0 : index
      %c0_118 = arith.constant 0 : index
      %273 = vector.load %arg7[%c0_117, %c0_118] : memref<128x128xbf16, #tpu.memory_space<vmem>>, vector<128x128xbf16>
      %cst_119 = arith.constant dense<0.000000e+00> : vector<2x128xf32>
      %274 = tpu.matmul %272, %273, %cst_119 {dimension_numbers = #tpu.dot_dimension_numbers<[1], [0], [0], [1], [0, 0, 1, 1], [], []>} : vector<2x128xbf16>, vector<128x128xbf16>, vector<2x128xf32> -> vector<2x128xf32>
      %275 = vector.broadcast %244 : vector<1x128xf32> to vector<2x128xf32>
      %276 = arith.addf %274, %275 : vector<2x128xf32>
      %c0_120 = arith.constant 0 : index
      %c0_121 = arith.constant 0 : index
      %277 = vector.load %arg4[%c0_120, %c0_121] : memref<16x128xf32, #tpu.memory_space<vmem>>, vector<16x128xf32>
      %278 = vector.shape_cast %277 : vector<16x128xf32> to vector<1x16x128xf32>
      %279 = vector.shape_cast %276 : vector<2x128xf32> to vector<2x1x128xf32>
      %280 = vector.broadcast %278 : vector<1x16x128xf32> to vector<2x16x128xf32>
      %281 = vector.broadcast %279 : vector<2x1x128xf32> to vector<2x16x128xf32>
      %282 = arith.addf %280, %281 : vector<2x16x128xf32>
      %c0_122 = arith.constant 0 : index
      %c0_123 = arith.constant 0 : index
      %c0_124 = arith.constant 0 : index
      %283 = vector.load %arg14[%c0_122, %c0_123, %c0_124] : memref<2x16x128xf32, #tpu.memory_space<vmem>>, vector<2x16x128xf32>
      tpu.vector_store %arg14[%c0_122, %c0_123, %c0_124], %282 {strides = array<i32>} : memref<2x16x128xf32, #tpu.memory_space<vmem>>, vector<2x16x128xf32>,
      %c0_125 = arith.constant 0 : index
      %c0_126 = arith.constant 0 : index
      %c0_127 = arith.constant 0 : index
      %284 = vector.load %arg3[%c0_125, %c0_126, %c0_127] : memref<2x16x256xf32, #tpu.memory_space<vmem>>, vector<2x16x256xf32>
      %285 = vector.shape_cast %284 : vector<2x16x256xf32> to vector<32x256xf32>
      %286 = arith.truncf %285 : vector<32x256xf32> to vector<32x256xbf16>
      %c0_128 = arith.constant 0 : index
      %c0_129 = arith.constant 0 : index
      %287 = vector.load %arg8[%c0_128, %c0_129] : memref<256x128xbf16, #tpu.memory_space<vmem>>, vector<256x128xbf16>
      %cst_130 = arith.constant dense<0.000000e+00> : vector<32x128xf32>
      %288 = tpu.matmul %286, %287, %cst_130 {dimension_numbers = #tpu.dot_dimension_numbers<[1], [0], [0], [1], [0, 0, 1, 1], [], []>} : vector<32x256xbf16>, vector<256x128xbf16>, vector<32x128xf32> -> vector<32x128xf32>
      %289 = vector.broadcast %245 : vector<1x128xf32> to vector<32x128xf32>
      %290 = arith.addf %288, %289 : vector<32x128xf32>
      %291 = vector.shape_cast %290 : vector<32x128xf32> to vector<2x16x128xf32>
      %c0_131 = arith.constant 0 : index
      %c0_132 = arith.constant 0 : index
      %c0_133 = arith.constant 0 : index
      %292 = vector.load %arg16[%c0_131, %c0_132, %c0_133] : memref<2x16x128xf32, #tpu.memory_space<vmem>>, vector<2x16x128xf32>
      tpu.vector_store %arg16[%c0_131, %c0_132, %c0_133], %291 {strides = array<i32>} : memref<2x16x128xf32, #tpu.memory_space<vmem>>, vector<2x16x128xf32>,
    } else {
    }
    %c0 = arith.constant 0 : index
    %c0_1 = arith.constant 0 : index
    %3 = vector.load %arg15[%c0, %c0_1] : memref<2x128xbf16, #tpu.memory_space<vmem>>, vector<2x128xbf16>
    %c0_2 = arith.constant 0 : index
    %c0_3 = arith.constant 0 : index
    %c0_4 = arith.constant 0 : index
    %4 = vector.load %arg14[%c0_2, %c0_3, %c0_4] : memref<2x16x128xf32, #tpu.memory_space<vmem>>, vector<2x16x128xf32>
    %c0_5 = arith.constant 0 : index
    %c0_6 = arith.constant 0 : index
    %c0_7 = arith.constant 0 : index
    %5 = vector.load %arg16[%c0_5, %c0_6, %c0_7] : memref<2x16x128xf32, #tpu.memory_space<vmem>>, vector<2x16x128xf32>
    %c0_8 = arith.constant 0 : index
    %c0_9 = arith.constant 0 : index
    %c0_10 = arith.constant 0 : index
    %6 = vector.load %arg10[%c0_8, %c0_9, %c0_10] : memref<1x128x768xbf16, #tpu.memory_space<vmem>>, vector<1x128x768xbf16>
    %7 = vector.shape_cast %6 : vector<1x128x768xbf16> to vector<128x768xbf16>
    %cst = arith.constant dense<0.000000e+00> : vector<2x768xf32>
    %8 = tpu.matmul %3, %7, %cst {dimension_numbers = #tpu.dot_dimension_numbers<[1], [0], [0], [1], [0, 0, 1, 1], [], []>} : vector<2x128xbf16>, vector<128x768xbf16>, vector<2x768xf32> -> vector<2x768xf32>
    %c0_11 = arith.constant 0 : index
    %c0_12 = arith.constant 0 : index
    %c0_13 = arith.constant 0 : index
    %9 = vector.load %arg13[%c0_11, %c0_12, %c0_13] : memref<1x1x1920xf32, #tpu.memory_space<vmem>>, vector<1x1x768xf32>
    %10 = vector.shape_cast %9 : vector<1x1x768xf32> to vector<1x768xf32>
    %11 = vector.broadcast %10 : vector<1x768xf32> to vector<2x768xf32>
    %12 = arith.addf %8, %11 : vector<2x768xf32>
    %13 = vector.extract_strided_slice %12 {offsets = [0, 0], sizes = [2, 128], strides = [1, 1]} : vector<2x768xf32> to vector<2x128xf32>
    %14 = vector.shape_cast %13 : vector<2x128xf32> to vector<2x1x128xf32>
    %15 = vector.extract_strided_slice %12 {offsets = [0, 128], sizes = [2, 128], strides = [1, 1]} : vector<2x768xf32> to vector<2x128xf32>
    %16 = vector.shape_cast %15 : vector<2x128xf32> to vector<2x1x128xf32>
    %cst_14 = arith.constant dense<0.000000e+00> : vector<2x16xf32>
    %17 = vector.multi_reduction <add>, %4, %cst_14 [2] : vector<2x16x128xf32> to vector<2x16xf32>
    %18 = vector.shape_cast %17 : vector<2x16xf32> to vector<2x16x1xf32>
    %cst_15 = arith.constant 1.280000e+02 : f32
    %19 = vector.broadcast %cst_15 : f32 to vector<2x16x1xf32>
    %20 = arith.divf %18, %19 : vector<2x16x1xf32>
    %21 = vector.broadcast %20 : vector<2x16x1xf32> to vector<2x16x128xf32>
    %22 = arith.subf %4, %21 : vector<2x16x128xf32>
    %23 = arith.mulf %22, %22 : vector<2x16x128xf32>
    %cst_16 = arith.constant dense<0.000000e+00> : vector<2x16xf32>
    %24 = vector.multi_reduction <add>, %23, %cst_16 [2] : vector<2x16x128xf32> to vector<2x16xf32>
    %25 = vector.shape_cast %24 : vector<2x16xf32> to vector<2x16x1xf32>
    %cst_17 = arith.constant 1.280000e+02 : f32
    %26 = vector.broadcast %cst_17 : f32 to vector<2x16x1xf32>
    %27 = arith.divf %25, %26 : vector<2x16x1xf32>
    %28 = vector.broadcast %20 : vector<2x16x1xf32> to vector<2x16x128xf32>
    %29 = arith.subf %4, %28 : vector<2x16x128xf32>
    %cst_18 = arith.constant 9.99999997E-7 : f32
    %30 = vector.broadcast %cst_18 : f32 to vector<2x16x1xf32>
    %31 = arith.addf %27, %30 : vector<2x16x1xf32>
    %32 = math.rsqrt %31 : vector<2x16x1xf32>
    %33 = vector.broadcast %32 : vector<2x16x1xf32> to vector<2x16x128xf32>
    %34 = arith.mulf %29, %33 : vector<2x16x128xf32>
    %cst_19 = arith.constant 1.000000e+00 : f32
    %35 = vector.broadcast %cst_19 : f32 to vector<2x1x128xf32>
    %36 = arith.addf %35, %16 : vector<2x1x128xf32>
    %37 = vector.broadcast %36 : vector<2x1x128xf32> to vector<2x16x128xf32>
    %38 = arith.mulf %34, %37 : vector<2x16x128xf32>
    %39 = vector.broadcast %14 : vector<2x1x128xf32> to vector<2x16x128xf32>
    %40 = arith.addf %38, %39 : vector<2x16x128xf32>
    %41 = vector.extract_strided_slice %12 {offsets = [0, 256], sizes = [2, 128], strides = [1, 1]} : vector<2x768xf32> to vector<2x128xf32>
    %42 = vector.shape_cast %41 : vector<2x128xf32> to vector<2x1x128xf32>
    %43 = vector.extract_strided_slice %12 {offsets = [0, 384], sizes = [2, 128], strides = [1, 1]} : vector<2x768xf32> to vector<2x128xf32>
    %44 = vector.shape_cast %43 : vector<2x128xf32> to vector<2x1x128xf32>
    %cst_20 = arith.constant dense<0.000000e+00> : vector<2x16xf32>
    %45 = vector.multi_reduction <add>, %5, %cst_20 [2] : vector<2x16x128xf32> to vector<2x16xf32>
    %46 = vector.shape_cast %45 : vector<2x16xf32> to vector<2x16x1xf32>
    %cst_21 = arith.constant 1.280000e+02 : f32
    %47 = vector.broadcast %cst_21 : f32 to vector<2x16x1xf32>
    %48 = arith.divf %46, %47 : vector<2x16x1xf32>
    %49 = vector.broadcast %48 : vector<2x16x1xf32> to vector<2x16x128xf32>
    %50 = arith.subf %5, %49 : vector<2x16x128xf32>
    %51 = arith.mulf %50, %50 : vector<2x16x128xf32>
    %cst_22 = arith.constant dense<0.000000e+00> : vector<2x16xf32>
    %52 = vector.multi_reduction <add>, %51, %cst_22 [2] : vector<2x16x128xf32> to vector<2x16xf32>
    %53 = vector.shape_cast %52 : vector<2x16xf32> to vector<2x16x1xf32>
    %cst_23 = arith.constant 1.280000e+02 : f32
    %54 = vector.broadcast %cst_23 : f32 to vector<2x16x1xf32>
    %55 = arith.divf %53, %54 : vector<2x16x1xf32>
    %56 = vector.broadcast %48 : vector<2x16x1xf32> to vector<2x16x128xf32>
    %57 = arith.subf %5, %56 : vector<2x16x128xf32>
    %cst_24 = arith.constant 9.99999997E-7 : f32
    %58 = vector.broadcast %cst_24 : f32 to vector<2x16x1xf32>
    %59 = arith.addf %55, %58 : vector<2x16x1xf32>
    %60 = math.rsqrt %59 : vector<2x16x1xf32>
    %61 = vector.broadcast %60 : vector<2x16x1xf32> to vector<2x16x128xf32>
    %62 = arith.mulf %57, %61 : vector<2x16x128xf32>
    %cst_25 = arith.constant 1.000000e+00 : f32
    %63 = vector.broadcast %cst_25 : f32 to vector<2x1x128xf32>
    %64 = arith.addf %63, %44 : vector<2x1x128xf32>
    %65 = vector.broadcast %64 : vector<2x1x128xf32> to vector<2x16x128xf32>
    %66 = arith.mulf %62, %65 : vector<2x16x128xf32>
    %67 = vector.broadcast %42 : vector<2x1x128xf32> to vector<2x16x128xf32>
    %68 = arith.addf %66, %67 : vector<2x16x128xf32>
    %69 = arith.truncf %40 : vector<2x16x128xf32> to vector<2x16x128xbf16>
    %c0_26 = arith.constant 0 : index
    %c0_27 = arith.constant 0 : index
    %c0_28 = arith.constant 0 : index
    %70 = vector.load %arg17[%c0_26, %c0_27, %c0_28] : memref<2x32x128xbf16, #tpu.memory_space<vmem>>, vector<2x16x128xbf16>
    tpu.vector_store %arg17[%c0_26, %c0_27, %c0_28], %69 {strides = array<i32>} : memref<2x32x128xbf16, #tpu.memory_space<vmem>>, vector<2x16x128xbf16>,
    %71 = arith.truncf %68 : vector<2x16x128xf32> to vector<2x16x128xbf16>
    %c0_29 = arith.constant 0 : index
    %c16 = arith.constant 16 : index
    %c0_30 = arith.constant 0 : index
    %72 = vector.load %arg17[%c0_29, %c16, %c0_30] : memref<2x32x128xbf16, #tpu.memory_space<vmem>>, vector<2x16x128xbf16>
    tpu.vector_store %arg17[%c0_29, %c16, %c0_30], %71 {strides = array<i32>} : memref<2x32x128xbf16, #tpu.memory_space<vmem>>, vector<2x16x128xbf16>,
    %73 = vector.shape_cast %40 : vector<2x16x128xf32> to vector<32x128xf32>
    %74 = arith.truncf %73 : vector<32x128xf32> to vector<32x128xbf16>
    %c0_31 = arith.constant 0 : index
    %c0_32 = arith.constant 0 : index
    %c0_33 = arith.constant 0 : index
    %75 = vector.load %arg17[%c0_31, %c0_32, %c0_33] : memref<2x32x128xbf16, #tpu.memory_space<vmem>>, vector<2x32x128xbf16>
    %76 = vector.shape_cast %75 : vector<2x32x128xbf16> to vector<64x128xbf16>
    %c0_34 = arith.constant 0 : index
    %c0_35 = arith.constant 0 : index
    %c0_36 = arith.constant 0 : index
    %77 = vector.load %arg11[%c0_34, %c0_35, %c0_36] : memref<1x128x1024xbf16, #tpu.memory_space<vmem>>, vector<1x128x128xbf16>
    %78 = vector.shape_cast %77 : vector<1x128x128xbf16> to vector<128x128xbf16>
    %cst_37 = arith.constant dense<0.000000e+00> : vector<32x128xf32>
    %79 = tpu.matmul %74, %78, %cst_37 {dimension_numbers = #tpu.dot_dimension_numbers<[1], [0], [0], [1], [0, 0, 1, 1], [], []>} : vector<32x128xbf16>, vector<128x128xbf16>, vector<32x128xf32> -> vector<32x128xf32>
    %c0_38 = arith.constant 0 : index
    %c0_39 = arith.constant 0 : index
    %c768 = arith.constant 768 : index
    %80 = vector.load %arg13[%c0_38, %c0_39, %c768] : memref<1x1x1920xf32, #tpu.memory_space<vmem>>, vector<1x1x128xf32>
    %81 = vector.shape_cast %80 : vector<1x1x128xf32> to vector<1x128xf32>
    %82 = vector.broadcast %81 : vector<1x128xf32> to vector<32x128xf32>
    %83 = arith.addf %79, %82 : vector<32x128xf32>
    %c0_40 = arith.constant 0 : index
    %c0_41 = arith.constant 0 : index
    %c128 = arith.constant 128 : index
    %84 = vector.load %arg11[%c0_40, %c0_41, %c128] : memref<1x128x1024xbf16, #tpu.memory_space<vmem>>, vector<1x128x256xbf16>
    %85 = vector.shape_cast %84 : vector<1x128x256xbf16> to vector<128x256xbf16>
    %cst_42 = arith.constant dense<0.000000e+00> : vector<64x256xf32>
    %86 = tpu.matmul %76, %85, %cst_42 {dimension_numbers = #tpu.dot_dimension_numbers<[1], [0], [0], [1], [0, 0, 1, 1], [], []>} : vector<64x128xbf16>, vector<128x256xbf16>, vector<64x256xf32> -> vector<64x256xf32>
    %c0_43 = arith.constant 0 : index
    %c0_44 = arith.constant 0 : index
    %c896 = arith.constant 896 : index
    %87 = vector.load %arg13[%c0_43, %c0_44, %c896] : memref<1x1x1920xf32, #tpu.memory_space<vmem>>, vector<1x1x256xf32>
    %88 = vector.shape_cast %87 : vector<1x1x256xf32> to vector<1x256xf32>
    %89 = vector.broadcast %88 : vector<1x256xf32> to vector<64x256xf32>
    %90 = arith.addf %86, %89 : vector<64x256xf32>
    %91 = arith.truncf %83 : vector<32x128xf32> to vector<32x128xbf16>
    %92 = vector.shape_cast %91 : vector<32x128xbf16> to vector<2x16x128xbf16>
    %93 = vector.extract_strided_slice %90 {offsets = [0, 0], sizes = [64, 128], strides = [1, 1]} : vector<64x256xf32> to vector<64x128xf32>
    %94 = arith.truncf %93 : vector<64x128xf32> to vector<64x128xbf16>
    %95 = vector.shape_cast %94 : vector<64x128xbf16> to vector<2x32x128xbf16>
    %96 = vector.extract_strided_slice %90 {offsets = [0, 128], sizes = [64, 128], strides = [1, 1]} : vector<64x256xf32> to vector<64x128xf32>
    %97 = arith.truncf %96 : vector<64x128xf32> to vector<64x128xbf16>
    %98 = vector.shape_cast %97 : vector<64x128xbf16> to vector<2x32x128xbf16>
    %cst_45 = arith.constant 0.000000e+00 : f32
    %99 = vector.broadcast %cst_45 : f32 to vector<32x128xf32>
    %100 = vector.extract_strided_slice %92 {offsets = [0, 0, 0], sizes = [2, 16, 32], strides = [1, 1, 1]} : vector<2x16x128xbf16> to vector<2x16x32xbf16>
    %101 = vector.extract_strided_slice %95 {offsets = [0, 0, 0], sizes = [2, 32, 32], strides = [1, 1, 1]} : vector<2x32x128xbf16> to vector<2x32x32xbf16>
    "tpu.trace_start"() <{level = 10 : i32, message = "bqd,bkd->bqk"}> : () -> ()
    %cst_46 = arith.constant dense<0.000000e+00> : vector<2x16x32xf32>
    %102 = tpu.matmul %100, %101, %cst_46 {dimension_numbers = #tpu.dot_dimension_numbers<[2], [2], [1], [1], [0, 0, 0, 1, 1, 1], [0], [0]>} : vector<2x16x32xbf16>, vector<2x32x32xbf16>, vector<2x16x32xf32> -> vector<2x16x32xf32>
    "tpu.trace_stop"() : () -> ()
    %cst_47 = arith.constant dense<0xFF800000> : vector<2x16xf32>
    %103 = vector.multi_reduction <maximumf>, %102, %cst_47 [2] : vector<2x16x32xf32> to vector<2x16xf32>
    %104 = vector.shape_cast %103 : vector<2x16xf32> to vector<2x16x1xf32>
    %105 = vector.broadcast %104 : vector<2x16x1xf32> to vector<2x16x32xf32>
    %106 = arith.subf %102, %105 : vector<2x16x32xf32>
    %107 = math.exp %106 : vector<2x16x32xf32>
    %cst_48 = arith.constant dense<0.000000e+00> : vector<2x16xf32>
    %108 = vector.multi_reduction <add>, %107, %cst_48 [2] : vector<2x16x32xf32> to vector<2x16xf32>
    %109 = vector.shape_cast %108 : vector<2x16xf32> to vector<2x16x1xf32>
    %110 = vector.broadcast %109 : vector<2x16x1xf32> to vector<2x16x32xf32>
    %111 = arith.divf %107, %110 : vector<2x16x32xf32>
    %112 = arith.truncf %111 : vector<2x16x32xf32> to vector<2x16x32xbf16>
    %113 = vector.extract_strided_slice %98 {offsets = [0, 0, 0], sizes = [2, 32, 32], strides = [1, 1, 1]} : vector<2x32x128xbf16> to vector<2x32x32xbf16>
    "tpu.trace_start"() <{level = 10 : i32, message = "bqk,bkd->bqd"}> : () -> ()
    %cst_49 = arith.constant dense<0.000000e+00> : vector<2x16x32xf32>
    %114 = tpu.matmul %112, %113, %cst_49 {dimension_numbers = #tpu.dot_dimension_numbers<[2], [1], [1], [2], [0, 0, 0, 1, 1, 2], [0], [0]>} : vector<2x16x32xbf16>, vector<2x32x32xbf16>, vector<2x16x32xf32> -> vector<2x16x32xf32>
    "tpu.trace_stop"() : () -> ()
    %115 = vector.shape_cast %114 : vector<2x16x32xf32> to vector<32x32xf32>
    %116 = arith.truncf %115 : vector<32x32xf32> to vector<32x32xbf16>
    %c0_50 = arith.constant 0 : index
    %c0_51 = arith.constant 0 : index
    %c384 = arith.constant 384 : index
    %117 = vector.load %arg11[%c0_50, %c0_51, %c384] : memref<1x128x1024xbf16, #tpu.memory_space<vmem>>, vector<1x32x128xbf16>
    %118 = vector.shape_cast %117 : vector<1x32x128xbf16> to vector<32x128xbf16>
    %cst_52 = arith.constant dense<0.000000e+00> : vector<32x128xf32>
    %119 = tpu.matmul %116, %118, %cst_52 {dimension_numbers = #tpu.dot_dimension_numbers<[1], [0], [0], [1], [0, 0, 1, 1], [], []>} : vector<32x32xbf16>, vector<32x128xbf16>, vector<32x128xf32> -> vector<32x128xf32>
    %120 = arith.addf %99, %119 : vector<32x128xf32>
    %121 = vector.extract_strided_slice %92 {offsets = [0, 0, 32], sizes = [2, 16, 32], strides = [1, 1, 1]} : vector<2x16x128xbf16> to vector<2x16x32xbf16>
    %122 = vector.extract_strided_slice %95 {offsets = [0, 0, 32], sizes = [2, 32, 32], strides = [1, 1, 1]} : vector<2x32x128xbf16> to vector<2x32x32xbf16>
    "tpu.trace_start"() <{level = 10 : i32, message = "bqd,bkd->bqk"}> : () -> ()
    %cst_53 = arith.constant dense<0.000000e+00> : vector<2x16x32xf32>
    %123 = tpu.matmul %121, %122, %cst_53 {dimension_numbers = #tpu.dot_dimension_numbers<[2], [2], [1], [1], [0, 0, 0, 1, 1, 1], [0], [0]>} : vector<2x16x32xbf16>, vector<2x32x32xbf16>, vector<2x16x32xf32> -> vector<2x16x32xf32>
    "tpu.trace_stop"() : () -> ()
    %cst_54 = arith.constant dense<0xFF800000> : vector<2x16xf32>
    %124 = vector.multi_reduction <maximumf>, %123, %cst_54 [2] : vector<2x16x32xf32> to vector<2x16xf32>
    %125 = vector.shape_cast %124 : vector<2x16xf32> to vector<2x16x1xf32>
    %126 = vector.broadcast %125 : vector<2x16x1xf32> to vector<2x16x32xf32>
    %127 = arith.subf %123, %126 : vector<2x16x32xf32>
    %128 = math.exp %127 : vector<2x16x32xf32>
    %cst_55 = arith.constant dense<0.000000e+00> : vector<2x16xf32>
    %129 = vector.multi_reduction <add>, %128, %cst_55 [2] : vector<2x16x32xf32> to vector<2x16xf32>
    %130 = vector.shape_cast %129 : vector<2x16xf32> to vector<2x16x1xf32>
    %131 = vector.broadcast %130 : vector<2x16x1xf32> to vector<2x16x32xf32>
    %132 = arith.divf %128, %131 : vector<2x16x32xf32>
    %133 = arith.truncf %132 : vector<2x16x32xf32> to vector<2x16x32xbf16>
    %134 = vector.extract_strided_slice %98 {offsets = [0, 0, 32], sizes = [2, 32, 32], strides = [1, 1, 1]} : vector<2x32x128xbf16> to vector<2x32x32xbf16>
    "tpu.trace_start"() <{level = 10 : i32, message = "bqk,bkd->bqd"}> : () -> ()
    %cst_56 = arith.constant dense<0.000000e+00> : vector<2x16x32xf32>
    %135 = tpu.matmul %133, %134, %cst_56 {dimension_numbers = #tpu.dot_dimension_numbers<[2], [1], [1], [2], [0, 0, 0, 1, 1, 2], [0], [0]>} : vector<2x16x32xbf16>, vector<2x32x32xbf16>, vector<2x16x32xf32> -> vector<2x16x32xf32>
    "tpu.trace_stop"() : () -> ()
    %136 = vector.shape_cast %135 : vector<2x16x32xf32> to vector<32x32xf32>
    %137 = arith.truncf %136 : vector<32x32xf32> to vector<32x32xbf16>
    %c0_57 = arith.constant 0 : index
    %c32 = arith.constant 32 : index
    %c384_58 = arith.constant 384 : index
    %138 = vector.load %arg11[%c0_57, %c32, %c384_58] : memref<1x128x1024xbf16, #tpu.memory_space<vmem>>, vector<1x32x128xbf16>
    %139 = vector.shape_cast %138 : vector<1x32x128xbf16> to vector<32x128xbf16>
    %cst_59 = arith.constant dense<0.000000e+00> : vector<32x128xf32>
    %140 = tpu.matmul %137, %139, %cst_59 {dimension_numbers = #tpu.dot_dimension_numbers<[1], [0], [0], [1], [0, 0, 1, 1], [], []>} : vector<32x32xbf16>, vector<32x128xbf16>, vector<32x128xf32> -> vector<32x128xf32>
    %141 = arith.addf %120, %140 : vector<32x128xf32>
    %142 = vector.extract_strided_slice %92 {offsets = [0, 0, 64], sizes = [2, 16, 32], strides = [1, 1, 1]} : vector<2x16x128xbf16> to vector<2x16x32xbf16>
    %143 = vector.extract_strided_slice %95 {offsets = [0, 0, 64], sizes = [2, 32, 32], strides = [1, 1, 1]} : vector<2x32x128xbf16> to vector<2x32x32xbf16>
    "tpu.trace_start"() <{level = 10 : i32, message = "bqd,bkd->bqk"}> : () -> ()
    %cst_60 = arith.constant dense<0.000000e+00> : vector<2x16x32xf32>
    %144 = tpu.matmul %142, %143, %cst_60 {dimension_numbers = #tpu.dot_dimension_numbers<[2], [2], [1], [1], [0, 0, 0, 1, 1, 1], [0], [0]>} : vector<2x16x32xbf16>, vector<2x32x32xbf16>, vector<2x16x32xf32> -> vector<2x16x32xf32>
    "tpu.trace_stop"() : () -> ()
    %cst_61 = arith.constant dense<0xFF800000> : vector<2x16xf32>
    %145 = vector.multi_reduction <maximumf>, %144, %cst_61 [2] : vector<2x16x32xf32> to vector<2x16xf32>
    %146 = vector.shape_cast %145 : vector<2x16xf32> to vector<2x16x1xf32>
    %147 = vector.broadcast %146 : vector<2x16x1xf32> to vector<2x16x32xf32>
    %148 = arith.subf %144, %147 : vector<2x16x32xf32>
    %149 = math.exp %148 : vector<2x16x32xf32>
    %cst_62 = arith.constant dense<0.000000e+00> : vector<2x16xf32>
    %150 = vector.multi_reduction <add>, %149, %cst_62 [2] : vector<2x16x32xf32> to vector<2x16xf32>
    %151 = vector.shape_cast %150 : vector<2x16xf32> to vector<2x16x1xf32>
    %152 = vector.broadcast %151 : vector<2x16x1xf32> to vector<2x16x32xf32>
    %153 = arith.divf %149, %152 : vector<2x16x32xf32>
    %154 = arith.truncf %153 : vector<2x16x32xf32> to vector<2x16x32xbf16>
    %155 = vector.extract_strided_slice %98 {offsets = [0, 0, 64], sizes = [2, 32, 32], strides = [1, 1, 1]} : vector<2x32x128xbf16> to vector<2x32x32xbf16>
    "tpu.trace_start"() <{level = 10 : i32, message = "bqk,bkd->bqd"}> : () -> ()
    %cst_63 = arith.constant dense<0.000000e+00> : vector<2x16x32xf32>
    %156 = tpu.matmul %154, %155, %cst_63 {dimension_numbers = #tpu.dot_dimension_numbers<[2], [1], [1], [2], [0, 0, 0, 1, 1, 2], [0], [0]>} : vector<2x16x32xbf16>, vector<2x32x32xbf16>, vector<2x16x32xf32> -> vector<2x16x32xf32>
    "tpu.trace_stop"() : () -> ()
    %157 = vector.shape_cast %156 : vector<2x16x32xf32> to vector<32x32xf32>
    %158 = arith.truncf %157 : vector<32x32xf32> to vector<32x32xbf16>
    %c0_64 = arith.constant 0 : index
    %c64 = arith.constant 64 : index
    %c384_65 = arith.constant 384 : index
    %159 = vector.load %arg11[%c0_64, %c64, %c384_65] : memref<1x128x1024xbf16, #tpu.memory_space<vmem>>, vector<1x32x128xbf16>
    %160 = vector.shape_cast %159 : vector<1x32x128xbf16> to vector<32x128xbf16>
    %cst_66 = arith.constant dense<0.000000e+00> : vector<32x128xf32>
    %161 = tpu.matmul %158, %160, %cst_66 {dimension_numbers = #tpu.dot_dimension_numbers<[1], [0], [0], [1], [0, 0, 1, 1], [], []>} : vector<32x32xbf16>, vector<32x128xbf16>, vector<32x128xf32> -> vector<32x128xf32>
    %162 = arith.addf %141, %161 : vector<32x128xf32>
    %163 = vector.extract_strided_slice %92 {offsets = [0, 0, 96], sizes = [2, 16, 32], strides = [1, 1, 1]} : vector<2x16x128xbf16> to vector<2x16x32xbf16>
    %164 = vector.extract_strided_slice %95 {offsets = [0, 0, 96], sizes = [2, 32, 32], strides = [1, 1, 1]} : vector<2x32x128xbf16> to vector<2x32x32xbf16>
    "tpu.trace_start"() <{level = 10 : i32, message = "bqd,bkd->bqk"}> : () -> ()
    %cst_67 = arith.constant dense<0.000000e+00> : vector<2x16x32xf32>
    %165 = tpu.matmul %163, %164, %cst_67 {dimension_numbers = #tpu.dot_dimension_numbers<[2], [2], [1], [1], [0, 0, 0, 1, 1, 1], [0], [0]>} : vector<2x16x32xbf16>, vector<2x32x32xbf16>, vector<2x16x32xf32> -> vector<2x16x32xf32>
    "tpu.trace_stop"() : () -> ()
    %cst_68 = arith.constant dense<0xFF800000> : vector<2x16xf32>
    %166 = vector.multi_reduction <maximumf>, %165, %cst_68 [2] : vector<2x16x32xf32> to vector<2x16xf32>
    %167 = vector.shape_cast %166 : vector<2x16xf32> to vector<2x16x1xf32>
    %168 = vector.broadcast %167 : vector<2x16x1xf32> to vector<2x16x32xf32>
    %169 = arith.subf %165, %168 : vector<2x16x32xf32>
    %170 = math.exp %169 : vector<2x16x32xf32>
    %cst_69 = arith.constant dense<0.000000e+00> : vector<2x16xf32>
    %171 = vector.multi_reduction <add>, %170, %cst_69 [2] : vector<2x16x32xf32> to vector<2x16xf32>
    %172 = vector.shape_cast %171 : vector<2x16xf32> to vector<2x16x1xf32>
    %173 = vector.broadcast %172 : vector<2x16x1xf32> to vector<2x16x32xf32>
    %174 = arith.divf %170, %173 : vector<2x16x32xf32>
    %175 = arith.truncf %174 : vector<2x16x32xf32> to vector<2x16x32xbf16>
    %176 = vector.extract_strided_slice %98 {offsets = [0, 0, 96], sizes = [2, 32, 32], strides = [1, 1, 1]} : vector<2x32x128xbf16> to vector<2x32x32xbf16>
    "tpu.trace_start"() <{level = 10 : i32, message = "bqk,bkd->bqd"}> : () -> ()
    %cst_70 = arith.constant dense<0.000000e+00> : vector<2x16x32xf32>
    %177 = tpu.matmul %175, %176, %cst_70 {dimension_numbers = #tpu.dot_dimension_numbers<[2], [1], [1], [2], [0, 0, 0, 1, 1, 2], [0], [0]>} : vector<2x16x32xbf16>, vector<2x32x32xbf16>, vector<2x16x32xf32> -> vector<2x16x32xf32>
    "tpu.trace_stop"() : () -> ()
    %178 = vector.shape_cast %177 : vector<2x16x32xf32> to vector<32x32xf32>
    %179 = arith.truncf %178 : vector<32x32xf32> to vector<32x32xbf16>
    %c0_71 = arith.constant 0 : index
    %c96 = arith.constant 96 : index
    %c384_72 = arith.constant 384 : index
    %180 = vector.load %arg11[%c0_71, %c96, %c384_72] : memref<1x128x1024xbf16, #tpu.memory_space<vmem>>, vector<1x32x128xbf16>
    %181 = vector.shape_cast %180 : vector<1x32x128xbf16> to vector<32x128xbf16>
    %cst_73 = arith.constant dense<0.000000e+00> : vector<32x128xf32>
    %182 = tpu.matmul %179, %181, %cst_73 {dimension_numbers = #tpu.dot_dimension_numbers<[1], [0], [0], [1], [0, 0, 1, 1], [], []>} : vector<32x32xbf16>, vector<32x128xbf16>, vector<32x128xf32> -> vector<32x128xf32>
    %183 = arith.addf %162, %182 : vector<32x128xf32>
    %184 = vector.shape_cast %4 : vector<2x16x128xf32> to vector<32x128xf32>
    %185 = arith.addf %184, %183 : vector<32x128xf32>
    %c0_74 = arith.constant 0 : index
    %c0_75 = arith.constant 0 : index
    %c1152 = arith.constant 1152 : index
    %186 = vector.load %arg13[%c0_74, %c0_75, %c1152] : memref<1x1x1920xf32, #tpu.memory_space<vmem>>, vector<1x1x128xf32>
    %187 = vector.shape_cast %186 : vector<1x1x128xf32> to vector<1x128xf32>
    %188 = vector.broadcast %187 : vector<1x128xf32> to vector<32x128xf32>
    %189 = arith.addf %185, %188 : vector<32x128xf32>
    %190 = vector.shape_cast %189 : vector<32x128xf32> to vector<2x16x128xf32>
    %191 = vector.extract_strided_slice %12 {offsets = [0, 512], sizes = [2, 128], strides = [1, 1]} : vector<2x768xf32> to vector<2x128xf32>
    %192 = vector.shape_cast %191 : vector<2x128xf32> to vector<2x1x128xf32>
    %193 = vector.extract_strided_slice %12 {offsets = [0, 640], sizes = [2, 128], strides = [1, 1]} : vector<2x768xf32> to vector<2x128xf32>
    %194 = vector.shape_cast %193 : vector<2x128xf32> to vector<2x1x128xf32>
    %cst_76 = arith.constant dense<0.000000e+00> : vector<2x16xf32>
    %195 = vector.multi_reduction <add>, %190, %cst_76 [2] : vector<2x16x128xf32> to vector<2x16xf32>
    %196 = vector.shape_cast %195 : vector<2x16xf32> to vector<2x16x1xf32>
    %cst_77 = arith.constant 1.280000e+02 : f32
    %197 = vector.broadcast %cst_77 : f32 to vector<2x16x1xf32>
    %198 = arith.divf %196, %197 : vector<2x16x1xf32>
    %199 = vector.broadcast %198 : vector<2x16x1xf32> to vector<2x16x128xf32>
    %200 = arith.subf %190, %199 : vector<2x16x128xf32>
    %201 = arith.mulf %200, %200 : vector<2x16x128xf32>
    %cst_78 = arith.constant dense<0.000000e+00> : vector<2x16xf32>
    %202 = vector.multi_reduction <add>, %201, %cst_78 [2] : vector<2x16x128xf32> to vector<2x16xf32>
    %203 = vector.shape_cast %202 : vector<2x16xf32> to vector<2x16x1xf32>
    %cst_79 = arith.constant 1.280000e+02 : f32
    %204 = vector.broadcast %cst_79 : f32 to vector<2x16x1xf32>
    %205 = arith.divf %203, %204 : vector<2x16x1xf32>
    %206 = vector.broadcast %198 : vector<2x16x1xf32> to vector<2x16x128xf32>
    %207 = arith.subf %190, %206 : vector<2x16x128xf32>
    %cst_80 = arith.constant 9.99999997E-7 : f32
    %208 = vector.broadcast %cst_80 : f32 to vector<2x16x1xf32>
    %209 = arith.addf %205, %208 : vector<2x16x1xf32>
    %210 = math.rsqrt %209 : vector<2x16x1xf32>
    %211 = vector.broadcast %210 : vector<2x16x1xf32> to vector<2x16x128xf32>
    %212 = arith.mulf %207, %211 : vector<2x16x128xf32>
    %cst_81 = arith.constant 1.000000e+00 : f32
    %213 = vector.broadcast %cst_81 : f32 to vector<2x1x128xf32>
    %214 = arith.addf %213, %194 : vector<2x1x128xf32>
    %215 = vector.broadcast %214 : vector<2x1x128xf32> to vector<2x16x128xf32>
    %216 = arith.mulf %212, %215 : vector<2x16x128xf32>
    %217 = vector.broadcast %192 : vector<2x1x128xf32> to vector<2x16x128xf32>
    %218 = arith.addf %216, %217 : vector<2x16x128xf32>
    %219 = vector.shape_cast %218 : vector<2x16x128xf32> to vector<32x128xf32>
    %220 = arith.truncf %219 : vector<32x128xf32> to vector<32x128xbf16>
    %c0_82 = arith.constant 0 : index
    %c0_83 = arith.constant 0 : index
    %c512 = arith.constant 512 : index
    %221 = vector.load %arg11[%c0_82, %c0_83, %c512] : memref<1x128x1024xbf16, #tpu.memory_space<vmem>>, vector<1x128x512xbf16>
    %222 = vector.shape_cast %221 : vector<1x128x512xbf16> to vector<128x512xbf16>
    %cst_84 = arith.constant dense<0.000000e+00> : vector<32x512xf32>
    %223 = tpu.matmul %220, %222, %cst_84 {dimension_numbers = #tpu.dot_dimension_numbers<[1], [0], [0], [1], [0, 0, 1, 1], [], []>} : vector<32x128xbf16>, vector<128x512xbf16>, vector<32x512xf32> -> vector<32x512xf32>
    %c0_85 = arith.constant 0 : index
    %c0_86 = arith.constant 0 : index
    %c1280 = arith.constant 1280 : index
    %224 = vector.load %arg13[%c0_85, %c0_86, %c1280] : memref<1x1x1920xf32, #tpu.memory_space<vmem>>, vector<1x1x512xf32>
    %225 = vector.shape_cast %224 : vector<1x1x512xf32> to vector<1x512xf32>
    %226 = vector.broadcast %225 : vector<1x512xf32> to vector<32x512xf32>
    %227 = arith.addf %223, %226 : vector<32x512xf32>
    %cst_87 = arith.constant 0.000000e+00 : f32
    %228 = vector.broadcast %cst_87 : f32 to vector<32x512xf32>
    %229 = arith.maximumf %227, %228 : vector<32x512xf32>
    %230 = arith.mulf %229, %229 : vector<32x512xf32>
    %231 = arith.truncf %230 : vector<32x512xf32> to vector<32x512xbf16>
    %c0_88 = arith.constant 0 : index
    %c0_89 = arith.constant 0 : index
    %c0_90 = arith.constant 0 : index
    %232 = vector.load %arg12[%c0_88, %c0_89, %c0_90] : memref<1x512x128xbf16, #tpu.memory_space<vmem>>, vector<1x512x128xbf16>
    %233 = vector.shape_cast %232 : vector<1x512x128xbf16> to vector<512x128xbf16>
    %cst_91 = arith.constant dense<0.000000e+00> : vector<32x128xf32>
    %234 = tpu.matmul %231, %233, %cst_91 {dimension_numbers = #tpu.dot_dimension_numbers<[1], [0], [0], [1], [0, 0, 1, 1], [], []>} : vector<32x512xbf16>, vector<512x128xbf16>, vector<32x128xf32> -> vector<32x128xf32>
    %c0_92 = arith.constant 0 : index
    %c0_93 = arith.constant 0 : index
    %c1792 = arith.constant 1792 : index
    %235 = vector.load %arg13[%c0_92, %c0_93, %c1792] : memref<1x1x1920xf32, #tpu.memory_space<vmem>>, vector<1x1x128xf32>
    %236 = vector.shape_cast %235 : vector<1x1x128xf32> to vector<1x128xf32>
    %237 = vector.broadcast %236 : vector<1x128xf32> to vector<32x128xf32>
    %238 = arith.addf %234, %237 : vector<32x128xf32>
    %239 = arith.addf %189, %238 : vector<32x128xf32>
    %240 = vector.shape_cast %239 : vector<32x128xf32> to vector<2x16x128xf32>
    %c0_94 = arith.constant 0 : index
    %c0_95 = arith.constant 0 : index
    %c0_96 = arith.constant 0 : index
    %241 = vector.load %arg14[%c0_94, %c0_95, %c0_96] : memref<2x16x128xf32, #tpu.memory_space<vmem>>, vector<2x16x128xf32>
    tpu.vector_store %arg14[%c0_94, %c0_95, %c0_96], %240 {strides = array<i32>} : memref<2x16x128xf32, #tpu.memory_space<vmem>>, vector<2x16x128xf32>,
    return
  }
  func.func @transform_0(%arg0: i32, %arg1: i32) -> (i32, i32, i32) {
    %c0_i32 = arith.constant 0 : i32
    %c0_i32_0 = arith.constant 0 : i32
    %c0_i32_1 = arith.constant 0 : i32
    return %arg0, %c0_i32, %c0_i32_0 : i32, i32, i32
  }
  func.func @transform_1(%arg0: i32, %arg1: i32) -> (i32, i32, i32) {
    %c0_i32 = arith.constant 0 : i32
    %c0_i32_0 = arith.constant 0 : i32
    %c0_i32_1 = arith.constant 0 : i32
    return %arg0, %c0_i32, %c0_i32_0 : i32, i32, i32
  }
  func.func @transform_2(%arg0: i32, %arg1: i32) -> (i32, i32) {
    %c0_i32 = arith.constant 0 : i32
    %c0_i32_0 = arith.constant 0 : i32
    %c0_i32_1 = arith.constant 0 : i32
    return %c0_i32, %c0_i32_0 : i32, i32
  }
  func.func @transform_3(%arg0: i32, %arg1: i32) -> (i32, i32) {
    %c0_i32 = arith.constant 0 : i32
    %c0_i32_0 = arith.constant 0 : i32
    %c0_i32_1 = arith.constant 0 : i32
    return %c0_i32, %c0_i32_0 : i32, i32
  }
  func.func @transform_4(%arg0: i32, %arg1: i32) -> (i32, i32) {
    %c0_i32 = arith.constant 0 : i32
    %c0_i32_0 = arith.constant 0 : i32
    %c0_i32_1 = arith.constant 0 : i32
    return %c0_i32, %c0_i32_0 : i32, i32
  }
  func.func @transform_5(%arg0: i32, %arg1: i32) -> (i32, i32) {
    %c0_i32 = arith.constant 0 : i32
    %c0_i32_0 = arith.constant 0 : i32
    %c0_i32_1 = arith.constant 0 : i32
    return %c0_i32, %c0_i32_0 : i32, i32
  }
  func.func @transform_6(%arg0: i32, %arg1: i32) -> (i32, i32) {
    %c0_i32 = arith.constant 0 : i32
    %c0_i32_0 = arith.constant 0 : i32
    %c0_i32_1 = arith.constant 0 : i32
    return %c0_i32, %c0_i32_0 : i32, i32
  }
  func.func @transform_7(%arg0: i32, %arg1: i32) -> (i32, i32) {
    %c0_i32 = arith.constant 0 : i32
    %c0_i32_0 = arith.constant 0 : i32
    %c0_i32_1 = arith.constant 0 : i32
    return %c0_i32, %c0_i32_0 : i32, i32
  }
  func.func @transform_8(%arg0: i32, %arg1: i32) -> (i32, i32, i32) {
    %c0_i32 = arith.constant 0 : i32
    %c0_i32_0 = arith.constant 0 : i32
    %c0_i32_1 = arith.constant 0 : i32
    return %arg1, %c0_i32, %c0_i32_0 : i32, i32, i32
  }
  func.func @transform_9(%arg0: i32, %arg1: i32) -> (i32, i32, i32) {
    %c0_i32 = arith.constant 0 : i32
    %c0_i32_0 = arith.constant 0 : i32
    %c0_i32_1 = arith.constant 0 : i32
    return %arg1, %c0_i32, %c0_i32_0 : i32, i32, i32
  }
  func.func @transform_10(%arg0: i32, %arg1: i32) -> (i32, i32, i32) {
    %c0_i32 = arith.constant 0 : i32
    %c0_i32_0 = arith.constant 0 : i32
    %c0_i32_1 = arith.constant 0 : i32
    return %arg1, %c0_i32, %c0_i32_0 : i32, i32, i32
  }
  func.func @transform_11(%arg0: i32, %arg1: i32) -> (i32, i32, i32) {
    %c0_i32 = arith.constant 0 : i32
    %c0_i32_0 = arith.constant 0 : i32
    %c0_i32_1 = arith.constant 0 : i32
    return %arg1, %c0_i32, %c0_i32_0 : i32, i32, i32
  }
  func.func @transform_12(%arg0: i32, %arg1: i32) -> (i32, i32, i32) {
    %c0_i32 = arith.constant 0 : i32
    %c0_i32_0 = arith.constant 0 : i32
    %c0_i32_1 = arith.constant 0 : i32
    return %arg0, %c0_i32, %c0_i32_0 : i32, i32, i32
  }
}

</mosaic_0001>

<llo_original>
// kernel: artdapter_forward.1
$region0: #{artdapter_forward.1}
  #allocation0 [shape = 'u32[]', space=smem, size = 0x4, offset = 0x4, fixed_abs, tag = 'smem constant byte address 0x4 - core index']
  #allocation1 [shape = 'u32[72,128]{1,0:T(1,128)}', space=vmem, size = 0x9000, scoped, tag = 'internal scratch']
  #allocation2 [shape = 'bf16[2,128]{1,0:T(2,128)(2,1)}', space=vmem, size = 0x200, scoped, tag = 'scratch operand']
  #allocation3 [shape = 'f32[2,16,128]{2,1,0:T(8,128)}', space=vmem, size = 0x4000, scoped, tag = 'scratch operand']
  #allocation4 [shape = 'bf16[2,32,128]{2,1,0:T(8,128)(2,1)}', space=vmem, size = 0x4000, scoped, tag = 'scratch operand']
  %s0 = inlined_call_operand.vmem [shape: f32[2,1,64], index: 0, kind: input, shape index: {}]
  %s1 = inlined_call_operand.hbm [shape: f32[2,16,256], index: 1, kind: input, shape index: {}]
  %s2 = inlined_call_operand.hbm [shape: f32[16,128], index: 2, kind: input, shape index: {}]
  %s3 = inlined_call_operand.hbm [shape: bf16[64,128], index: 3, kind: input, shape index: {}]
  %s4 = inlined_call_operand.hbm [shape: bf16[128,128], index: 4, kind: input, shape index: {}]
  %s5 = inlined_call_operand.hbm [shape: bf16[128,128], index: 5, kind: input, shape index: {}]
  %s6 = inlined_call_operand.hbm [shape: bf16[256,128], index: 6, kind: input, shape index: {}]
  %s7 = inlined_call_operand.vmem [shape: f32[1,512], index: 7, kind: input, shape index: {}]
  %s8 = inlined_call_operand.hbm [shape: bf16[2,128,768], index: 8, kind: input, shape index: {}]
  %s9 = inlined_call_operand.hbm [shape: bf16[2,128,1024], index: 9, kind: input, shape index: {}]
  %s10 = inlined_call_operand.hbm [shape: bf16[2,512,128], index: 10, kind: input, shape index: {}]
  %s11 = inlined_call_operand.hbm [shape: f32[2,1,1920], index: 11, kind: input, shape index: {}]
  %s12 = inlined_call_operand.hbm [shape: f32[2,16,128], index: 12, kind: output, shape index: {}]
  %s13 = sld [smem:[#allocation0]]
  $region125: #{artdapter_forward.1} parent=0
    _
  %s15 = ssub.s32 1, %s13
  %s16 = scalar_select 0, %s15, %s13
  $region1: #{artdapter_forward.1} parent=0
    #allocation5 [shape = 'u8[32768]{0}', space=vmem, size = 0x8000, scoped, tag = 'input window, operand 1, single buffered']
    #allocation6 [shape = 's32[2]{0}', space=sflag, size = 0x8, scoped, tag = 'scoped memory for artdapter_forward.1']
    #allocation7 [shape = 's32[2]{0}', space=sflag, size = 0x8, scoped, tag = 'scoped memory for artdapter_forward.1']
    #allocation8 [shape = 'u8[8192]{0}', space=vmem, size = 0x2000, scoped, tag = 'input window, operand 2, single buffered']
    #allocation9 [shape = 's32[1]{0}', space=sflag, size = 0x4, scoped, tag = 'scoped memory for artdapter_forward.1']
    #allocation10 [shape = 'u8[16384]{0}', space=vmem, size = 0x4000, scoped, tag = 'input window, operand 3, single buffered']
    #allocation11 [shape = 'u8[32768]{0}', space=vmem, size = 0x8000, scoped, tag = 'input window, operand 4, single buffered']
    #allocation12 [shape = 's32[1]{0}', space=sflag, size = 0x4, scoped, tag = 'scoped memory for artdapter_forward.1']
    #allocation13 [shape = 'u8[32768]{0}', space=vmem, size = 0x8000, scoped, tag = 'input window, operand 5, single buffered']
    #allocation14 [shape = 'u8[65536]{0}', space=vmem, size = 0x10000, scoped, tag = 'input window, operand 6, single buffered']
    #allocation15 [shape = 's32[1]{0}', space=sflag, size = 0x4, scoped, tag = 'scoped memory for artdapter_forward.1']
    #allocation16 [shape = 'u8[393216]{0}', space=vmem, size = 0x60000, scoped, tag = 'input window, operand 8']
    #allocation17 [shape = 'u8[524288]{0}', space=vmem, size = 0x80000, scoped, tag = 'input window, operand 9']
    #allocation18 [shape = 'u8[262144]{0}', space=vmem, size = 0x40000, scoped, tag = 'input window, operand 10']
    #allocation19 [shape = 'u8[15360]{0}', space=vmem, size = 0x3c00, scoped, tag = 'input window, operand 11']
    #allocation20 [shape = 'u8[16384]{0}', space=vmem, size = 0x4000, scoped, tag = 'output window, operand 0, single buffered']
    %17 = vsyncpa [#allocation6], 0
    %18 = vsyncpa [#allocation9], 0
    %19 = vsyncpa [#allocation12], 0
    %20 = vsyncpa [#allocation15], 0
    %21 = vsyncpa [#allocation7], 0
    loop: start=0, step=1, limit=4
    $region2: #{artdapter_forward.1} parent=1 // loop_pre_header
      _
    $region3: #{artdapter_forward.1} parent=1 // loop_header
      %s23 = sphi 0, %s27
      %p24 = scmp.ge.s32.totalorder %s23, 4
      %s30 = sphi 0, %s42
      %s31 = sphi 0, %s38
      %s32 = sphi 0, %s30
      %s33 = sphi 0, %s31
      %s34 = sphi 0, %s32
      %s35 = sphi 0, %s33
      %s45 = sphi 0, %s47
      %s48 = sphi 0, %s45
      %s49 = sphi 0, %s48
      %s65 = sphi 0, %s49
      %s71 = sphi 0, %s73
      %s74 = sphi 0, %s71
      %s75 = sphi 0, %s74
      %s91 = sphi 0, %s75
      %s95 = sphi 0, %s95
      %s97 = sphi 0, %s95
      %s98 = sphi 0, %s97
      %s112 = sphi 0, %s98
      %s116 = sphi 0, %s116
      %s118 = sphi 0, %s116
      %s119 = sphi 0, %s118
      %s133 = sphi 0, %s119
      %s137 = sphi 0, %s137
      %s139 = sphi 0, %s137
      %s140 = sphi 0, %s139
      %s154 = sphi 0, %s140
      %s158 = sphi 0, %s158
      %s160 = sphi 0, %s158
      %s161 = sphi 0, %s160
      %s175 = sphi 0, %s161
      %s179 = sphi 0, %s179
      %s181 = sphi 0, %s179
      %s182 = sphi 0, %s181
      %s196 = sphi 0, %s182
      %s200 = sphi 0, %s200
      %s202 = sphi 0, %s200
      %s203 = sphi 0, %s202
      %s217 = sphi 0, %s203
      %s223 = sphi 0, %s225
      %s226 = sphi 0, %s223
      %s227 = sphi 0, %s226
      %s243 = sphi 0, %s227
      %s249 = sphi 0, %s251
      %s252 = sphi 0, %s249
      %s253 = sphi 0, %s252
      %s269 = sphi 0, %s253
      %s275 = sphi 0, %s277
      %s278 = sphi 0, %s275
      %s279 = sphi 0, %s278
      %s295 = sphi 0, %s279
      %s301 = sphi 0, %s303
      %s304 = sphi 0, %s301
      %s305 = sphi 0, %s304
      %s321 = sphi 0, %s305
      %s327 = sphi 0, %s329
      %s330 = sphi 0, %s327
      %s331 = sphi 0, %s330
      %s347 = sphi 0, %s331
    $region4: #{artdapter_forward.1} parent=1 // loop_header_branch
      %26 = sbr.rel (%p24) target = $region8
    $region5: #{artdapter_forward.1} parent=1 // loop_body
      %s28 = ssub.s32 %s23, 1
      %s29 = ssub.s32 %s23, 2
      %s36 = sadd.s32 1, %s31
      %p37 = scmp.ge.s32.totalorder %s36, 2
      %s38 = scalar_select %p37, 0, %s36
      %s39 = sadd.s32 1, %s30
      %s40 = scalar_select %p37, %s39, %s30
      %p41 = scmp.ge.s32.totalorder %s40, 1
      %s42 = scalar_select %p41, 0, %s40
      %s43 = ssub.s32 %s30, %s42
      %p44 = scmp.eq.s32.totalorder %s43, 0
      %s46 = sadd.s32 %s45, 1
      %s47 = scalar_select %p44, %s45, %s46
      %p50 = pneg %p44
      %p51 = scmp.eq.s32.totalorder %s23, 1
      %p52 = por %p50, %p51
      %p53 = scmp.ne.s32.totalorder %s45, %s48
      %p54 = scmp.eq.s32.totalorder %s23, 0
      %p55 = por %p53, %p54
      %p56 = scmp.ne.s32.totalorder %s45, %s48
      %p57 = scmp.eq.s32.totalorder %s28, 1
      %p58 = por %p56, %p57
      %p59 = scmp.ne.s32.totalorder %s48, %s49
      %p60 = scmp.eq.s32.totalorder %s28, 0
      %p61 = por %p59, %p60
      %p62 = scmp.ne.s32.totalorder %s48, %s49
      %p63 = scmp.eq.s32.totalorder %s29, 1
      %p64 = por %p62, %p63
      %p66 = scmp.ne.s32.totalorder %s49, %s65
      %p67 = scmp.eq.s32.totalorder %s29, 0
      %p68 = por %p66, %p67
      %s69 = ssub.s32 %s30, %s42
      %p70 = scmp.eq.s32.totalorder %s69, 0
      %s72 = sadd.s32 %s71, 1
      %s73 = scalar_select %p70, %s71, %s72
      %p76 = pneg %p70
      %p77 = scmp.eq.s32.totalorder %s23, 1
      %p78 = por %p76, %p77
      %p79 = scmp.ne.s32.totalorder %s71, %s74
      %p80 = scmp.eq.s32.totalorder %s23, 0
      %p81 = por %p79, %p80
      %p82 = scmp.ne.s32.totalorder %s71, %s74
      %p83 = scmp.eq.s32.totalorder %s28, 1
      %p84 = por %p82, %p83
      %p85 = scmp.ne.s32.totalorder %s74, %s75
      %p86 = scmp.eq.s32.totalorder %s28, 0
      %p87 = por %p85, %p86
      %p88 = scmp.ne.s32.totalorder %s74, %s75
      %p89 = scmp.eq.s32.totalorder %s29, 1
      %p90 = por %p88, %p89
      %p92 = scmp.ne.s32.totalorder %s75, %s91
      %p93 = scmp.eq.s32.totalorder %s29, 0
      %p94 = por %p92, %p93
      %s96 = sadd.s32 %s95, 1
      %p99 = scmp.eq.s32.totalorder %s23, 1
      %p100 = scmp.ne.s32.totalorder %s95, %s97
      %p101 = scmp.eq.s32.totalorder %s23, 0
      %p102 = por %p100, %p101
      %p103 = scmp.ne.s32.totalorder %s95, %s97
      %p104 = scmp.eq.s32.totalorder %s28, 1
      %p105 = por %p103, %p104
      %p106 = scmp.ne.s32.totalorder %s97, %s98
      %p107 = scmp.eq.s32.totalorder %s28, 0
      %p108 = por %p106, %p107
      %p109 = scmp.ne.s32.totalorder %s97, %s98
      %p110 = scmp.eq.s32.totalorder %s29, 1
      %p111 = por %p109, %p110
      %p113 = scmp.ne.s32.totalorder %s98, %s112
      %p114 = scmp.eq.s32.totalorder %s29, 0
      %p115 = por %p113, %p114
      %s117 = sadd.s32 %s116, 1
      %p120 = scmp.eq.s32.totalorder %s23, 1
      %p121 = scmp.ne.s32.totalorder %s116, %s118
      %p122 = scmp.eq.s32.totalorder %s23, 0
      %p123 = por %p121, %p122
      %p124 = scmp.ne.s32.totalorder %s116, %s118
      %p125 = scmp.eq.s32.totalorder %s28, 1
      %p126 = por %p124, %p125
      %p127 = scmp.ne.s32.totalorder %s118, %s119
      %p128 = scmp.eq.s32.totalorder %s28, 0
      %p129 = por %p127, %p128
      %p130 = scmp.ne.s32.totalorder %s118, %s119
      %p131 = scmp.eq.s32.totalorder %s29, 1
      %p132 = por %p130, %p131
      %p134 = scmp.ne.s32.totalorder %s119, %s133
      %p135 = scmp.eq.s32.totalorder %s29, 0
      %p136 = por %p134, %p135
      %s138 = sadd.s32 %s137, 1
      %p141 = scmp.eq.s32.totalorder %s23, 1
      %p142 = scmp.ne.s32.totalorder %s137, %s139
      %p143 = scmp.eq.s32.totalorder %s23, 0
      %p144 = por %p142, %p143
      %p145 = scmp.ne.s32.totalorder %s137, %s139
      %p146 = scmp.eq.s32.totalorder %s28, 1
      %p147 = por %p145, %p146
      %p148 = scmp.ne.s32.totalorder %s139, %s140
      %p149 = scmp.eq.s32.totalorder %s28, 0
      %p150 = por %p148, %p149
      %p151 = scmp.ne.s32.totalorder %s139, %s140
      %p152 = scmp.eq.s32.totalorder %s29, 1
      %p153 = por %p151, %p152
      %p155 = scmp.ne.s32.totalorder %s140, %s154
      %p156 = scmp.eq.s32.totalorder %s29, 0
      %p157 = por %p155, %p156
      %s159 = sadd.s32 %s158, 1
      %p162 = scmp.eq.s32.totalorder %s23, 1
      %p163 = scmp.ne.s32.totalorder %s158, %s160
      %p164 = scmp.eq.s32.totalorder %s23, 0
      %p165 = por %p163, %p164
      %p166 = scmp.ne.s32.totalorder %s158, %s160
      %p167 = scmp.eq.s32.totalorder %s28, 1
      %p168 = por %p166, %p167
      %p169 = scmp.ne.s32.totalorder %s160, %s161
      %p170 = scmp.eq.s32.totalorder %s28, 0
      %p171 = por %p169, %p170
      %p172 = scmp.ne.s32.totalorder %s160, %s161
      %p173 = scmp.eq.s32.totalorder %s29, 1
      %p174 = por %p172, %p173
      %p176 = scmp.ne.s32.totalorder %s161, %s175
      %p177 = scmp.eq.s32.totalorder %s29, 0
      %p178 = por %p176, %p177
      %s180 = sadd.s32 %s179, 1
      %p183 = scmp.eq.s32.totalorder %s23, 1
      %p184 = scmp.ne.s32.totalorder %s179, %s181
      %p185 = scmp.eq.s32.totalorder %s23, 0
      %p186 = por %p184, %p185
      %p187 = scmp.ne.s32.totalorder %s179, %s181
      %p188 = scmp.eq.s32.totalorder %s28, 1
      %p189 = por %p187, %p188
      %p190 = scmp.ne.s32.totalorder %s181, %s182
      %p191 = scmp.eq.s32.totalorder %s28, 0
      %p192 = por %p190, %p191
      %p193 = scmp.ne.s32.totalorder %s181, %s182
      %p194 = scmp.eq.s32.totalorder %s29, 1
      %p195 = por %p193, %p194
      %p197 = scmp.ne.s32.totalorder %s182, %s196
      %p198 = scmp.eq.s32.totalorder %s29, 0
      %p199 = por %p197, %p198
      %s201 = sadd.s32 %s200, 1
      %p204 = scmp.eq.s32.totalorder %s23, 1
      %p205 = scmp.ne.s32.totalorder %s200, %s202
      %p206 = scmp.eq.s32.totalorder %s23, 0
      %p207 = por %p205, %p206
      %p208 = scmp.ne.s32.totalorder %s200, %s202
      %p209 = scmp.eq.s32.totalorder %s28, 1
      %p210 = por %p208, %p209
      %p211 = scmp.ne.s32.totalorder %s202, %s203
      %p212 = scmp.eq.s32.totalorder %s28, 0
      %p213 = por %p211, %p212
      %p214 = scmp.ne.s32.totalorder %s202, %s203
      %p215 = scmp.eq.s32.totalorder %s29, 1
      %p216 = por %p214, %p215
      %p218 = scmp.ne.s32.totalorder %s203, %s217
      %p219 = scmp.eq.s32.totalorder %s29, 0
      %p220 = por %p218, %p219
      %s221 = ssub.s32 %s31, %s38
      %p222 = scmp.eq.s32.totalorder %s221, 0
      %s224 = sadd.s32 %s223, 1
      %s225 = scalar_select %p222, %s223, %s224
      %p228 = pneg %p222
      %p229 = scmp.eq.s32.totalorder %s23, 1
      %p230 = por %p228, %p229
      %p231 = scmp.ne.s32.totalorder %s223, %s226
      %p232 = scmp.eq.s32.totalorder %s23, 0
      %p233 = por %p231, %p232
      %p234 = scmp.ne.s32.totalorder %s223, %s226
      %p235 = scmp.eq.s32.totalorder %s28, 1
      %p236 = por %p234, %p235
      %p237 = scmp.ne.s32.totalorder %s226, %s227
      %p238 = scmp.eq.s32.totalorder %s28, 0
      %p239 = por %p237, %p238
      %p240 = scmp.ne.s32.totalorder %s226, %s227
      %p241 = scmp.eq.s32.totalorder %s29, 1
      %p242 = por %p240, %p241
      %p244 = scmp.ne.s32.totalorder %s227, %s243
      %p245 = scmp.eq.s32.totalorder %s29, 0
      %p246 = por %p244, %p245
      %s247 = ssub.s32 %s31, %s38
      %p248 = scmp.eq.s32.totalorder %s247, 0
      %s250 = sadd.s32 %s249, 1
      %s251 = scalar_select %p248, %s249, %s250
      %p254 = pneg %p248
      %p255 = scmp.eq.s32.totalorder %s23, 1
      %p256 = por %p254, %p255
      %p257 = scmp.ne.s32.totalorder %s249, %s252
      %p258 = scmp.eq.s32.totalorder %s23, 0
      %p259 = por %p257, %p258
      %p260 = scmp.ne.s32.totalorder %s249, %s252
      %p261 = scmp.eq.s32.totalorder %s28, 1
      %p262 = por %p260, %p261
      %p263 = scmp.ne.s32.totalorder %s252, %s253
      %p264 = scmp.eq.s32.totalorder %s28, 0
      %p265 = por %p263, %p264
      %p266 = scmp.ne.s32.totalorder %s252, %s253
      %p267 = scmp.eq.s32.totalorder %s29, 1
      %p268 = por %p266, %p267
      %p270 = scmp.ne.s32.totalorder %s253, %s269
      %p271 = scmp.eq.s32.totalorder %s29, 0
      %p272 = por %p270, %p271
      %s273 = ssub.s32 %s31, %s38
      %p274 = scmp.eq.s32.totalorder %s273, 0
      %s276 = sadd.s32 %s275, 1
      %s277 = scalar_select %p274, %s275, %s276
      %p280 = pneg %p274
      %p281 = scmp.eq.s32.totalorder %s23, 1
      %p282 = por %p280, %p281
      %p283 = scmp.ne.s32.totalorder %s275, %s278
      %p284 = scmp.eq.s32.totalorder %s23, 0
      %p285 = por %p283, %p284
      %p286 = scmp.ne.s32.totalorder %s275, %s278
      %p287 = scmp.eq.s32.totalorder %s28, 1
      %p288 = por %p286, %p287
      %p289 = scmp.ne.s32.totalorder %s278, %s279
      %p290 = scmp.eq.s32.totalorder %s28, 0
      %p291 = por %p289, %p290
      %p292 = scmp.ne.s32.totalorder %s278, %s279
      %p293 = scmp.eq.s32.totalorder %s29, 1
      %p294 = por %p292, %p293
      %p296 = scmp.ne.s32.totalorder %s279, %s295
      %p297 = scmp.eq.s32.totalorder %s29, 0
      %p298 = por %p296, %p297
      %s299 = ssub.s32 %s31, %s38
      %p300 = scmp.eq.s32.totalorder %s299, 0
      %s302 = sadd.s32 %s301, 1
      %s303 = scalar_select %p300, %s301, %s302
      %p306 = pneg %p300
      %p307 = scmp.eq.s32.totalorder %s23, 1
      %p308 = por %p306, %p307
      %p309 = scmp.ne.s32.totalorder %s301, %s304
      %p310 = scmp.eq.s32.totalorder %s23, 0
      %p311 = por %p309, %p310
      %p312 = scmp.ne.s32.totalorder %s301, %s304
      %p313 = scmp.eq.s32.totalorder %s28, 1
      %p314 = por %p312, %p313
      %p315 = scmp.ne.s32.totalorder %s304, %s305
      %p316 = scmp.eq.s32.totalorder %s28, 0
      %p317 = por %p315, %p316
      %p318 = scmp.ne.s32.totalorder %s304, %s305
      %p319 = scmp.eq.s32.totalorder %s29, 1
      %p320 = por %p318, %p319
      %p322 = scmp.ne.s32.totalorder %s305, %s321
      %p323 = scmp.eq.s32.totalorder %s29, 0
      %p324 = por %p322, %p323
      %s325 = ssub.s32 %s30, %s42
      %p326 = scmp.eq.s32.totalorder %s325, 0
      %s328 = sadd.s32 %s327, 1
      %s329 = scalar_select %p326, %s327, %s328
      %p332 = pneg %p326
      %p333 = scmp.eq.s32.totalorder %s23, 1
      %p334 = por %p332, %p333
      %p335 = scmp.ne.s32.totalorder %s327, %s330
      %p336 = scmp.eq.s32.totalorder %s23, 0
      %p337 = por %p335, %p336
      %p338 = scmp.ne.s32.totalorder %s327, %s330
      %p339 = scmp.eq.s32.totalorder %s28, 1
      %p340 = por %p338, %p339
      %p341 = scmp.ne.s32.totalorder %s330, %s331
      %p342 = scmp.eq.s32.totalorder %s28, 0
      %p343 = por %p341, %p342
      %p344 = scmp.ne.s32.totalorder %s330, %s331
      %p345 = scmp.eq.s32.totalorder %s29, 1
      %p346 = por %p344, %p345
      %p348 = scmp.ne.s32.totalorder %s331, %s347
      %p349 = scmp.eq.s32.totalorder %s29, 0
      %p350 = por %p348, %p349
      %p351 = scmp.le.s32.totalorder 1, %s23
      %p352 = scmp.lt.s32.totalorder %s23, 3
      %p353 = pnand %p351, %p352
      %p354 = pneg %p353
      // Predicated region
      $region9: #{artdapter_forward.1} parent=5 // pred_check
        _
      $region10: #{artdapter_forward.1} parent=5 // pred_check_branch
        %356 = sbr.rel (%p353) target = $region12
      $region11: #{artdapter_forward.1} parent=5 // pred_region
        %s357 = ssub.s32 %s23, 1
        // Predicated region
        $region13: #{artdapter_forward.1} parent=11 // pred_check
          %p358 = pneg %p61
        $region14: #{artdapter_forward.1} parent=11 // pred_check_branch
          %360 = sbr.rel (%p358) target = $region16
        $region15: #{artdapter_forward.1} parent=11 // pred_region
          %s361 = smul.u32 2, %s32
          %p362 = scmp.lt.s32.totalorder %s361, 1
          %s363 = scalar_select %p362, %s361, 1
          %s364 = scalar_lea.vmem %s0, %s363
          %s365 = smul.u32 2, %s32
        $region16: #{artdapter_forward.1} parent=11 // pred_fallthru
          _
        // Predicated region
        $region17: #{artdapter_forward.1} parent=11 // pred_check
          %p366 = pneg %p87
        $region18: #{artdapter_forward.1} parent=11 // pred_check_branch
          %368 = sbr.rel (%p366) target = $region20
        $region19: #{artdapter_forward.1} parent=11 // pred_region
          %s369 = smul.u32 2, %s32
          %371 = vsyncadd [#allocation6], 0
          %s372 = smul.addr %s369, 4
          %s373 = smul.addr %s372, 8
          %s374 = scalar_lea.hbm %s1, %s373
          %s375 = sshll.u32 %s374, 4
          %s376 = int_to_ptr.hbm [resolvable:$true] %s375
          %s377 = sshll.u32 [#allocation5], 4
          %s378 = int_to_ptr.vmem [resolvable:$true] %s377
          %383 = dma.hbm_to_vmem [thread:$0]  %s376, 1024, %s378, [#allocation6], 256, 256, 16
        $region20: #{artdapter_forward.1} parent=11 // pred_fallthru
          _
        // Predicated region
        $region21: #{artdapter_forward.1} parent=11 // pred_check
          %p384 = pneg %p108
        $region22: #{artdapter_forward.1} parent=11 // pred_check_branch
          %386 = sbr.rel (%p384) target = $region24
        $region23: #{artdapter_forward.1} parent=11 // pred_region
          %388 = vsyncadd [#allocation9], 0
          %s389 = sshll.u32 %s2, 4
          %s390 = int_to_ptr.hbm [resolvable:$true] %s389
          %s391 = sshll.u32 [#allocation8], 4
          %s392 = int_to_ptr.vmem [resolvable:$true] %s391
          %397 = dma.hbm_to_vmem [thread:$0]  %s390, 256, %s392, [#allocation9], 128, 128, 8
        $region24: #{artdapter_forward.1} parent=11 // pred_fallthru
          _
        // Predicated region
        $region25: #{artdapter_forward.1} parent=11 // pred_check
          %p398 = pneg %p129
        $region26: #{artdapter_forward.1} parent=11 // pred_check_branch
          %400 = sbr.rel (%p398) target = $region28
        $region27: #{artdapter_forward.1} parent=11 // pred_region
          %402 = vsyncadd [#allocation9], 0
          %s403 = sshll.u32 %s3, 4
          %s404 = int_to_ptr.hbm [resolvable:$true] %s403
          %s405 = sshll.u32 [#allocation10], 4
          %s406 = int_to_ptr.vmem [resolvable:$true] %s405
          %411 = dma.hbm_to_vmem [thread:$0]  %s404, 512, %s406, [#allocation9], 64, 64, 4
        $region28: #{artdapter_forward.1} parent=11 // pred_fallthru
          _
        // Predicated region
        $region29: #{artdapter_forward.1} parent=11 // pred_check
          %p412 = pneg %p150
        $region30: #{artdapter_forward.1} parent=11 // pred_check_branch
          %414 = sbr.rel (%p412) target = $region32
        $region31: #{artdapter_forward.1} parent=11 // pred_region
          %416 = vsyncadd [#allocation12], 0
          %s417 = sshll.u32 %s4, 4
          %s418 = int_to_ptr.hbm [resolvable:$true] %s417
          %s419 = sshll.u32 [#allocation11], 4
          %s420 = int_to_ptr.vmem [resolvable:$true] %s419
          %425 = dma.hbm_to_vmem [thread:$0]  %s418, 1024, %s420, [#allocation12], 64, 64, 4
        $region32: #{artdapter_forward.1} parent=11 // pred_fallthru
          _
        // Predicated region
        $region33: #{artdapter_forward.1} parent=11 // pred_check
          %p426 = pneg %p171
        $region34: #{artdapter_forward.1} parent=11 // pred_check_branch
          %428 = sbr.rel (%p426) target = $region36
        $region35: #{artdapter_forward.1} parent=11 // pred_region
          %430 = vsyncadd [#allocation12], 0
          %s431 = sshll.u32 %s5, 4
          %s432 = int_to_ptr.hbm [resolvable:$true] %s431
          %s433 = sshll.u32 [#allocation13], 4
          %s434 = int_to_ptr.vmem [resolvable:$true] %s433
          %439 = dma.hbm_to_vmem [thread:$0]  %s432, 1024, %s434, [#allocation12], 64, 64, 4
        $region36: #{artdapter_forward.1} parent=11 // pred_fallthru
          _
        // Predicated region
        $region37: #{artdapter_forward.1} parent=11 // pred_check
          %p440 = pneg %p192
        $region38: #{artdapter_forward.1} parent=11 // pred_check_branch
          %442 = sbr.rel (%p440) target = $region40
        $region39: #{artdapter_forward.1} parent=11 // pred_region
          %444 = vsyncadd [#allocation15], 0
          %s445 = sshll.u32 %s6, 4
          %s446 = int_to_ptr.hbm [resolvable:$true] %s445
          %s447 = sshll.u32 [#allocation14], 4
          %s448 = int_to_ptr.vmem [resolvable:$true] %s447
          %453 = dma.hbm_to_vmem [thread:$0]  %s446, 2048, %s448, [#allocation15], 64, 64, 4
        $region40: #{artdapter_forward.1} parent=11 // pred_fallthru
          _
        // Predicated region
        $region41: #{artdapter_forward.1} parent=11 // pred_check
          %p454 = pneg %p213
        $region42: #{artdapter_forward.1} parent=11 // pred_check_branch
          %456 = sbr.rel (%p454) target = $region44
        $region43: #{artdapter_forward.1} parent=11 // pred_region
          _
        $region44: #{artdapter_forward.1} parent=11 // pred_fallthru
          _
      $region12: #{artdapter_forward.1} parent=5 // pred_fallthru
        _
      %p457 = scmp.lt.s32.totalorder %s23, 2
      // Predicated region
      $region45: #{artdapter_forward.1} parent=5 // pred_check
        %p458 = pneg %p457
      $region46: #{artdapter_forward.1} parent=5 // pred_check_branch
        %460 = sbr.rel (%p458) target = $region48
      $region47: #{artdapter_forward.1} parent=5 // pred_region
        // Predicated region
        $region49: #{artdapter_forward.1} parent=47 // pred_check
          %p461 = pneg %p233
        $region50: #{artdapter_forward.1} parent=47 // pred_check_branch
          %463 = sbr.rel (%p461) target = $region52
        $region51: #{artdapter_forward.1} parent=47 // pred_region
          %s464 = sand.u32 %s23, 1
          %s465 = scalar_lea.sflag [#allocation6], %s464
          %s466 = sand.u32 %s223, 1
          %s467 = smul.addr %s466, 384
          %s468 = scalar_lea.vmem [#allocation16], %s467
          %470 = vsyncadd %s465, 0
          %s471 = smul.addr %s31, 96
          %s472 = smul.addr %s471, 4
          %s473 = scalar_lea.hbm %s8, %s472
          %s474 = sshll.u32 %s473, 4
          %s475 = int_to_ptr.hbm [resolvable:$true] %s474
          %s476 = sshll.u32 %s468, 4
          %s477 = int_to_ptr.vmem [resolvable:$true] %s476
          %482 = dma.hbm_to_vmem [thread:$0]  %s475, 6144, %s477, %s465, 384, 384, 24
        $region52: #{artdapter_forward.1} parent=47 // pred_fallthru
          _
        // Predicated region
        $region53: #{artdapter_forward.1} parent=47 // pred_check
          %p483 = pneg %p259
        $region54: #{artdapter_forward.1} parent=47 // pred_check_branch
          %485 = sbr.rel (%p483) target = $region56
        $region55: #{artdapter_forward.1} parent=47 // pred_region
          %s486 = sand.u32 %s23, 1
          %s487 = scalar_lea.sflag [#allocation6], %s486
          %s488 = sand.u32 %s249, 1
          %s489 = smul.addr %s488, 512
          %s490 = scalar_lea.vmem [#allocation17], %s489
          %492 = vsyncadd %s487, 0
          %s493 = smul.addr %s31, 128
          %s494 = smul.addr %s493, 4
          %s495 = scalar_lea.hbm %s9, %s494
          %s496 = sshll.u32 %s495, 4
          %s497 = int_to_ptr.hbm [resolvable:$true] %s496
          %s498 = sshll.u32 %s490, 4
          %s499 = int_to_ptr.vmem [resolvable:$true] %s498
          %504 = dma.hbm_to_vmem [thread:$0]  %s497, 8192, %s499, %s487, 512, 512, 32
        $region56: #{artdapter_forward.1} parent=47 // pred_fallthru
          _
        // Predicated region
        $region57: #{artdapter_forward.1} parent=47 // pred_check
          %p505 = pneg %p285
        $region58: #{artdapter_forward.1} parent=47 // pred_check_branch
          %507 = sbr.rel (%p505) target = $region60
        $region59: #{artdapter_forward.1} parent=47 // pred_region
          %s508 = sand.u32 %s23, 1
          %s509 = scalar_lea.sflag [#allocation6], %s508
          %s510 = sand.u32 %s275, 1
          %s511 = smul.addr %s510, 256
          %s512 = scalar_lea.vmem [#allocation18], %s511
          %514 = vsyncadd %s509, 0
          %s515 = smul.addr %s31, 64
          %s516 = smul.addr %s515, 4
          %s517 = scalar_lea.hbm %s10, %s516
          %s518 = sshll.u32 %s517, 4
          %s519 = int_to_ptr.hbm [resolvable:$true] %s518
          %s520 = sshll.u32 %s512, 4
          %s521 = int_to_ptr.vmem [resolvable:$true] %s520
          %526 = dma.hbm_to_vmem [thread:$0]  %s519, 4096, %s521, %s509, 64, 64, 4
        $region60: #{artdapter_forward.1} parent=47 // pred_fallthru
          _
        // Predicated region
        $region61: #{artdapter_forward.1} parent=47 // pred_check
          %p527 = pneg %p311
        $region62: #{artdapter_forward.1} parent=47 // pred_check_branch
          %529 = sbr.rel (%p527) target = $region64
        $region63: #{artdapter_forward.1} parent=47 // pred_region
          %s530 = sand.u32 %s23, 1
          %s531 = scalar_lea.sflag [#allocation6], %s530
          %s532 = sand.u32 %s301, 1
          %s533 = smul.addr %s532, 15
          %s534 = scalar_lea.vmem [#allocation19], %s533
          %536 = vsyncadd %s531, 0
          %s537 = smul.addr %s31, 15
          %s538 = scalar_lea.hbm %s11, %s537
          %s540 = sshll.u32 %s538, 4
          %s541 = int_to_ptr.hbm [resolvable:$true] %s540
          %s542 = sshll.u32 %s534, 4
          %s543 = int_to_ptr.vmem [resolvable:$true] %s542
          %545 = dma.hbm_to_vmem [thread:$0]  %s541, 240, %s543, %s531
        $region64: #{artdapter_forward.1} parent=47 // pred_fallthru
          _
      $region48: #{artdapter_forward.1} parent=5 // pred_fallthru
        _
      %p546 = scmp.le.s32.totalorder 1, %s23
      %p547 = scmp.lt.s32.totalorder %s23, 3
      %p548 = pnand %p546, %p547
      %p549 = pneg %p548
      // Predicated region
      $region65: #{artdapter_forward.1} parent=5 // pred_check
        _
      $region66: #{artdapter_forward.1} parent=5 // pred_check_branch
        %551 = sbr.rel (%p548) target = $region68
      $region67: #{artdapter_forward.1} parent=5 // pred_region
        %s552 = ssub.s32 %s23, 1
        // Predicated region
        $region69: #{artdapter_forward.1} parent=67 // pred_check
          %p553 = pneg %p87
        $region70: #{artdapter_forward.1} parent=67 // pred_check_branch
          %555 = sbr.rel (%p553) target = $region72
        $region71: #{artdapter_forward.1} parent=67 // pred_region
          %557 = dma.done [#allocation6], 1024
        $region72: #{artdapter_forward.1} parent=67 // pred_fallthru
          _
        // Predicated region
        $region73: #{artdapter_forward.1} parent=67 // pred_check
          %p558 = pneg %p108
        $region74: #{artdapter_forward.1} parent=67 // pred_check_branch
          %560 = sbr.rel (%p558) target = $region76
        $region75: #{artdapter_forward.1} parent=67 // pred_region
          %562 = dma.done [#allocation9], 256
        $region76: #{artdapter_forward.1} parent=67 // pred_fallthru
          _
        // Predicated region
        $region77: #{artdapter_forward.1} parent=67 // pred_check
          %p563 = pneg %p129
        $region78: #{artdapter_forward.1} parent=67 // pred_check_branch
          %565 = sbr.rel (%p563) target = $region80
        $region79: #{artdapter_forward.1} parent=67 // pred_region
          %567 = dma.done [#allocation9], 512
        $region80: #{artdapter_forward.1} parent=67 // pred_fallthru
          _
        // Predicated region
        $region81: #{artdapter_forward.1} parent=67 // pred_check
          %p568 = pneg %p150
        $region82: #{artdapter_forward.1} parent=67 // pred_check_branch
          %570 = sbr.rel (%p568) target = $region84
        $region83: #{artdapter_forward.1} parent=67 // pred_region
          %572 = dma.done [#allocation12], 1024
        $region84: #{artdapter_forward.1} parent=67 // pred_fallthru
          _
        // Predicated region
        $region85: #{artdapter_forward.1} parent=67 // pred_check
          %p573 = pneg %p171
        $region86: #{artdapter_forward.1} parent=67 // pred_check_branch
          %575 = sbr.rel (%p573) target = $region88
        $region87: #{artdapter_forward.1} parent=67 // pred_region
          %577 = dma.done [#allocation12], 1024
        $region88: #{artdapter_forward.1} parent=67 // pred_fallthru
          _
        // Predicated region
        $region89: #{artdapter_forward.1} parent=67 // pred_check
          %p578 = pneg %p192
        $region90: #{artdapter_forward.1} parent=67 // pred_check_branch
          %580 = sbr.rel (%p578) target = $region92
        $region91: #{artdapter_forward.1} parent=67 // pred_region
          %582 = dma.done [#allocation15], 2048
        $region92: #{artdapter_forward.1} parent=67 // pred_fallthru
          _
        %s583 = sand.u32 %s28, 1
        %s584 = scalar_lea.sflag [#allocation6], %s583
        %s585 = sand.u32 %s226, 1
        %s586 = smul.addr %s585, 384
        %s587 = scalar_lea.vmem [#allocation16], %s586
        // Predicated region
        $region93: #{artdapter_forward.1} parent=67 // pred_check
          %p588 = pneg %p239
        $region94: #{artdapter_forward.1} parent=67 // pred_check_branch
          %590 = sbr.rel (%p588) target = $region96
        $region95: #{artdapter_forward.1} parent=67 // pred_region
          %592 = dma.done %s584, 6144
        $region96: #{artdapter_forward.1} parent=67 // pred_fallthru
          _
        %s593 = sand.u32 %s28, 1
        %s594 = scalar_lea.sflag [#allocation6], %s593
        %s595 = sand.u32 %s252, 1
        %s596 = smul.addr %s595, 512
        %s597 = scalar_lea.vmem [#allocation17], %s596
        // Predicated region
        $region97: #{artdapter_forward.1} parent=67 // pred_check
          %p598 = pneg %p265
        $region98: #{artdapter_forward.1} parent=67 // pred_check_branch
          %600 = sbr.rel (%p598) target = $region100
        $region99: #{artdapter_forward.1} parent=67 // pred_region
          %602 = dma.done %s594, 8192
        $region100: #{artdapter_forward.1} parent=67 // pred_fallthru
          _
        %s603 = sand.u32 %s28, 1
        %s604 = scalar_lea.sflag [#allocation6], %s603
        %s605 = sand.u32 %s278, 1
        %s606 = smul.addr %s605, 256
        %s607 = scalar_lea.vmem [#allocation18], %s606
        // Predicated region
        $region101: #{artdapter_forward.1} parent=67 // pred_check
          %p608 = pneg %p291
        $region102: #{artdapter_forward.1} parent=67 // pred_check_branch
          %610 = sbr.rel (%p608) target = $region104
        $region103: #{artdapter_forward.1} parent=67 // pred_region
          %612 = dma.done %s604, 4096
        $region104: #{artdapter_forward.1} parent=67 // pred_fallthru
          _
        %s613 = sand.u32 %s28, 1
        %s614 = scalar_lea.sflag [#allocation6], %s613
        %s615 = sand.u32 %s304, 1
        %s616 = smul.addr %s615, 15
        %s617 = scalar_lea.vmem [#allocation19], %s616
        // Predicated region
        $region105: #{artdapter_forward.1} parent=67 // pred_check
          %p618 = pneg %p317
        $region106: #{artdapter_forward.1} parent=67 // pred_check_branch
          %620 = sbr.rel (%p618) target = $region108
        $region107: #{artdapter_forward.1} parent=67 // pred_region
          %622 = dma.done %s614, 240
        $region108: #{artdapter_forward.1} parent=67 // pred_fallthru
          _
        %s623 = smul.u32 2, %s32
        %p624 = scmp.lt.s32.totalorder %s623, 1
        %s625 = scalar_select %p624, %s623, 1
        %s626 = scalar_lea.vmem %s0, %s625
        %p627 = pneg %p61
        %p628 = pneg %p58
        %p629 = pneg %p87
        %p630 = pneg %p84
        %p631 = pneg %p108
        %p632 = pneg %p105
        %p633 = pneg %p129
        %p634 = pneg %p126
        %p635 = pneg %p150
        %p636 = pneg %p147
        %p637 = pneg %p171
        %p638 = pneg %p168
        %p639 = pneg %p192
        %p640 = pneg %p189
        %p641 = pneg %p213
        %p642 = pneg %p210
        %s643 = sand.u32 %s28, 1
        %s644 = scalar_lea.sflag [#allocation6], %s643
        %s645 = sand.u32 %s226, 1
        %s646 = smul.addr %s645, 384
        %s647 = scalar_lea.vmem [#allocation16], %s646
        %p648 = pneg %p239
        %p649 = pneg %p236
        %s650 = sand.u32 %s28, 1
        %s651 = scalar_lea.sflag [#allocation6], %s650
        %s652 = sand.u32 %s252, 1
        %s653 = smul.addr %s652, 512
        %s654 = scalar_lea.vmem [#allocation17], %s653
        %p655 = pneg %p265
        %p656 = pneg %p262
        %s657 = sand.u32 %s28, 1
        %s658 = scalar_lea.sflag [#allocation6], %s657
        %s659 = sand.u32 %s278, 1
        %s660 = smul.addr %s659, 256
        %s661 = scalar_lea.vmem [#allocation18], %s660
        %p662 = pneg %p291
        %p663 = pneg %p288
        %s664 = sand.u32 %s28, 1
        %s665 = scalar_lea.sflag [#allocation6], %s664
        %s666 = sand.u32 %s304, 1
        %s667 = smul.addr %s666, 15
        %s668 = scalar_lea.vmem [#allocation19], %s667
        %p669 = pneg %p317
        %p670 = pneg %p314
        %p671 = pneg %p343
        %p672 = pneg %p340
        %s673 = smul.u32 2, %s32
        %p674 = scmp.lt.s32.totalorder %s673, 1
        %s675 = scalar_select %p674, %s673, 1
        %s676 = scalar_lea.vmem %s0, %s675
        %s677 = smul.u32 2, %s32
        %s678 = smul.u32 2, %s32
        %s679 = smul.u32 2, %s32
        %p681 = scmp.eq.s32.totalorder %s33, 0
        // Predicated region
        $region109: #{artdapter_forward.1} parent=67 // pred_check
          %p682 = pneg %p681
        $region110: #{artdapter_forward.1} parent=67 // pred_check_branch
          %684 = sbr.rel (%p682) target = $region112
        $region111: #{artdapter_forward.1} parent=67 // pred_region
          %v685 = vld [vmem:[%s7] sm:$0x1]
          %v686 = vld [vmem:[%s7 + $0x1] sm:$0x1]
          %v687 = vld [vmem:[%s7 + $0x2] sm:$0x1]
          %v688 = vld [vmem:[%s7 + $0x3] sm:$0x1]
          %v689 = vld [vmem:[%s676] sm:$0x1]
          %v690 = vld [vmem:[%s676 + $0x1] sm:$0x1]
          %v691 = vpack.c.bf16 %v689, %v689
          %v692 = vpack.c.bf16 %v690, %v690
          %v693 = vld [vmem:[#allocation10] sm:$0xf]
          %v694 = vld [vmem:[#allocation10 + $0x4] sm:$0xf]
          %v695 = vld [vmem:[#allocation10 + $0x8] sm:$0xf]
          %v696 = vld [vmem:[#allocation10 + $0xc] sm:$0xf]
          %v697 = vld [vmem:[#allocation10 + $0x10] sm:$0xf]
          %v698 = vld [vmem:[#allocation10 + $0x14] sm:$0xf]
          %v699 = vld [vmem:[#allocation10 + $0x18] sm:$0xf]
          %v700 = vld [vmem:[#allocation10 + $0x1c] sm:$0xf]
          %v702 = vperm.slane %v685, 0
          %v706 = vunpack.c.l.b16 %v691
          %v707 = vunpack.c.l.b16 %v692
          %v708 = vrot.slane %v707, 7
          %vm709 = vcmask 1041409
          %v710 = vsel %vm709, %v708, %v706
          %v711 = vpack.c.b16 %v710, %v710
          %v720 = vunpack.c.l.b16 %v693
          %v721 = vunpack.c.l.b16 %v694
          %v722 = vunpack.c.l.b16 %v695
          %v723 = vunpack.c.l.b16 %v696
          %v724 = vunpack.c.l.b16 %v697
          %v725 = vunpack.c.l.b16 %v698
          %v726 = vunpack.c.l.b16 %v699
          %v727 = vunpack.c.l.b16 %v700
          %v728 = vpack.c.b16 %v721, %v720
          %v729 = vpack.c.b16 %v723, %v722
          %v730 = vpack.c.b16 %v725, %v724
          %v731 = vpack.c.b16 %v727, %v726
          %vm736 = vcmask 523264
          %v738 = vsel %vm736, %v711, 0
          %740 = vmatpush.bf16.msra.mxu0 0
          %741 = vmatpush.bf16.msra.mxu0 0
          %742 = vmatpush.bf16.msra.mxu0 0
          %743 = vmatpush.bf16.msra.mxu0 0
          %744 = vmatpush.bf16.msra.mxu0 %v731
          %745 = vmatpush.bf16.msra.mxu0 %v730
          %746 = vmatpush.bf16.msra.mxu0 %v729
          %747 = vmatpush.bf16.msra.mxu0 %v728
          %748 = vmatmul.bf16.gmra.mxu0 %v738
          %v749 = vpop.f32.mrf.mxu0
          %v750 = vadd.f32 %v702, %v749
          %v751 = vpop.f32.mrf.mxu0
          %752 = vdwg.mxu0
          %v753 = vxor.u32 %v750, 2147483648
          %v754 = vmul.f32 %v753, 1.442695
          %v755 = vpow.pop %v754
          %v756 = vadd.f32 %v755, 1.0
          %v757 = vrcp.pop %v756
          %v758 = vmul.f32 %v756, %v757
          %v759 = vsub.f32 1.0, %v758
          %v760 = vmul.f32 %v757, %v759
          %v761 = vadd.f32 %v757, %v760
          %vm762 = vweird.f32 %v756
          %vm763 = vweird.f32 %v757
          %vm764 = vmor %vm762, %vm763
          %v765 = vsel %vm764, %v757, %v761
          %v766 = vand.u32 2147483647, %v756
          %vm767 = vcmp.eq.f32.partialorder %v766, 8.507059e+37
          %v768 = vand.u32 %v756, 2147483648
          %v769 = vor.u32 1.1754944e-38, %v768
          %v770 = vsel %vm767, %v769, %v765
          %v771 = vmul.f32 1.0, %v770
          %v772 = vmul.f32 %v750, %v771
          %v773 = vpack.c.bf16 %v772, %v772
          %v774 = vld [vmem:[#allocation11] sm:$0xf]
          %v775 = vld [vmem:[#allocation11 + $0x4] sm:$0xf]
          %v776 = vld [vmem:[#allocation11 + $0x8] sm:$0xf]
          %v777 = vld [vmem:[#allocation11 + $0xc] sm:$0xf]
          %v778 = vld [vmem:[#allocation11 + $0x10] sm:$0xf]
          %v779 = vld [vmem:[#allocation11 + $0x14] sm:$0xf]
          %v780 = vld [vmem:[#allocation11 + $0x18] sm:$0xf]
          %v781 = vld [vmem:[#allocation11 + $0x1c] sm:$0xf]
          %v782 = vld [vmem:[#allocation11 + $0x20] sm:$0xf]
          %v783 = vld [vmem:[#allocation11 + $0x24] sm:$0xf]
          %v784 = vld [vmem:[#allocation11 + $0x28] sm:$0xf]
          %v785 = vld [vmem:[#allocation11 + $0x2c] sm:$0xf]
          %v786 = vld [vmem:[#allocation11 + $0x30] sm:$0xf]
          %v787 = vld [vmem:[#allocation11 + $0x34] sm:$0xf]
          %v788 = vld [vmem:[#allocation11 + $0x38] sm:$0xf]
          %v789 = vld [vmem:[#allocation11 + $0x3c] sm:$0xf]
          %v791 = vperm.slane %v686, 0
          %v809 = vunpack.c.l.b16 %v774
          %v810 = vunpack.c.l.b16 %v775
          %v811 = vunpack.c.l.b16 %v776
          %v812 = vunpack.c.l.b16 %v777
          %v813 = vunpack.c.l.b16 %v778
          %v814 = vunpack.c.l.b16 %v779
          %v815 = vunpack.c.l.b16 %v780
          %v816 = vunpack.c.l.b16 %v781
          %v817 = vunpack.c.l.b16 %v782
          %v818 = vunpack.c.l.b16 %v783
          %v819 = vunpack.c.l.b16 %v784
          %v820 = vunpack.c.l.b16 %v785
          %v821 = vunpack.c.l.b16 %v786
          %v822 = vunpack.c.l.b16 %v787
          %v823 = vunpack.c.l.b16 %v788
          %v824 = vunpack.c.l.b16 %v789
          %v825 = vpack.c.b16 %v810, %v809
          %v826 = vpack.c.b16 %v812, %v811
          %v827 = vpack.c.b16 %v814, %v813
          %v828 = vpack.c.b16 %v816, %v815
          %v829 = vpack.c.b16 %v818, %v817
          %v830 = vpack.c.b16 %v820, %v819
          %v831 = vpack.c.b16 %v822, %v821
          %v832 = vpack.c.b16 %v824, %v823
          %841 = vmatpush.bf16.msra.mxu0 %v832
          %842 = vmatpush.bf16.msra.mxu0 %v831
          %843 = vmatpush.bf16.msra.mxu0 %v830
          %844 = vmatpush.bf16.msra.mxu0 %v829
          %845 = vmatpush.bf16.msra.mxu0 %v828
          %846 = vmatpush.bf16.msra.mxu0 %v827
          %847 = vmatpush.bf16.msra.mxu0 %v826
          %848 = vmatpush.bf16.msra.mxu0 %v825
          %849 = vmatmul.bf16.gmra.mxu0 %v773
          %v850 = vpop.f32.mrf.mxu0
          %v851 = vadd.f32 %v791, %v850
          %v852 = vpop.f32.mrf.mxu0
          %853 = vdwg.mxu0
          %v854 = vxor.u32 %v851, 2147483648
          %v855 = vmul.f32 %v854, 1.442695
          %v856 = vpow.pop %v855
          %v857 = vadd.f32 %v856, 1.0
          %v858 = vrcp.pop %v857
          %v859 = vmul.f32 %v857, %v858
          %v860 = vsub.f32 1.0, %v859
          %v861 = vmul.f32 %v858, %v860
          %v862 = vadd.f32 %v858, %v861
          %vm863 = vweird.f32 %v857
          %vm864 = vweird.f32 %v858
          %vm865 = vmor %vm863, %vm864
          %v866 = vsel %vm865, %v858, %v862
          %v867 = vand.u32 2147483647, %v857
          %vm868 = vcmp.eq.f32.partialorder %v867, 8.507059e+37
          %v869 = vand.u32 %v857, 2147483648
          %v870 = vor.u32 1.1754944e-38, %v869
          %v871 = vsel %vm868, %v870, %v866
          %v872 = vmul.f32 1.0, %v871
          %v873 = vmul.f32 %v851, %v872
          %v874 = vpack.c.bf16 %v873, %v873
          %875 = vst [vmem:[#allocation2] sm:$0x1] %v874
          %v876 = vld [vmem:[#allocation13] sm:$0xf]
          %v877 = vld [vmem:[#allocation13 + $0x4] sm:$0xf]
          %v878 = vld [vmem:[#allocation13 + $0x8] sm:$0xf]
          %v879 = vld [vmem:[#allocation13 + $0xc] sm:$0xf]
          %v880 = vld [vmem:[#allocation13 + $0x10] sm:$0xf]
          %v881 = vld [vmem:[#allocation13 + $0x14] sm:$0xf]
          %v882 = vld [vmem:[#allocation13 + $0x18] sm:$0xf]
          %v883 = vld [vmem:[#allocation13 + $0x1c] sm:$0xf]
          %v884 = vld [vmem:[#allocation13 + $0x20] sm:$0xf]
          %v885 = vld [vmem:[#allocation13 + $0x24] sm:$0xf]
          %v886 = vld [vmem:[#allocation13 + $0x28] sm:$0xf]
          %v887 = vld [vmem:[#allocation13 + $0x2c] sm:$0xf]
          %v888 = vld [vmem:[#allocation13 + $0x30] sm:$0xf]
          %v889 = vld [vmem:[#allocation13 + $0x34] sm:$0xf]
          %v890 = vld [vmem:[#allocation13 + $0x38] sm:$0xf]
          %v891 = vld [vmem:[#allocation13 + $0x3c] sm:$0xf]
          %v893 = vperm.slane %v687, 0
          %v911 = vunpack.c.l.b16 %v876
          %v912 = vunpack.c.l.b16 %v877
          %v913 = vunpack.c.l.b16 %v878
          %v914 = vunpack.c.l.b16 %v879
          %v915 = vunpack.c.l.b16 %v880
          %v916 = vunpack.c.l.b16 %v881
          %v917 = vunpack.c.l.b16 %v882
          %v918 = vunpack.c.l.b16 %v883
          %v919 = vunpack.c.l.b16 %v884
          %v920 = vunpack.c.l.b16 %v885
          %v921 = vunpack.c.l.b16 %v886
          %v922 = vunpack.c.l.b16 %v887
          %v923 = vunpack.c.l.b16 %v888
          %v924 = vunpack.c.l.b16 %v889
          %v925 = vunpack.c.l.b16 %v890
          %v926 = vunpack.c.l.b16 %v891
          %v927 = vpack.c.b16 %v912, %v911
          %v928 = vpack.c.b16 %v914, %v913
          %v929 = vpack.c.b16 %v916, %v915
          %v930 = vpack.c.b16 %v918, %v917
          %v931 = vpack.c.b16 %v920, %v919
          %v932 = vpack.c.b16 %v922, %v921
          %v933 = vpack.c.b16 %v924, %v923
          %v934 = vpack.c.b16 %v926, %v925
          %943 = vmatpush.bf16.msra.mxu0 %v934
          %944 = vmatpush.bf16.msra.mxu0 %v933
          %945 = vmatpush.bf16.msra.mxu0 %v932
          %946 = vmatpush.bf16.msra.mxu0 %v931
          %947 = vmatpush.bf16.msra.mxu0 %v930
          %948 = vmatpush.bf16.msra.mxu0 %v929
          %949 = vmatpush.bf16.msra.mxu0 %v928
          %950 = vmatpush.bf16.msra.mxu0 %v927
          %951 = vmatmul.bf16.gmra.mxu0 %v874
          %v952 = vpop.f32.mrf.mxu0
          %v953 = vadd.f32 %v893, %v952
          %v954 = vpop.f32.mrf.mxu0
          %955 = vdwg.mxu0
          %v956 = vld [vmem:[#allocation8] sm:$0xff]
          %v957 = vld [vmem:[#allocation8 + $0x8] sm:$0xff]
          %v959 = vrot.slane %v953, 1
          %v960 = vperm.slane %v953, 0
          %v961 = vperm.slane %v959, 0
          %v964 = vadd.f32 %v956, %v960
          %v965 = vadd.f32 %v957, %v960
          %v966 = vadd.f32 %v956, %v961
          %v967 = vadd.f32 %v957, %v961
          %968 = vst [vmem:[#allocation20] sm:$0xff] %v964
          %969 = vst [vmem:[#allocation20 + $0x8] sm:$0xff] %v965
          %970 = vst [vmem:[#allocation20 + $0x10] sm:$0xff] %v966
          %971 = vst [vmem:[#allocation20 + $0x18] sm:$0xff] %v967
          %v972 = vld [vmem:[#allocation5] sm:$0xff]
          %v973 = vld [vmem:[#allocation5 + $0x8] sm:$0xff]
          %v974 = vld [vmem:[#allocation5 + $0x10] sm:$0xff]
          %v975 = vld [vmem:[#allocation5 + $0x18] sm:$0xff]
          %v976 = vld [vmem:[#allocation5 + $0x20] sm:$0xff]
          %v977 = vld [vmem:[#allocation5 + $0x28] sm:$0xff]
          %v978 = vld [vmem:[#allocation5 + $0x30] sm:$0xff]
          %v979 = vld [vmem:[#allocation5 + $0x38] sm:$0xff]
          %v980 = vpack.c.bf16 %v974, %v972
          %v981 = vpack.c.bf16 %v975, %v973
          %v982 = vpack.c.bf16 %v978, %v976
          %v983 = vpack.c.bf16 %v979, %v977
          %v984 = vld [vmem:[#allocation14] sm:$0xf]
          %v985 = vld [vmem:[#allocation14 + $0x4] sm:$0xf]
          %v986 = vld [vmem:[#allocation14 + $0x8] sm:$0xf]
          %v987 = vld [vmem:[#allocation14 + $0xc] sm:$0xf]
          %v988 = vld [vmem:[#allocation14 + $0x10] sm:$0xf]
          %v989 = vld [vmem:[#allocation14 + $0x14] sm:$0xf]
          %v990 = vld [vmem:[#allocation14 + $0x18] sm:$0xf]
          %v991 = vld [vmem:[#allocation14 + $0x1c] sm:$0xf]
          %v992 = vld [vmem:[#allocation14 + $0x20] sm:$0xf]
          %v993 = vld [vmem:[#allocation14 + $0x24] sm:$0xf]
          %v994 = vld [vmem:[#allocation14 + $0x28] sm:$0xf]
          %v995 = vld [vmem:[#allocation14 + $0x2c] sm:$0xf]
          %v996 = vld [vmem:[#allocation14 + $0x30] sm:$0xf]
          %v997 = vld [vmem:[#allocation14 + $0x34] sm:$0xf]
          %v998 = vld [vmem:[#allocation14 + $0x38] sm:$0xf]
          %v999 = vld [vmem:[#allocation14 + $0x3c] sm:$0xf]
          %v1000 = vld [vmem:[#allocation14 + $0x40] sm:$0xf]
          %v1001 = vld [vmem:[#allocation14 + $0x44] sm:$0xf]
          %v1002 = vld [vmem:[#allocation14 + $0x48] sm:$0xf]
          %v1003 = vld [vmem:[#allocation14 + $0x4c] sm:$0xf]
          %v1004 = vld [vmem:[#allocation14 + $0x50] sm:$0xf]
          %v1005 = vld [vmem:[#allocation14 + $0x54] sm:$0xf]
          %v1006 = vld [vmem:[#allocation14 + $0x58] sm:$0xf]
          %v1007 = vld [vmem:[#allocation14 + $0x5c] sm:$0xf]
          %v1008 = vld [vmem:[#allocation14 + $0x60] sm:$0xf]
          %v1009 = vld [vmem:[#allocation14 + $0x64] sm:$0xf]
          %v1010 = vld [vmem:[#allocation14 + $0x68] sm:$0xf]
          %v1011 = vld [vmem:[#allocation14 + $0x6c] sm:$0xf]
          %v1012 = vld [vmem:[#allocation14 + $0x70] sm:$0xf]
          %v1013 = vld [vmem:[#allocation14 + $0x74] sm:$0xf]
          %v1014 = vld [vmem:[#allocation14 + $0x78] sm:$0xf]
          %v1015 = vld [vmem:[#allocation14 + $0x7c] sm:$0xf]
          %v1017 = vperm.slane %v688, 0
          %v1051 = vunpack.c.l.b16 %v984
          %v1052 = vunpack.c.l.b16 %v985
          %v1053 = vunpack.c.l.b16 %v986
          %v1054 = vunpack.c.l.b16 %v987
          %v1055 = vunpack.c.l.b16 %v988
          %v1056 = vunpack.c.l.b16 %v989
          %v1057 = vunpack.c.l.b16 %v990
          %v1058 = vunpack.c.l.b16 %v991
          %v1059 = vunpack.c.l.b16 %v992
          %v1060 = vunpack.c.l.b16 %v993
          %v1061 = vunpack.c.l.b16 %v994
          %v1062 = vunpack.c.l.b16 %v995
          %v1063 = vunpack.c.l.b16 %v996
          %v1064 = vunpack.c.l.b16 %v997
          %v1065 = vunpack.c.l.b16 %v998
          %v1066 = vunpack.c.l.b16 %v999
          %v1067 = vunpack.c.l.b16 %v1000
          %v1068 = vunpack.c.l.b16 %v1001
          %v1069 = vunpack.c.l.b16 %v1002
          %v1070 = vunpack.c.l.b16 %v1003
          %v1071 = vunpack.c.l.b16 %v1004
          %v1072 = vunpack.c.l.b16 %v1005
          %v1073 = vunpack.c.l.b16 %v1006
          %v1074 = vunpack.c.l.b16 %v1007
          %v1075 = vunpack.c.l.b16 %v1008
          %v1076 = vunpack.c.l.b16 %v1009
          %v1077 = vunpack.c.l.b16 %v1010
          %v1078 = vunpack.c.l.b16 %v1011
          %v1079 = vunpack.c.l.b16 %v1012
          %v1080 = vunpack.c.l.b16 %v1013
          %v1081 = vunpack.c.l.b16 %v1014
          %v1082 = vunpack.c.l.b16 %v1015
          %v1083 = vpack.c.b16 %v1052, %v1051
          %v1084 = vpack.c.b16 %v1054, %v1053
          %v1085 = vpack.c.b16 %v1056, %v1055
          %v1086 = vpack.c.b16 %v1058, %v1057
          %v1087 = vpack.c.b16 %v1060, %v1059
          %v1088 = vpack.c.b16 %v1062, %v1061
          %v1089 = vpack.c.b16 %v1064, %v1063
          %v1090 = vpack.c.b16 %v1066, %v1065
          %v1091 = vpack.c.b16 %v1068, %v1067
          %v1092 = vpack.c.b16 %v1070, %v1069
          %v1093 = vpack.c.b16 %v1072, %v1071
          %v1094 = vpack.c.b16 %v1074, %v1073
          %v1095 = vpack.c.b16 %v1076, %v1075
          %v1096 = vpack.c.b16 %v1078, %v1077
          %v1097 = vpack.c.b16 %v1080, %v1079
          %v1098 = vpack.c.b16 %v1082, %v1081
          %1115 = vmatpush.bf16.msra.mxu0 %v1090
          %1116 = vmatpush.bf16.msra.mxu0 %v1089
          %1117 = vmatpush.bf16.msra.mxu0 %v1088
          %1118 = vmatpush.bf16.msra.mxu0 %v1087
          %1119 = vmatpush.bf16.msra.mxu0 %v1086
          %1120 = vmatpush.bf16.msra.mxu0 %v1085
          %1121 = vmatpush.bf16.msra.mxu0 %v1084
          %1122 = vmatpush.bf16.msra.mxu0 %v1083
          %1123 = vmatmul.bf16.gmra.mxu0 %v980
          %v1124 = vpop.f32.mrf.mxu0
          %v1125 = vadd.f32 %v1017, %v1124
          %v1126 = vpop.f32.mrf.mxu0
          %v1127 = vadd.f32 %v1017, %v1126
          %1128 = vmatmul.bf16.gmra.mxu0 %v982
          %v1129 = vpop.f32.mrf.mxu0
          %v1130 = vadd.f32 %v1017, %v1129
          %v1131 = vpop.f32.mrf.mxu0
          %v1132 = vadd.f32 %v1017, %v1131
          %1133 = vdwg.mxu0
          %1134 = vmatpush.bf16.msra.mxu0 %v1098
          %1135 = vmatpush.bf16.msra.mxu0 %v1097
          %1136 = vmatpush.bf16.msra.mxu0 %v1096
          %1137 = vmatpush.bf16.msra.mxu0 %v1095
          %1138 = vmatpush.bf16.msra.mxu0 %v1094
          %1139 = vmatpush.bf16.msra.mxu0 %v1093
          %1140 = vmatpush.bf16.msra.mxu0 %v1092
          %1141 = vmatpush.bf16.msra.mxu0 %v1091
          %1142 = vmatmul.bf16.gmra.mxu0 %v981
          %v1143 = vpop.f32.mrf.mxu0
          %v1144 = vadd.f32 %v1125, %v1143
          %v1145 = vpop.f32.mrf.mxu0
          %v1146 = vadd.f32 %v1127, %v1145
          %1147 = vmatmul.bf16.gmra.mxu0 %v983
          %v1148 = vpop.f32.mrf.mxu0
          %v1149 = vadd.f32 %v1130, %v1148
          %v1150 = vpop.f32.mrf.mxu0
          %v1151 = vadd.f32 %v1132, %v1150
          %1152 = vdwg.mxu0
          %1153 = vst [vmem:[#allocation3] sm:$0xff] %v1144
          %1154 = vst [vmem:[#allocation3 + $0x8] sm:$0xff] %v1146
          %1155 = vst [vmem:[#allocation3 + $0x10] sm:$0xff] %v1149
          %1156 = vst [vmem:[#allocation3 + $0x18] sm:$0xff] %v1151
        $region112: #{artdapter_forward.1} parent=67 // pred_fallthru
          _
        %v1157 = vld [vmem:[#allocation2] sm:$0x1]
        %v1158 = vld [vmem:[#allocation20] sm:$0xff]
        %v1159 = vld [vmem:[#allocation20 + $0x8] sm:$0xff]
        %v1160 = vld [vmem:[#allocation20 + $0x10] sm:$0xff]
        %v1161 = vld [vmem:[#allocation20 + $0x18] sm:$0xff]
        %v1162 = vld [vmem:[#allocation3] sm:$0xff]
        %v1163 = vld [vmem:[#allocation3 + $0x8] sm:$0xff]
        %v1164 = vld [vmem:[#allocation3 + $0x10] sm:$0xff]
        %v1165 = vld [vmem:[#allocation3 + $0x18] sm:$0xff]
        %v1166 = vld [vmem:[%s587] sm:$0xff]
        %v1167 = vld [vmem:[%s587 + $0x8] sm:$0xff]
        %v1168 = vld [vmem:[%s587 + $0x10] sm:$0xff]
        %v1169 = vld [vmem:[%s587 + $0x18] sm:$0xff]
        %v1170 = vld [vmem:[%s587 + $0x20] sm:$0xff]
        %v1171 = vld [vmem:[%s587 + $0x28] sm:$0xff]
        %v1172 = vld [vmem:[%s587 + $0x30] sm:$0xff]
        %v1173 = vld [vmem:[%s587 + $0x38] sm:$0xff]
        %v1174 = vld [vmem:[%s587 + $0x40] sm:$0xff]
        %v1175 = vld [vmem:[%s587 + $0x48] sm:$0xff]
        %v1176 = vld [vmem:[%s587 + $0x50] sm:$0xff]
        %v1177 = vld [vmem:[%s587 + $0x58] sm:$0xff]
        %v1178 = vld [vmem:[%s587 + $0x60] sm:$0xff]
        %v1179 = vld [vmem:[%s587 + $0x68] sm:$0xff]
        %v1180 = vld [vmem:[%s587 + $0x70] sm:$0xff]
        %v1181 = vld [vmem:[%s587 + $0x78] sm:$0xff]
        %v1182 = vld [vmem:[%s587 + $0x80] sm:$0xff]
        %v1183 = vld [vmem:[%s587 + $0x88] sm:$0xff]
        %v1184 = vld [vmem:[%s587 + $0x90] sm:$0xff]
        %v1185 = vld [vmem:[%s587 + $0x98] sm:$0xff]
        %v1186 = vld [vmem:[%s587 + $0xa0] sm:$0xff]
        %v1187 = vld [vmem:[%s587 + $0xa8] sm:$0xff]
        %v1188 = vld [vmem:[%s587 + $0xb0] sm:$0xff]
        %v1189 = vld [vmem:[%s587 + $0xb8] sm:$0xff]
        %v1190 = vld [vmem:[%s587 + $0xc0] sm:$0xff]
        %v1191 = vld [vmem:[%s587 + $0xc8] sm:$0xff]
        %v1192 = vld [vmem:[%s587 + $0xd0] sm:$0xff]
        %v1193 = vld [vmem:[%s587 + $0xd8] sm:$0xff]
        %v1194 = vld [vmem:[%s587 + $0xe0] sm:$0xff]
        %v1195 = vld [vmem:[%s587 + $0xe8] sm:$0xff]
        %v1196 = vld [vmem:[%s587 + $0xf0] sm:$0xff]
        %v1197 = vld [vmem:[%s587 + $0xf8] sm:$0xff]
        %v1198 = vld [vmem:[%s587 + $0x100] sm:$0xff]
        %v1199 = vld [vmem:[%s587 + $0x108] sm:$0xff]
        %v1200 = vld [vmem:[%s587 + $0x110] sm:$0xff]
        %v1201 = vld [vmem:[%s587 + $0x118] sm:$0xff]
        %v1202 = vld [vmem:[%s587 + $0x120] sm:$0xff]
        %v1203 = vld [vmem:[%s587 + $0x128] sm:$0xff]
        %v1204 = vld [vmem:[%s587 + $0x130] sm:$0xff]
        %v1205 = vld [vmem:[%s587 + $0x138] sm:$0xff]
        %v1206 = vld [vmem:[%s587 + $0x140] sm:$0xff]
        %v1207 = vld [vmem:[%s587 + $0x148] sm:$0xff]
        %v1208 = vld [vmem:[%s587 + $0x150] sm:$0xff]
        %v1209 = vld [vmem:[%s587 + $0x158] sm:$0xff]
        %v1210 = vld [vmem:[%s587 + $0x160] sm:$0xff]
        %v1211 = vld [vmem:[%s587 + $0x168] sm:$0xff]
        %v1212 = vld [vmem:[%s587 + $0x170] sm:$0xff]
        %v1213 = vld [vmem:[%s587 + $0x178] sm:$0xff]
        %v1214 = vld [vmem:[%s617] sm:$0x3f]
        %v1216 = vperm.slane %v1214, 0
        %v1217 = vperm.slane %v1214, 1
        %v1218 = vperm.slane %v1214, 2
        %v1219 = vperm.slane %v1214, 3
        %v1220 = vperm.slane %v1214, 4
        %v1221 = vperm.slane %v1214, 5
        %v1276 = vunpack.c.l.b16 %v1166
        %v1277 = vunpack.c.h.b16 %v1166
        %v1278 = vunpack.c.l.b16 %v1167
        %v1279 = vunpack.c.h.b16 %v1167
        %v1280 = vunpack.c.l.b16 %v1168
        %v1281 = vunpack.c.h.b16 %v1168
        %v1282 = vunpack.c.l.b16 %v1169
        %v1283 = vunpack.c.h.b16 %v1169
        %v1284 = vunpack.c.l.b16 %v1170
        %v1285 = vunpack.c.h.b16 %v1170
        %v1286 = vunpack.c.l.b16 %v1171
        %v1287 = vunpack.c.h.b16 %v1171
        %v1288 = vunpack.c.l.b16 %v1172
        %v1289 = vunpack.c.h.b16 %v1172
        %v1290 = vunpack.c.l.b16 %v1173
        %v1291 = vunpack.c.h.b16 %v1173
        %v1292 = vunpack.c.l.b16 %v1174
        %v1293 = vunpack.c.h.b16 %v1174
        %v1294 = vunpack.c.l.b16 %v1175
        %v1295 = vunpack.c.h.b16 %v1175
        %v1296 = vunpack.c.l.b16 %v1176
        %v1297 = vunpack.c.h.b16 %v1176
        %v1298 = vunpack.c.l.b16 %v1177
        %v1299 = vunpack.c.h.b16 %v1177
        %v1300 = vunpack.c.l.b16 %v1178
        %v1301 = vunpack.c.h.b16 %v1178
        %v1302 = vunpack.c.l.b16 %v1179
        %v1303 = vunpack.c.h.b16 %v1179
        %v1304 = vunpack.c.l.b16 %v1180
        %v1305 = vunpack.c.h.b16 %v1180
        %v1306 = vunpack.c.l.b16 %v1181
        %v1307 = vunpack.c.h.b16 %v1181
        %v1308 = vunpack.c.l.b16 %v1182
        %v1309 = vunpack.c.h.b16 %v1182
        %v1310 = vunpack.c.l.b16 %v1183
        %v1311 = vunpack.c.h.b16 %v1183
        %v1312 = vunpack.c.l.b16 %v1184
        %v1313 = vunpack.c.h.b16 %v1184
        %v1314 = vunpack.c.l.b16 %v1185
        %v1315 = vunpack.c.h.b16 %v1185
        %v1316 = vunpack.c.l.b16 %v1186
        %v1317 = vunpack.c.h.b16 %v1186
        %v1318 = vunpack.c.l.b16 %v1187
        %v1319 = vunpack.c.h.b16 %v1187
        %v1320 = vunpack.c.l.b16 %v1188
        %v1321 = vunpack.c.h.b16 %v1188
        %v1322 = vunpack.c.l.b16 %v1189
        %v1323 = vunpack.c.h.b16 %v1189
        %v1324 = vunpack.c.l.b16 %v1190
        %v1325 = vunpack.c.h.b16 %v1190
        %v1326 = vunpack.c.l.b16 %v1191
        %v1327 = vunpack.c.h.b16 %v1191
        %v1328 = vunpack.c.l.b16 %v1192
        %v1329 = vunpack.c.h.b16 %v1192
        %v1330 = vunpack.c.l.b16 %v1193
        %v1331 = vunpack.c.h.b16 %v1193
        %v1332 = vunpack.c.l.b16 %v1194
        %v1333 = vunpack.c.h.b16 %v1194
        %v1334 = vunpack.c.l.b16 %v1195
        %v1335 = vunpack.c.h.b16 %v1195
        %v1336 = vunpack.c.l.b16 %v1196
        %v1337 = vunpack.c.h.b16 %v1196
        %v1338 = vunpack.c.l.b16 %v1197
        %v1339 = vunpack.c.h.b16 %v1197
        %v1340 = vunpack.c.l.b16 %v1198
        %v1341 = vunpack.c.h.b16 %v1198
        %v1342 = vunpack.c.l.b16 %v1199
        %v1343 = vunpack.c.h.b16 %v1199
        %v1344 = vunpack.c.l.b16 %v1200
        %v1345 = vunpack.c.h.b16 %v1200
        %v1346 = vunpack.c.l.b16 %v1201
        %v1347 = vunpack.c.h.b16 %v1201
        %v1348 = vunpack.c.l.b16 %v1202
        %v1349 = vunpack.c.h.b16 %v1202
        %v1350 = vunpack.c.l.b16 %v1203
        %v1351 = vunpack.c.h.b16 %v1203
        %v1352 = vunpack.c.l.b16 %v1204
        %v1353 = vunpack.c.h.b16 %v1204
        %v1354 = vunpack.c.l.b16 %v1205
        %v1355 = vunpack.c.h.b16 %v1205
        %v1356 = vunpack.c.l.b16 %v1206
        %v1357 = vunpack.c.h.b16 %v1206
        %v1358 = vunpack.c.l.b16 %v1207
        %v1359 = vunpack.c.h.b16 %v1207
        %v1360 = vunpack.c.l.b16 %v1208
        %v1361 = vunpack.c.h.b16 %v1208
        %v1362 = vunpack.c.l.b16 %v1209
        %v1363 = vunpack.c.h.b16 %v1209
        %v1364 = vunpack.c.l.b16 %v1210
        %v1365 = vunpack.c.h.b16 %v1210
        %v1366 = vunpack.c.l.b16 %v1211
        %v1367 = vunpack.c.h.b16 %v1211
        %v1368 = vunpack.c.l.b16 %v1212
        %v1369 = vunpack.c.h.b16 %v1212
        %v1370 = vunpack.c.l.b16 %v1213
        %v1371 = vunpack.c.h.b16 %v1213
        %v1372 = vpack.c.b16 %v1282, %v1276
        %v1373 = vpack.c.b16 %v1283, %v1277
        %v1374 = vpack.c.b16 %v1284, %v1278
        %v1375 = vpack.c.b16 %v1285, %v1279
        %v1376 = vpack.c.b16 %v1286, %v1280
        %v1377 = vpack.c.b16 %v1287, %v1281
        %v1378 = vpack.c.b16 %v1294, %v1288
        %v1379 = vpack.c.b16 %v1295, %v1289
        %v1380 = vpack.c.b16 %v1296, %v1290
        %v1381 = vpack.c.b16 %v1297, %v1291
        %v1382 = vpack.c.b16 %v1298, %v1292
        %v1383 = vpack.c.b16 %v1299, %v1293
        %v1384 = vpack.c.b16 %v1306, %v1300
        %v1385 = vpack.c.b16 %v1307, %v1301
        %v1386 = vpack.c.b16 %v1308, %v1302
        %v1387 = vpack.c.b16 %v1309, %v1303
        %v1388 = vpack.c.b16 %v1310, %v1304
        %v1389 = vpack.c.b16 %v1311, %v1305
        %v1390 = vpack.c.b16 %v1318, %v1312
        %v1391 = vpack.c.b16 %v1319, %v1313
        %v1392 = vpack.c.b16 %v1320, %v1314
        %v1393 = vpack.c.b16 %v1321, %v1315
        %v1394 = vpack.c.b16 %v1322, %v1316
        %v1395 = vpack.c.b16 %v1323, %v1317
        %v1396 = vpack.c.b16 %v1330, %v1324
        %v1397 = vpack.c.b16 %v1331, %v1325
        %v1398 = vpack.c.b16 %v1332, %v1326
        %v1399 = vpack.c.b16 %v1333, %v1327
        %v1400 = vpack.c.b16 %v1334, %v1328
        %v1401 = vpack.c.b16 %v1335, %v1329
        %v1402 = vpack.c.b16 %v1342, %v1336
        %v1403 = vpack.c.b16 %v1343, %v1337
        %v1404 = vpack.c.b16 %v1344, %v1338
        %v1405 = vpack.c.b16 %v1345, %v1339
        %v1406 = vpack.c.b16 %v1346, %v1340
        %v1407 = vpack.c.b16 %v1347, %v1341
        %v1408 = vpack.c.b16 %v1354, %v1348
        %v1409 = vpack.c.b16 %v1355, %v1349
        %v1410 = vpack.c.b16 %v1356, %v1350
        %v1411 = vpack.c.b16 %v1357, %v1351
        %v1412 = vpack.c.b16 %v1358, %v1352
        %v1413 = vpack.c.b16 %v1359, %v1353
        %v1414 = vpack.c.b16 %v1366, %v1360
        %v1415 = vpack.c.b16 %v1367, %v1361
        %v1416 = vpack.c.b16 %v1368, %v1362
        %v1417 = vpack.c.b16 %v1369, %v1363
        %v1418 = vpack.c.b16 %v1370, %v1364
        %v1419 = vpack.c.b16 %v1371, %v1365
        %1468 = vmatpush.bf16.msra.mxu0 %v1414
        %1469 = vmatpush.bf16.msra.mxu0 %v1408
        %1470 = vmatpush.bf16.msra.mxu0 %v1402
        %1471 = vmatpush.bf16.msra.mxu0 %v1396
        %1472 = vmatpush.bf16.msra.mxu0 %v1390
        %1473 = vmatpush.bf16.msra.mxu0 %v1384
        %1474 = vmatpush.bf16.msra.mxu0 %v1378
        %1475 = vmatpush.bf16.msra.mxu0 %v1372
        %1476 = vmatmul.bf16.gmra.mxu0 %v1157
        %v1477 = vpop.f32.mrf.mxu0
        %v1478 = vadd.f32 %v1216, %v1477
        %v1479 = vpop.f32.mrf.mxu0
        %1480 = vdwg.mxu0
        %1481 = vmatpush.bf16.msra.mxu0 %v1415
        %1482 = vmatpush.bf16.msra.mxu0 %v1409
        %1483 = vmatpush.bf16.msra.mxu0 %v1403
        %1484 = vmatpush.bf16.msra.mxu0 %v1397
        %1485 = vmatpush.bf16.msra.mxu0 %v1391
        %1486 = vmatpush.bf16.msra.mxu0 %v1385
        %1487 = vmatpush.bf16.msra.mxu0 %v1379
        %1488 = vmatpush.bf16.msra.mxu0 %v1373
        %1489 = vmatmul.bf16.gmra.mxu0 %v1157
        %v1490 = vpop.f32.mrf.mxu0
        %v1491 = vadd.f32 %v1217, %v1490
        %v1492 = vpop.f32.mrf.mxu0
        %1493 = vdwg.mxu0
        %1494 = vmatpush.bf16.msra.mxu0 %v1416
        %1495 = vmatpush.bf16.msra.mxu0 %v1410
        %1496 = vmatpush.bf16.msra.mxu0 %v1404
        %1497 = vmatpush.bf16.msra.mxu0 %v1398
        %1498 = vmatpush.bf16.msra.mxu0 %v1392
        %1499 = vmatpush.bf16.msra.mxu0 %v1386
        %1500 = vmatpush.bf16.msra.mxu0 %v1380
        %1501 = vmatpush.bf16.msra.mxu0 %v1374
        %1502 = vmatmul.bf16.gmra.mxu0 %v1157
        %v1503 = vpop.f32.mrf.mxu0
        %v1504 = vadd.f32 %v1218, %v1503
        %v1505 = vpop.f32.mrf.mxu0
        %1506 = vdwg.mxu0
        %1507 = vmatpush.bf16.msra.mxu0 %v1417
        %1508 = vmatpush.bf16.msra.mxu0 %v1411
        %1509 = vmatpush.bf16.msra.mxu0 %v1405
        %1510 = vmatpush.bf16.msra.mxu0 %v1399
        %1511 = vmatpush.bf16.msra.mxu0 %v1393
        %1512 = vmatpush.bf16.msra.mxu0 %v1387
        %1513 = vmatpush.bf16.msra.mxu0 %v1381
        %1514 = vmatpush.bf16.msra.mxu0 %v1375
        %1515 = vmatmul.bf16.gmra.mxu0 %v1157
        %v1516 = vpop.f32.mrf.mxu0
        %v1517 = vadd.f32 %v1219, %v1516
        %v1518 = vpop.f32.mrf.mxu0
        %1519 = vdwg.mxu0
        %1520 = vmatpush.bf16.msra.mxu0 %v1418
        %1521 = vmatpush.bf16.msra.mxu0 %v1412
        %1522 = vmatpush.bf16.msra.mxu0 %v1406
        %1523 = vmatpush.bf16.msra.mxu0 %v1400
        %1524 = vmatpush.bf16.msra.mxu0 %v1394
        %1525 = vmatpush.bf16.msra.mxu0 %v1388
        %1526 = vmatpush.bf16.msra.mxu0 %v1382
        %1527 = vmatpush.bf16.msra.mxu0 %v1376
        %1528 = vmatmul.bf16.gmra.mxu0 %v1157
        %v1529 = vpop.f32.mrf.mxu0
        %v1530 = vadd.f32 %v1220, %v1529
        %v1531 = vpop.f32.mrf.mxu0
        %1532 = vdwg.mxu0
        %1533 = vmatpush.bf16.msra.mxu0 %v1419
        %1534 = vmatpush.bf16.msra.mxu0 %v1413
        %1535 = vmatpush.bf16.msra.mxu0 %v1407
        %1536 = vmatpush.bf16.msra.mxu0 %v1401
        %1537 = vmatpush.bf16.msra.mxu0 %v1395
        %1538 = vmatpush.bf16.msra.mxu0 %v1389
        %1539 = vmatpush.bf16.msra.mxu0 %v1383
        %1540 = vmatpush.bf16.msra.mxu0 %v1377
        %1541 = vmatmul.bf16.gmra.mxu0 %v1157
        %v1542 = vpop.f32.mrf.mxu0
        %v1543 = vadd.f32 %v1221, %v1542
        %v1544 = vpop.f32.mrf.mxu0
        %1545 = vdwg.mxu0
        %v1547 = vrot.slane %v1478, 1
        %v1549 = vrot.slane %v1491, 1
        %1551 = vadd.xlane.f32.xlu0 %v1158
        %v1552 = vpop.xlane.xlu0 %1551
        %1553 = vadd.xlane.f32.xlu0 %v1159
        %v1554 = vpop.xlane.xlu0 %1553
        %1555 = vadd.xlane.f32.xlu0 %v1160
        %v1556 = vpop.xlane.xlu0 %1555
        %1557 = vadd.xlane.f32.xlu0 %v1161
        %v1558 = vpop.xlane.xlu0 %1557
        %v1559 = vrcp.pop 128.0
        %v1560 = vmul.f32 128.0, %v1559
        %v1561 = vsub.f32 1.0, %v1560
        %v1562 = vmul.f32 %v1559, %v1561
        %v1563 = vadd.f32 %v1559, %v1562
        %vm1564 = vweird.f32 %v1559
        %v1565 = vsel %vm1564, %v1559, %v1563
        %v1566 = vmul.f32 %v1552, %v1565
        %v1567 = vmul.f32 %v1554, %v1565
        %v1568 = vmul.f32 %v1556, %v1565
        %v1569 = vmul.f32 %v1558, %v1565
        %v1570 = vsub.f32 %v1158, %v1566
        %v1571 = vsub.f32 %v1159, %v1567
        %v1572 = vsub.f32 %v1160, %v1568
        %v1573 = vsub.f32 %v1161, %v1569
        %v1574 = vmul.f32 %v1570, %v1570
        %v1575 = vmul.f32 %v1571, %v1571
        %v1576 = vmul.f32 %v1572, %v1572
        %v1577 = vmul.f32 %v1573, %v1573
        %1578 = vadd.xlane.f32.xlu0 %v1574
        %v1579 = vpop.xlane.xlu0 %1578
        %1580 = vadd.xlane.f32.xlu0 %v1575
        %v1581 = vpop.xlane.xlu0 %1580
        %1582 = vadd.xlane.f32.xlu0 %v1576
        %v1583 = vpop.xlane.xlu0 %1582
        %1584 = vadd.xlane.f32.xlu0 %v1577
        %v1585 = vpop.xlane.xlu0 %1584
        %v1586 = vmul.f32 %v1579, %v1565
        %v1587 = vmul.f32 %v1581, %v1565
        %v1588 = vmul.f32 %v1583, %v1565
        %v1589 = vmul.f32 %v1585, %v1565
        %v1590 = vadd.f32 %v1586, 1e-06
        %v1591 = vadd.f32 %v1587, 1e-06
        %v1592 = vadd.f32 %v1588, 1e-06
        %v1593 = vadd.f32 %v1589, 1e-06
        %v1594 = vrsqrt.pop %v1590
        %v1595 = vmul.f32 %v1594, %v1590
        %v1596 = vmul.f32 %v1595, %v1594
        %v1597 = vmul.f32 0.5, %v1596
        %v1598 = vsub.f32 1.5, %v1597
        %v1599 = vmul.f32 %v1594, %v1598
        %vm1600 = vweird.f32 %v1590
        %vm1601 = vweird.f32 %v1594
        %vm1602 = vmor %vm1600, %vm1601
        %v1603 = vsel %vm1602, %v1594, %v1599
        %v1604 = vrsqrt.pop %v1591
        %v1605 = vmul.f32 %v1604, %v1591
        %v1606 = vmul.f32 %v1605, %v1604
        %v1607 = vmul.f32 0.5, %v1606
        %v1608 = vsub.f32 1.5, %v1607
        %v1609 = vmul.f32 %v1604, %v1608
        %vm1610 = vweird.f32 %v1591
        %vm1611 = vweird.f32 %v1604
        %vm1612 = vmor %vm1610, %vm1611
        %v1613 = vsel %vm1612, %v1604, %v1609
        %v1614 = vrsqrt.pop %v1592
        %v1615 = vmul.f32 %v1614, %v1592
        %v1616 = vmul.f32 %v1615, %v1614
        %v1617 = vmul.f32 0.5, %v1616
        %v1618 = vsub.f32 1.5, %v1617
        %v1619 = vmul.f32 %v1614, %v1618
        %vm1620 = vweird.f32 %v1592
        %vm1621 = vweird.f32 %v1614
        %vm1622 = vmor %vm1620, %vm1621
        %v1623 = vsel %vm1622, %v1614, %v1619
        %v1624 = vrsqrt.pop %v1593
        %v1625 = vmul.f32 %v1624, %v1593
        %v1626 = vmul.f32 %v1625, %v1624
        %v1627 = vmul.f32 0.5, %v1626
        %v1628 = vsub.f32 1.5, %v1627
        %v1629 = vmul.f32 %v1624, %v1628
        %vm1630 = vweird.f32 %v1593
        %vm1631 = vweird.f32 %v1624
        %vm1632 = vmor %vm1630, %vm1631
        %v1633 = vsel %vm1632, %v1624, %v1629
        %v1634 = vmul.f32 %v1570, %v1603
        %v1635 = vmul.f32 %v1571, %v1613
        %v1636 = vmul.f32 %v1572, %v1623
        %v1637 = vmul.f32 %v1573, %v1633
        %v1638 = vadd.f32 %v1491, 1.0
        %v1639 = vadd.f32 %v1549, 1.0
        %v1642 = vperm.slane %v1638, 0
        %v1643 = vperm.slane %v1639, 0
        %v1646 = vmul.f32 %v1634, %v1642
        %v1647 = vmul.f32 %v1635, %v1642
        %v1648 = vmul.f32 %v1636, %v1643
        %v1649 = vmul.f32 %v1637, %v1643
        %v1650 = vperm.slane %v1478, 0
        %v1651 = vperm.slane %v1547, 0
        %v1654 = vadd.f32 %v1646, %v1650
        %v1655 = vadd.f32 %v1647, %v1650
        %v1656 = vadd.f32 %v1648, %v1651
        %v1657 = vadd.f32 %v1649, %v1651
        %v1659 = vrot.slane %v1504, 1
        %v1661 = vrot.slane %v1517, 1
        %1663 = vadd.xlane.f32.xlu0 %v1162
        %v1664 = vpop.xlane.xlu0 %1663
        %1665 = vadd.xlane.f32.xlu0 %v1163
        %v1666 = vpop.xlane.xlu0 %1665
        %1667 = vadd.xlane.f32.xlu0 %v1164
        %v1668 = vpop.xlane.xlu0 %1667
        %1669 = vadd.xlane.f32.xlu0 %v1165
        %v1670 = vpop.xlane.xlu0 %1669
        %v1671 = vmul.f32 %v1664, %v1565
        %v1672 = vmul.f32 %v1666, %v1565
        %v1673 = vmul.f32 %v1668, %v1565
        %v1674 = vmul.f32 %v1670, %v1565
        %v1675 = vsub.f32 %v1162, %v1671
        %v1676 = vsub.f32 %v1163, %v1672
        %v1677 = vsub.f32 %v1164, %v1673
        %v1678 = vsub.f32 %v1165, %v1674
        %v1679 = vmul.f32 %v1675, %v1675
        %v1680 = vmul.f32 %v1676, %v1676
        %v1681 = vmul.f32 %v1677, %v1677
        %v1682 = vmul.f32 %v1678, %v1678
        %1683 = vadd.xlane.f32.xlu0 %v1679
        %v1684 = vpop.xlane.xlu0 %1683
        %1685 = vadd.xlane.f32.xlu0 %v1680
        %v1686 = vpop.xlane.xlu0 %1685
        %1687 = vadd.xlane.f32.xlu0 %v1681
        %v1688 = vpop.xlane.xlu0 %1687
        %1689 = vadd.xlane.f32.xlu0 %v1682
        %v1690 = vpop.xlane.xlu0 %1689
        %v1691 = vmul.f32 %v1684, %v1565
        %v1692 = vmul.f32 %v1686, %v1565
        %v1693 = vmul.f32 %v1688, %v1565
        %v1694 = vmul.f32 %v1690, %v1565
        %v1695 = vadd.f32 %v1691, 1e-06
        %v1696 = vadd.f32 %v1692, 1e-06
        %v1697 = vadd.f32 %v1693, 1e-06
        %v1698 = vadd.f32 %v1694, 1e-06
        %v1699 = vrsqrt.pop %v1695
        %v1700 = vmul.f32 %v1699, %v1695
        %v1701 = vmul.f32 %v1700, %v1699
        %v1702 = vmul.f32 0.5, %v1701
        %v1703 = vsub.f32 1.5, %v1702
        %v1704 = vmul.f32 %v1699, %v1703
        %vm1705 = vweird.f32 %v1695
        %vm1706 = vweird.f32 %v1699
        %vm1707 = vmor %vm1705, %vm1706
        %v1708 = vsel %vm1707, %v1699, %v1704
        %v1709 = vrsqrt.pop %v1696
        %v1710 = vmul.f32 %v1709, %v1696
        %v1711 = vmul.f32 %v1710, %v1709
        %v1712 = vmul.f32 0.5, %v1711
        %v1713 = vsub.f32 1.5, %v1712
        %v1714 = vmul.f32 %v1709, %v1713
        %vm1715 = vweird.f32 %v1696
        %vm1716 = vweird.f32 %v1709
        %vm1717 = vmor %vm1715, %vm1716
        %v1718 = vsel %vm1717, %v1709, %v1714
        %v1719 = vrsqrt.pop %v1697
        %v1720 = vmul.f32 %v1719, %v1697
        %v1721 = vmul.f32 %v1720, %v1719
        %v1722 = vmul.f32 0.5, %v1721
        %v1723 = vsub.f32 1.5, %v1722
        %v1724 = vmul.f32 %v1719, %v1723
        %vm1725 = vweird.f32 %v1697
        %vm1726 = vweird.f32 %v1719
        %vm1727 = vmor %vm1725, %vm1726
        %v1728 = vsel %vm1727, %v1719, %v1724
        %v1729 = vrsqrt.pop %v1698
        %v1730 = vmul.f32 %v1729, %v1698
        %v1731 = vmul.f32 %v1730, %v1729
        %v1732 = vmul.f32 0.5, %v1731
        %v1733 = vsub.f32 1.5, %v1732
        %v1734 = vmul.f32 %v1729, %v1733
        %vm1735 = vweird.f32 %v1698
        %vm1736 = vweird.f32 %v1729
        %vm1737 = vmor %vm1735, %vm1736
        %v1738 = vsel %vm1737, %v1729, %v1734
        %v1739 = vmul.f32 %v1675, %v1708
        %v1740 = vmul.f32 %v1676, %v1718
        %v1741 = vmul.f32 %v1677, %v1728
        %v1742 = vmul.f32 %v1678, %v1738
        %v1743 = vadd.f32 %v1517, 1.0
        %v1744 = vadd.f32 %v1661, 1.0
        %v1747 = vperm.slane %v1743, 0
        %v1748 = vperm.slane %v1744, 0
        %v1751 = vmul.f32 %v1739, %v1747
        %v1752 = vmul.f32 %v1740, %v1747
        %v1753 = vmul.f32 %v1741, %v1748
        %v1754 = vmul.f32 %v1742, %v1748
        %v1755 = vperm.slane %v1504, 0
        %v1756 = vperm.slane %v1659, 0
        %v1759 = vadd.f32 %v1751, %v1755
        %v1760 = vadd.f32 %v1752, %v1755
        %v1761 = vadd.f32 %v1753, %v1756
        %v1762 = vadd.f32 %v1754, %v1756
        %v1763 = vpack.c.bf16 %v1654, %v1654
        %v1764 = vpack.c.bf16 %v1655, %v1655
        %v1765 = vpack.c.bf16 %v1656, %v1656
        %v1766 = vpack.c.bf16 %v1657, %v1657
        %1767 = vst [vmem:[#allocation4] sm:$0xf] %v1763
        %1768 = vst [vmem:[#allocation4 + $0x4] sm:$0xf] %v1764
        %1769 = vst [vmem:[#allocation4 + $0x10] sm:$0xf] %v1765
        %1770 = vst [vmem:[#allocation4 + $0x14] sm:$0xf] %v1766
        %v1771 = vpack.c.bf16 %v1759, %v1759
        %v1772 = vpack.c.bf16 %v1760, %v1760
        %v1773 = vpack.c.bf16 %v1761, %v1761
        %v1774 = vpack.c.bf16 %v1762, %v1762
        %1775 = vst [vmem:[#allocation4 + $0x8] sm:$0xf] %v1771
        %1776 = vst [vmem:[#allocation4 + $0xc] sm:$0xf] %v1772
        %1777 = vst [vmem:[#allocation4 + $0x18] sm:$0xf] %v1773
        %1778 = vst [vmem:[#allocation4 + $0x1c] sm:$0xf] %v1774
        %v1779 = vpack.c.bf16 %v1655, %v1654
        %v1780 = vpack.c.bf16 %v1657, %v1656
        %v1781 = vld [vmem:[#allocation4] sm:$0xf]
        %v1782 = vld [vmem:[#allocation4 + $0x4] sm:$0xf]
        %v1783 = vld [vmem:[#allocation4 + $0x8] sm:$0xf]
        %v1784 = vld [vmem:[#allocation4 + $0xc] sm:$0xf]
        %v1785 = vld [vmem:[#allocation4 + $0x10] sm:$0xf]
        %v1786 = vld [vmem:[#allocation4 + $0x14] sm:$0xf]
        %v1787 = vld [vmem:[#allocation4 + $0x18] sm:$0xf]
        %v1788 = vld [vmem:[#allocation4 + $0x1c] sm:$0xf]
        %v1789 = vld [vmem:[%s597] sm:$0xf]
        %v1790 = vld [vmem:[%s597 + $0x20] sm:$0xf]
        %v1791 = vld [vmem:[%s597 + $0x40] sm:$0xf]
        %v1792 = vld [vmem:[%s597 + $0x60] sm:$0xf]
        %v1793 = vld [vmem:[%s597 + $0x80] sm:$0xf]
        %v1794 = vld [vmem:[%s597 + $0xa0] sm:$0xf]
        %v1795 = vld [vmem:[%s597 + $0xc0] sm:$0xf]
        %v1796 = vld [vmem:[%s597 + $0xe0] sm:$0xf]
        %v1797 = vld [vmem:[%s597 + $0x100] sm:$0xf]
        %v1798 = vld [vmem:[%s597 + $0x120] sm:$0xf]
        %v1799 = vld [vmem:[%s597 + $0x140] sm:$0xf]
        %v1800 = vld [vmem:[%s597 + $0x160] sm:$0xf]
        %v1801 = vld [vmem:[%s597 + $0x180] sm:$0xf]
        %v1802 = vld [vmem:[%s597 + $0x1a0] sm:$0xf]
        %v1803 = vld [vmem:[%s597 + $0x1c0] sm:$0xf]
        %v1804 = vld [vmem:[%s597 + $0x1e0] sm:$0xf]
        %v1805 = vld [vmem:[%s617 + $0x6] sm:$0x1]
        %v1807 = vperm.slane %v1805, 0
        %v1825 = vunpack.c.l.b16 %v1789
        %v1826 = vunpack.c.l.b16 %v1790
        %v1827 = vunpack.c.l.b16 %v1791
        %v1828 = vunpack.c.l.b16 %v1792
        %v1829 = vunpack.c.l.b16 %v1793
        %v1830 = vunpack.c.l.b16 %v1794
        %v1831 = vunpack.c.l.b16 %v1795
        %v1832 = vunpack.c.l.b16 %v1796
        %v1833 = vunpack.c.l.b16 %v1797
        %v1834 = vunpack.c.l.b16 %v1798
        %v1835 = vunpack.c.l.b16 %v1799
        %v1836 = vunpack.c.l.b16 %v1800
        %v1837 = vunpack.c.l.b16 %v1801
        %v1838 = vunpack.c.l.b16 %v1802
        %v1839 = vunpack.c.l.b16 %v1803
        %v1840 = vunpack.c.l.b16 %v1804
        %v1841 = vpack.c.b16 %v1826, %v1825
        %v1842 = vpack.c.b16 %v1828, %v1827
        %v1843 = vpack.c.b16 %v1830, %v1829
        %v1844 = vpack.c.b16 %v1832, %v1831
        %v1845 = vpack.c.b16 %v1834, %v1833
        %v1846 = vpack.c.b16 %v1836, %v1835
        %v1847 = vpack.c.b16 %v1838, %v1837
        %v1848 = vpack.c.b16 %v1840, %v1839
        %1857 = vmatpush.bf16.msra.mxu0 %v1848
        %1858 = vmatpush.bf16.msra.mxu0 %v1847
        %1859 = vmatpush.bf16.msra.mxu0 %v1846
        %1860 = vmatpush.bf16.msra.mxu0 %v1845
        %1861 = vmatpush.bf16.msra.mxu0 %v1844
        %1862 = vmatpush.bf16.msra.mxu0 %v1843
        %1863 = vmatpush.bf16.msra.mxu0 %v1842
        %1864 = vmatpush.bf16.msra.mxu0 %v1841
        %1865 = vmatmul.bf16.gmra.mxu0 %v1779
        %v1866 = vpop.f32.mrf.mxu0
        %v1867 = vadd.f32 %v1807, %v1866
        %v1868 = vpop.f32.mrf.mxu0
        %v1869 = vadd.f32 %v1807, %v1868
        %1870 = vmatmul.bf16.gmra.mxu0 %v1780
        %v1871 = vpop.f32.mrf.mxu0
        %v1872 = vadd.f32 %v1807, %v1871
        %v1873 = vpop.f32.mrf.mxu0
        %v1874 = vadd.f32 %v1807, %v1873
        %1875 = vdwg.mxu0
        %v1876 = vld [vmem:[%s597 + $0x4] sm:$0xff]
        %v1877 = vld [vmem:[%s597 + $0x24] sm:$0xff]
        %v1878 = vld [vmem:[%s597 + $0x44] sm:$0xff]
        %v1879 = vld [vmem:[%s597 + $0x64] sm:$0xff]
        %v1880 = vld [vmem:[%s597 + $0x84] sm:$0xff]
        %v1881 = vld [vmem:[%s597 + $0xa4] sm:$0xff]
        %v1882 = vld [vmem:[%s597 + $0xc4] sm:$0xff]
        %v1883 = vld [vmem:[%s597 + $0xe4] sm:$0xff]
        %v1884 = vld [vmem:[%s597 + $0x104] sm:$0xff]
        %v1885 = vld [vmem:[%s597 + $0x124] sm:$0xff]
        %v1886 = vld [vmem:[%s597 + $0x144] sm:$0xff]
        %v1887 = vld [vmem:[%s597 + $0x164] sm:$0xff]
        %v1888 = vld [vmem:[%s597 + $0x184] sm:$0xff]
        %v1889 = vld [vmem:[%s597 + $0x1a4] sm:$0xff]
        %v1890 = vld [vmem:[%s597 + $0x1c4] sm:$0xff]
        %v1891 = vld [vmem:[%s597 + $0x1e4] sm:$0xff]
        %v1892 = vld [vmem:[%s617 + $0x7] sm:$0x3]
        %v1894 = vperm.slane %v1892, 0
        %v1895 = vperm.slane %v1892, 1
        %v1906 = vunpack.c.l.b16 %v1781
        %v1907 = vunpack.c.l.b16 %v1782
        %v1908 = vunpack.c.l.b16 %v1783
        %v1909 = vunpack.c.l.b16 %v1784
        %v1910 = vunpack.c.l.b16 %v1785
        %v1911 = vunpack.c.l.b16 %v1786
        %v1912 = vunpack.c.l.b16 %v1787
        %v1913 = vunpack.c.l.b16 %v1788
        %v1914 = vpack.c.b16 %v1907, %v1906
        %v1915 = vpack.c.b16 %v1909, %v1908
        %v1916 = vpack.c.b16 %v1911, %v1910
        %v1917 = vpack.c.b16 %v1913, %v1912
        %v1938 = vunpack.c.l.b16 %v1876
        %v1939 = vunpack.c.h.b16 %v1876
        %v1940 = vunpack.c.l.b16 %v1877
        %v1941 = vunpack.c.h.b16 %v1877
        %v1942 = vunpack.c.l.b16 %v1878
        %v1943 = vunpack.c.h.b16 %v1878
        %v1944 = vunpack.c.l.b16 %v1879
        %v1945 = vunpack.c.h.b16 %v1879
        %v1946 = vunpack.c.l.b16 %v1880
        %v1947 = vunpack.c.h.b16 %v1880
        %v1948 = vunpack.c.l.b16 %v1881
        %v1949 = vunpack.c.h.b16 %v1881
        %v1950 = vunpack.c.l.b16 %v1882
        %v1951 = vunpack.c.h.b16 %v1882
        %v1952 = vunpack.c.l.b16 %v1883
        %v1953 = vunpack.c.h.b16 %v1883
        %v1954 = vunpack.c.l.b16 %v1884
        %v1955 = vunpack.c.h.b16 %v1884
        %v1956 = vunpack.c.l.b16 %v1885
        %v1957 = vunpack.c.h.b16 %v1885
        %v1958 = vunpack.c.l.b16 %v1886
        %v1959 = vunpack.c.h.b16 %v1886
        %v1960 = vunpack.c.l.b16 %v1887
        %v1961 = vunpack.c.h.b16 %v1887
        %v1962 = vunpack.c.l.b16 %v1888
        %v1963 = vunpack.c.h.b16 %v1888
        %v1964 = vunpack.c.l.b16 %v1889
        %v1965 = vunpack.c.h.b16 %v1889
        %v1966 = vunpack.c.l.b16 %v1890
        %v1967 = vunpack.c.h.b16 %v1890
        %v1968 = vunpack.c.l.b16 %v1891
        %v1969 = vunpack.c.h.b16 %v1891
        %v1970 = vpack.c.b16 %v1940, %v1938
        %v1971 = vpack.c.b16 %v1941, %v1939
        %v1972 = vpack.c.b16 %v1944, %v1942
        %v1973 = vpack.c.b16 %v1945, %v1943
        %v1974 = vpack.c.b16 %v1948, %v1946
        %v1975 = vpack.c.b16 %v1949, %v1947
        %v1976 = vpack.c.b16 %v1952, %v1950
        %v1977 = vpack.c.b16 %v1953, %v1951
        %v1978 = vpack.c.b16 %v1956, %v1954
        %v1979 = vpack.c.b16 %v1957, %v1955
        %v1980 = vpack.c.b16 %v1960, %v1958
        %v1981 = vpack.c.b16 %v1961, %v1959
        %v1982 = vpack.c.b16 %v1964, %v1962
        %v1983 = vpack.c.b16 %v1965, %v1963
        %v1984 = vpack.c.b16 %v1968, %v1966
        %v1985 = vpack.c.b16 %v1969, %v1967
        %2002 = vmatpush.bf16.msra.mxu0 %v1984
        %2003 = vmatpush.bf16.msra.mxu0 %v1982
        %2004 = vmatpush.bf16.msra.mxu0 %v1980
        %2005 = vmatpush.bf16.msra.mxu0 %v1978
        %2006 = vmatpush.bf16.msra.mxu0 %v1976
        %2007 = vmatpush.bf16.msra.mxu0 %v1974
        %2008 = vmatpush.bf16.msra.mxu0 %v1972
        %2009 = vmatpush.bf16.msra.mxu0 %v1970
        %2010 = vmatmul.bf16.gmra.mxu0 %v1914
        %v2011 = vpop.f32.mrf.mxu0
        %v2012 = vadd.f32 %v1894, %v2011
        %v2013 = vpop.f32.mrf.mxu0
        %v2014 = vadd.f32 %v1894, %v2013
        %2015 = vmatmul.bf16.gmra.mxu0 %v1915
        %v2016 = vpop.f32.mrf.mxu0
        %v2017 = vadd.f32 %v1894, %v2016
        %v2018 = vpop.f32.mrf.mxu0
        %v2019 = vadd.f32 %v1894, %v2018
        %2020 = vmatmul.bf16.gmra.mxu0 %v1916
        %v2021 = vpop.f32.mrf.mxu0
        %v2022 = vadd.f32 %v1894, %v2021
        %v2023 = vpop.f32.mrf.mxu0
        %v2024 = vadd.f32 %v1894, %v2023
        %2025 = vmatmul.bf16.gmra.mxu0 %v1917
        %v2026 = vpop.f32.mrf.mxu0
        %v2027 = vadd.f32 %v1894, %v2026
        %v2028 = vpop.f32.mrf.mxu0
        %v2029 = vadd.f32 %v1894, %v2028
        %2030 = vdwg.mxu0
        %2031 = vmatpush.bf16.msra.mxu0 %v1985
        %2032 = vmatpush.bf16.msra.mxu0 %v1983
        %2033 = vmatpush.bf16.msra.mxu0 %v1981
        %2034 = vmatpush.bf16.msra.mxu0 %v1979
        %2035 = vmatpush.bf16.msra.mxu0 %v1977
        %2036 = vmatpush.bf16.msra.mxu0 %v1975
        %2037 = vmatpush.bf16.msra.mxu0 %v1973
        %2038 = vmatpush.bf16.msra.mxu0 %v1971
        %2039 = vmatmul.bf16.gmra.mxu0 %v1914
        %v2040 = vpop.f32.mrf.mxu0
        %v2041 = vadd.f32 %v1895, %v2040
        %v2042 = vpop.f32.mrf.mxu0
        %v2043 = vadd.f32 %v1895, %v2042
        %2044 = vmatmul.bf16.gmra.mxu0 %v1915
        %v2045 = vpop.f32.mrf.mxu0
        %v2046 = vadd.f32 %v1895, %v2045
        %v2047 = vpop.f32.mrf.mxu0
        %v2048 = vadd.f32 %v1895, %v2047
        %2049 = vmatmul.bf16.gmra.mxu0 %v1916
        %v2050 = vpop.f32.mrf.mxu0
        %v2051 = vadd.f32 %v1895, %v2050
        %v2052 = vpop.f32.mrf.mxu0
        %v2053 = vadd.f32 %v1895, %v2052
        %2054 = vmatmul.bf16.gmra.mxu0 %v1917
        %v2055 = vpop.f32.mrf.mxu0
        %v2056 = vadd.f32 %v1895, %v2055
        %v2057 = vpop.f32.mrf.mxu0
        %v2058 = vadd.f32 %v1895, %v2057
        %2059 = vdwg.mxu0
        %v2060 = vpack.c.bf16 %v1867, %v1867
        %v2061 = vpack.c.bf16 %v1869, %v1869
        %v2062 = vpack.c.bf16 %v1872, %v1872
        %v2063 = vpack.c.bf16 %v1874, %v1874
        %v2064 = vpack.c.bf16 %v2012, %v2012
        %v2065 = vpack.c.bf16 %v2014, %v2014
        %v2066 = vpack.c.bf16 %v2017, %v2017
        %v2067 = vpack.c.bf16 %v2019, %v2019
        %v2068 = vpack.c.bf16 %v2022, %v2022
        %v2069 = vpack.c.bf16 %v2024, %v2024
        %v2070 = vpack.c.bf16 %v2027, %v2027
        %v2071 = vpack.c.bf16 %v2029, %v2029
        %v2072 = vpack.c.bf16 %v2041, %v2041
        %v2073 = vpack.c.bf16 %v2043, %v2043
        %v2074 = vpack.c.bf16 %v2046, %v2046
        %v2075 = vpack.c.bf16 %v2048, %v2048
        %v2076 = vpack.c.bf16 %v2051, %v2051
        %v2077 = vpack.c.bf16 %v2053, %v2053
        %v2078 = vpack.c.bf16 %v2056, %v2056
        %v2079 = vpack.c.bf16 %v2058, %v2058
        %v2082 = vunpack.c.l.b16 %v2060
        %v2083 = vunpack.c.l.b16 %v2061
        %v2084 = vpack.c.b16 %v2083, %v2082
        %v2089 = vunpack.c.l.b16 %v2064
        %v2090 = vunpack.c.l.b16 %v2065
        %v2091 = vunpack.c.l.b16 %v2066
        %v2092 = vunpack.c.l.b16 %v2067
        %v2093 = vpack.c.b16 %v2090, %v2089
        %v2094 = vpack.c.b16 %v2092, %v2091
        %vm2095 = vcmask 261120
        %v2097 = vsel %vm2095, %v2084, 0
        %v2100 = vsel %vm2095, %v2093, 0
        %v2103 = vsel %vm2095, %v2094, 0
        %2105 = vmatpush.bf16.xpose.msra.mxu0 0
        %2106 = vmatpush.bf16.xpose.msra.mxu0 0
        %2107 = vmatpush.bf16.xpose.msra.mxu0 0
        %2108 = vmatpush.bf16.xpose.msra.mxu0 0
        %2109 = vmatpush.bf16.xpose.msra.mxu0 0
        %2110 = vmatpush.bf16.xpose.msra.mxu0 0
        %2111 = vmatpush.bf16.xpose.msra.mxu0 %v2103
        %2112 = vmatpush.bf16.xpose.msra.mxu0 %v2100
        %2113 = vmatmul.bf16.gmra.mxu0 %v2097
        %v2114 = vpop.f32.mrf.mxu0
        %v2115 = vadd.f32 0.0, %v2114
        %v2116 = vpop.f32.mrf.mxu0
        %v2117 = vadd.f32 0.0, %v2116
        %2118 = vdwg.mxu0
        %v2121 = vunpack.c.l.b16 %v2062
        %v2122 = vunpack.c.l.b16 %v2063
        %v2123 = vpack.c.b16 %v2122, %v2121
        %v2128 = vunpack.c.l.b16 %v2068
        %v2129 = vunpack.c.l.b16 %v2069
        %v2130 = vunpack.c.l.b16 %v2070
        %v2131 = vunpack.c.l.b16 %v2071
        %v2132 = vpack.c.b16 %v2129, %v2128
        %v2133 = vpack.c.b16 %v2131, %v2130
        %v2135 = vsel %vm2095, %v2123, 0
        %v2138 = vsel %vm2095, %v2132, 0
        %v2141 = vsel %vm2095, %v2133, 0
        %2143 = vmatpush.bf16.xpose.msra.mxu0 0
        %2144 = vmatpush.bf16.xpose.msra.mxu0 0
        %2145 = vmatpush.bf16.xpose.msra.mxu0 0
        %2146 = vmatpush.bf16.xpose.msra.mxu0 0
        %2147 = vmatpush.bf16.xpose.msra.mxu0 0
        %2148 = vmatpush.bf16.xpose.msra.mxu0 0
        %2149 = vmatpush.bf16.xpose.msra.mxu0 %v2141
        %2150 = vmatpush.bf16.xpose.msra.mxu0 %v2138
        %2151 = vmatmul.bf16.gmra.mxu0 %v2135
        %v2152 = vpop.f32.mrf.mxu0
        %v2153 = vadd.f32 0.0, %v2152
        %v2154 = vpop.f32.mrf.mxu0
        %v2155 = vadd.f32 0.0, %v2154
        %2156 = vdwg.mxu0
        %v2157 = vsel %vm2095, %v2115, -inf
        %2158 = vmax.xlane.f32.xlu0 %v2157
        %v2159 = vpop.xlane.xlu0 %2158
        %v2160 = vsel %vm2095, %v2117, -inf
        %2161 = vmax.xlane.f32.xlu0 %v2160
        %v2162 = vpop.xlane.xlu0 %2161
        %v2163 = vsel %vm2095, %v2153, -inf
        %2164 = vmax.xlane.f32.xlu0 %v2163
        %v2165 = vpop.xlane.xlu0 %2164
        %v2166 = vsel %vm2095, %v2155, -inf
        %2167 = vmax.xlane.f32.xlu0 %v2166
        %v2168 = vpop.xlane.xlu0 %2167
        %v2169 = vsub.f32 %v2115, %v2159
        %v2170 = vsub.f32 %v2117, %v2162
        %v2171 = vsub.f32 %v2153, %v2165
        %v2172 = vsub.f32 %v2155, %v2168
        %v2173 = vmul.f32 %v2169, 1.442695
        %v2174 = vpow.pop %v2173
        %v2175 = vmul.f32 %v2170, 1.442695
        %v2176 = vpow.pop %v2175
        %v2177 = vmul.f32 %v2171, 1.442695
        %v2178 = vpow.pop %v2177
        %v2179 = vmul.f32 %v2172, 1.442695
        %v2180 = vpow.pop %v2179
        %v2181 = vsel %vm2095, %v2174, 0.0
        %2182 = vadd.xlane.f32.xlu0 %v2181
        %v2183 = vpop.xlane.xlu0 %2182
        %v2184 = vsel %vm2095, %v2176, 0.0
        %2185 = vadd.xlane.f32.xlu0 %v2184
        %v2186 = vpop.xlane.xlu0 %2185
        %v2187 = vsel %vm2095, %v2178, 0.0
        %2188 = vadd.xlane.f32.xlu0 %v2187
        %v2189 = vpop.xlane.xlu0 %2188
        %v2190 = vsel %vm2095, %v2180, 0.0
        %2191 = vadd.xlane.f32.xlu0 %v2190
        %v2192 = vpop.xlane.xlu0 %2191
        %v2193 = vrcp.pop %v2183
        %v2194 = vmul.f32 %v2183, %v2193
        %v2195 = vsub.f32 1.0, %v2194
        %v2196 = vmul.f32 %v2193, %v2195
        %v2197 = vadd.f32 %v2193, %v2196
        %vm2198 = vweird.f32 %v2183
        %vm2199 = vweird.f32 %v2193
        %vm2200 = vmor %vm2198, %vm2199
        %v2201 = vsel %vm2200, %v2193, %v2197
        %v2202 = vand.u32 2147483647, %v2183
        %vm2203 = vcmp.eq.f32.partialorder %v2202, 8.507059e+37
        %v2204 = vand.u32 %v2183, 2147483648
        %v2205 = vor.u32 1.1754944e-38, %v2204
        %v2206 = vsel %vm2203, %v2205, %v2201
        %v2207 = vmul.f32 %v2174, %v2206
        %v2208 = vrcp.pop %v2186
        %v2209 = vmul.f32 %v2186, %v2208
        %v2210 = vsub.f32 1.0, %v2209
        %v2211 = vmul.f32 %v2208, %v2210
        %v2212 = vadd.f32 %v2208, %v2211
        %vm2213 = vweird.f32 %v2186
        %vm2214 = vweird.f32 %v2208
        %vm2215 = vmor %vm2213, %vm2214
        %v2216 = vsel %vm2215, %v2208, %v2212
        %v2217 = vand.u32 2147483647, %v2186
        %vm2218 = vcmp.eq.f32.partialorder %v2217, 8.507059e+37
        %v2219 = vand.u32 %v2186, 2147483648
        %v2220 = vor.u32 1.1754944e-38, %v2219
        %v2221 = vsel %vm2218, %v2220, %v2216
        %v2222 = vmul.f32 %v2176, %v2221
        %v2223 = vrcp.pop %v2189
        %v2224 = vmul.f32 %v2189, %v2223
        %v2225 = vsub.f32 1.0, %v2224
        %v2226 = vmul.f32 %v2223, %v2225
        %v2227 = vadd.f32 %v2223, %v2226
        %vm2228 = vweird.f32 %v2189
        %vm2229 = vweird.f32 %v2223
        %vm2230 = vmor %vm2228, %vm2229
        %v2231 = vsel %vm2230, %v2223, %v2227
        %v2232 = vand.u32 2147483647, %v2189
        %vm2233 = vcmp.eq.f32.partialorder %v2232, 8.507059e+37
        %v2234 = vand.u32 %v2189, 2147483648
        %v2235 = vor.u32 1.1754944e-38, %v2234
        %v2236 = vsel %vm2233, %v2235, %v2231
        %v2237 = vmul.f32 %v2178, %v2236
        %v2238 = vrcp.pop %v2192
        %v2239 = vmul.f32 %v2192, %v2238
        %v2240 = vsub.f32 1.0, %v2239
        %v2241 = vmul.f32 %v2238, %v2240
        %v2242 = vadd.f32 %v2238, %v2241
        %vm2243 = vweird.f32 %v2192
        %vm2244 = vweird.f32 %v2238
        %vm2245 = vmor %vm2243, %vm2244
        %v2246 = vsel %vm2245, %v2238, %v2242
        %v2247 = vand.u32 2147483647, %v2192
        %vm2248 = vcmp.eq.f32.partialorder %v2247, 8.507059e+37
        %v2249 = vand.u32 %v2192, 2147483648
        %v2250 = vor.u32 1.1754944e-38, %v2249
        %v2251 = vsel %vm2248, %v2250, %v2246
        %v2252 = vmul.f32 %v2180, %v2251
        %v2253 = vpack.c.bf16 %v2207, %v2207
        %v2254 = vpack.c.bf16 %v2222, %v2222
        %v2255 = vpack.c.bf16 %v2237, %v2237
        %v2256 = vpack.c.bf16 %v2252, %v2252
        %v2259 = vunpack.c.l.b16 %v2253
        %v2260 = vunpack.c.l.b16 %v2254
        %v2261 = vpack.c.b16 %v2260, %v2259
        %v2266 = vunpack.c.l.b16 %v2072
        %v2267 = vunpack.c.l.b16 %v2073
        %v2268 = vunpack.c.l.b16 %v2074
        %v2269 = vunpack.c.l.b16 %v2075
        %v2270 = vpack.c.b16 %v2267, %v2266
        %v2271 = vpack.c.b16 %v2269, %v2268
        %v2275 = vsel %vm2095, %v2261, 0
        %2277 = vmatpush.bf16.msra.mxu0 0
        %2278 = vmatpush.bf16.msra.mxu0 0
        %2279 = vmatpush.bf16.msra.mxu0 0
        %2280 = vmatpush.bf16.msra.mxu0 0
        %2281 = vmatpush.bf16.msra.mxu0 0
        %2282 = vmatpush.bf16.msra.mxu0 0
        %2283 = vmatpush.bf16.msra.mxu0 %v2271
        %2284 = vmatpush.bf16.msra.mxu0 %v2270
        %2285 = vmatmul.bf16.gmra.mxu0 %v2275
        %v2286 = vpop.f32.mrf.mxu0
        %v2287 = vadd.f32 0.0, %v2286
        %v2288 = vpop.f32.mrf.mxu0
        %v2289 = vadd.f32 0.0, %v2288
        %2290 = vdwg.mxu0
        %v2293 = vunpack.c.l.b16 %v2255
        %v2294 = vunpack.c.l.b16 %v2256
        %v2295 = vpack.c.b16 %v2294, %v2293
        %v2300 = vunpack.c.l.b16 %v2076
        %v2301 = vunpack.c.l.b16 %v2077
        %v2302 = vunpack.c.l.b16 %v2078
        %v2303 = vunpack.c.l.b16 %v2079
        %v2304 = vpack.c.b16 %v2301, %v2300
        %v2305 = vpack.c.b16 %v2303, %v2302
        %v2309 = vsel %vm2095, %v2295, 0
        %2311 = vmatpush.bf16.msra.mxu0 0
        %2312 = vmatpush.bf16.msra.mxu0 0
        %2313 = vmatpush.bf16.msra.mxu0 0
        %2314 = vmatpush.bf16.msra.mxu0 0
        %2315 = vmatpush.bf16.msra.mxu0 0
        %2316 = vmatpush.bf16.msra.mxu0 0
        %2317 = vmatpush.bf16.msra.mxu0 %v2305
        %2318 = vmatpush.bf16.msra.mxu0 %v2304
        %2319 = vmatmul.bf16.gmra.mxu0 %v2309
        %v2320 = vpop.f32.mrf.mxu0
        %v2321 = vadd.f32 0.0, %v2320
        %v2322 = vpop.f32.mrf.mxu0
        %v2323 = vadd.f32 0.0, %v2322
        %2324 = vdwg.mxu0
        %v2325 = vpack.c.bf16 %v2289, %v2287
        %v2326 = vpack.c.bf16 %v2323, %v2321
        %v2327 = vld [vmem:[%s597 + $0xc] sm:$0xf]
        %v2328 = vld [vmem:[%s597 + $0x2c] sm:$0xf]
        %v2329 = vld [vmem:[%s597 + $0x4c] sm:$0xf]
        %v2330 = vld [vmem:[%s597 + $0x6c] sm:$0xf]
        %2331 = vrot.lane.b32.xlu0 %v2084, 96
        %v2332 = vpop.permute.xlu0 %2331
        %2333 = vrot.lane.b32.xlu0 %v2093, 96
        %v2334 = vpop.permute.xlu0 %2333
        %2335 = vrot.lane.b32.xlu0 %v2094, 96
        %v2336 = vpop.permute.xlu0 %2335
        %v2338 = vsel %vm2095, %v2332, 0
        %v2341 = vsel %vm2095, %v2334, 0
        %v2344 = vsel %vm2095, %v2336, 0
        %2346 = vmatpush.bf16.xpose.msra.mxu0 0
        %2347 = vmatpush.bf16.xpose.msra.mxu0 0
        %2348 = vmatpush.bf16.xpose.msra.mxu0 0
        %2349 = vmatpush.bf16.xpose.msra.mxu0 0
        %2350 = vmatpush.bf16.xpose.msra.mxu0 0
        %2351 = vmatpush.bf16.xpose.msra.mxu0 0
        %2352 = vmatpush.bf16.xpose.msra.mxu0 %v2344
        %2353 = vmatpush.bf16.xpose.msra.mxu0 %v2341
        %2354 = vmatmul.bf16.gmra.mxu0 %v2338
        %v2355 = vpop.f32.mrf.mxu0
        %v2356 = vadd.f32 0.0, %v2355
        %v2357 = vpop.f32.mrf.mxu0
        %v2358 = vadd.f32 0.0, %v2357
        %2359 = vdwg.mxu0
        %2360 = vrot.lane.b32.xlu0 %v2123, 96
        %v2361 = vpop.permute.xlu0 %2360
        %2362 = vrot.lane.b32.xlu0 %v2132, 96
        %v2363 = vpop.permute.xlu0 %2362
        %2364 = vrot.lane.b32.xlu0 %v2133, 96
        %v2365 = vpop.permute.xlu0 %2364
        %v2367 = vsel %vm2095, %v2361, 0
        %v2370 = vsel %vm2095, %v2363, 0
        %v2373 = vsel %vm2095, %v2365, 0
        %2375 = vmatpush.bf16.xpose.msra.mxu0 0
        %2376 = vmatpush.bf16.xpose.msra.mxu0 0
        %2377 = vmatpush.bf16.xpose.msra.mxu0 0
        %2378 = vmatpush.bf16.xpose.msra.mxu0 0
        %2379 = vmatpush.bf16.xpose.msra.mxu0 0
        %2380 = vmatpush.bf16.xpose.msra.mxu0 0
        %2381 = vmatpush.bf16.xpose.msra.mxu0 %v2373
        %2382 = vmatpush.bf16.xpose.msra.mxu0 %v2370
        %2383 = vmatmul.bf16.gmra.mxu0 %v2367
        %v2384 = vpop.f32.mrf.mxu0
        %v2385 = vadd.f32 0.0, %v2384
        %v2386 = vpop.f32.mrf.mxu0
        %v2387 = vadd.f32 0.0, %v2386
        %2388 = vdwg.mxu0
        %v2389 = vsel %vm2095, %v2356, -inf
        %2390 = vmax.xlane.f32.xlu0 %v2389
        %v2391 = vpop.xlane.xlu0 %2390
        %v2392 = vsel %vm2095, %v2358, -inf
        %2393 = vmax.xlane.f32.xlu0 %v2392
        %v2394 = vpop.xlane.xlu0 %2393
        %v2395 = vsel %vm2095, %v2385, -inf
        %2396 = vmax.xlane.f32.xlu0 %v2395
        %v2397 = vpop.xlane.xlu0 %2396
        %v2398 = vsel %vm2095, %v2387, -inf
        %2399 = vmax.xlane.f32.xlu0 %v2398
        %v2400 = vpop.xlane.xlu0 %2399
        %v2401 = vsub.f32 %v2356, %v2391
        %v2402 = vsub.f32 %v2358, %v2394
        %v2403 = vsub.f32 %v2385, %v2397
        %v2404 = vsub.f32 %v2387, %v2400
        %v2405 = vmul.f32 %v2401, 1.442695
        %v2406 = vpow.pop %v2405
        %v2407 = vmul.f32 %v2402, 1.442695
        %v2408 = vpow.pop %v2407
        %v2409 = vmul.f32 %v2403, 1.442695
        %v2410 = vpow.pop %v2409
        %v2411 = vmul.f32 %v2404, 1.442695
        %v2412 = vpow.pop %v2411
        %v2413 = vsel %vm2095, %v2406, 0.0
        %2414 = vadd.xlane.f32.xlu0 %v2413
        %v2415 = vpop.xlane.xlu0 %2414
        %v2416 = vsel %vm2095, %v2408, 0.0
        %2417 = vadd.xlane.f32.xlu0 %v2416
        %v2418 = vpop.xlane.xlu0 %2417
        %v2419 = vsel %vm2095, %v2410, 0.0
        %2420 = vadd.xlane.f32.xlu0 %v2419
        %v2421 = vpop.xlane.xlu0 %2420
        %v2422 = vsel %vm2095, %v2412, 0.0
        %2423 = vadd.xlane.f32.xlu0 %v2422
        %v2424 = vpop.xlane.xlu0 %2423
        %v2425 = vrcp.pop %v2415
        %v2426 = vmul.f32 %v2415, %v2425
        %v2427 = vsub.f32 1.0, %v2426
        %v2428 = vmul.f32 %v2425, %v2427
        %v2429 = vadd.f32 %v2425, %v2428
        %vm2430 = vweird.f32 %v2415
        %vm2431 = vweird.f32 %v2425
        %vm2432 = vmor %vm2430, %vm2431
        %v2433 = vsel %vm2432, %v2425, %v2429
        %v2434 = vand.u32 2147483647, %v2415
        %vm2435 = vcmp.eq.f32.partialorder %v2434, 8.507059e+37
        %v2436 = vand.u32 %v2415, 2147483648
        %v2437 = vor.u32 1.1754944e-38, %v2436
        %v2438 = vsel %vm2435, %v2437, %v2433
        %v2439 = vmul.f32 %v2406, %v2438
        %v2440 = vrcp.pop %v2418
        %v2441 = vmul.f32 %v2418, %v2440
        %v2442 = vsub.f32 1.0, %v2441
        %v2443 = vmul.f32 %v2440, %v2442
        %v2444 = vadd.f32 %v2440, %v2443
        %vm2445 = vweird.f32 %v2418
        %vm2446 = vweird.f32 %v2440
        %vm2447 = vmor %vm2445, %vm2446
        %v2448 = vsel %vm2447, %v2440, %v2444
        %v2449 = vand.u32 2147483647, %v2418
        %vm2450 = vcmp.eq.f32.partialorder %v2449, 8.507059e+37
        %v2451 = vand.u32 %v2418, 2147483648
        %v2452 = vor.u32 1.1754944e-38, %v2451
        %v2453 = vsel %vm2450, %v2452, %v2448
        %v2454 = vmul.f32 %v2408, %v2453
        %v2455 = vrcp.pop %v2421
        %v2456 = vmul.f32 %v2421, %v2455
        %v2457 = vsub.f32 1.0, %v2456
        %v2458 = vmul.f32 %v2455, %v2457
        %v2459 = vadd.f32 %v2455, %v2458
        %vm2460 = vweird.f32 %v2421
        %vm2461 = vweird.f32 %v2455
        %vm2462 = vmor %vm2460, %vm2461
        %v2463 = vsel %vm2462, %v2455, %v2459
        %v2464 = vand.u32 2147483647, %v2421
        %vm2465 = vcmp.eq.f32.partialorder %v2464, 8.507059e+37
        %v2466 = vand.u32 %v2421, 2147483648
        %v2467 = vor.u32 1.1754944e-38, %v2466
        %v2468 = vsel %vm2465, %v2467, %v2463
        %v2469 = vmul.f32 %v2410, %v2468
        %v2470 = vrcp.pop %v2424
        %v2471 = vmul.f32 %v2424, %v2470
        %v2472 = vsub.f32 1.0, %v2471
        %v2473 = vmul.f32 %v2470, %v2472
        %v2474 = vadd.f32 %v2470, %v2473
        %vm2475 = vweird.f32 %v2424
        %vm2476 = vweird.f32 %v2470
        %vm2477 = vmor %vm2475, %vm2476
        %v2478 = vsel %vm2477, %v2470, %v2474
        %v2479 = vand.u32 2147483647, %v2424
        %vm2480 = vcmp.eq.f32.partialorder %v2479, 8.507059e+37
        %v2481 = vand.u32 %v2424, 2147483648
        %v2482 = vor.u32 1.1754944e-38, %v2481
        %v2483 = vsel %vm2480, %v2482, %v2478
        %v2484 = vmul.f32 %v2412, %v2483
        %v2485 = vpack.c.bf16 %v2439, %v2439
        %v2486 = vpack.c.bf16 %v2454, %v2454
        %v2487 = vpack.c.bf16 %v2469, %v2469
        %v2488 = vpack.c.bf16 %v2484, %v2484
        %v2491 = vunpack.c.l.b16 %v2485
        %v2492 = vunpack.c.l.b16 %v2486
        %v2493 = vpack.c.b16 %v2492, %v2491
        %2494 = vrot.lane.b32.xlu0 %v2270, 96
        %v2495 = vpop.permute.xlu0 %2494
        %2496 = vrot.lane.b32.xlu0 %v2271, 96
        %v2497 = vpop.permute.xlu0 %2496
        %v2501 = vsel %vm2095, %v2493, 0
        %2503 = vmatpush.bf16.msra.mxu0 0
        %2504 = vmatpush.bf16.msra.mxu0 0
        %2505 = vmatpush.bf16.msra.mxu0 0
        %2506 = vmatpush.bf16.msra.mxu0 0
        %2507 = vmatpush.bf16.msra.mxu0 0
        %2508 = vmatpush.bf16.msra.mxu0 0
        %2509 = vmatpush.bf16.msra.mxu0 %v2497
        %2510 = vmatpush.bf16.msra.mxu0 %v2495
        %2511 = vmatmul.bf16.gmra.mxu0 %v2501
        %v2512 = vpop.f32.mrf.mxu0
        %v2513 = vadd.f32 0.0, %v2512
        %v2514 = vpop.f32.mrf.mxu0
        %v2515 = vadd.f32 0.0, %v2514
        %2516 = vdwg.mxu0
        %v2519 = vunpack.c.l.b16 %v2487
        %v2520 = vunpack.c.l.b16 %v2488
        %v2521 = vpack.c.b16 %v2520, %v2519
        %2522 = vrot.lane.b32.xlu0 %v2304, 96
        %v2523 = vpop.permute.xlu0 %2522
        %2524 = vrot.lane.b32.xlu0 %v2305, 96
        %v2525 = vpop.permute.xlu0 %2524
        %v2529 = vsel %vm2095, %v2521, 0
        %2531 = vmatpush.bf16.msra.mxu0 0
        %2532 = vmatpush.bf16.msra.mxu0 0
        %2533 = vmatpush.bf16.msra.mxu0 0
        %2534 = vmatpush.bf16.msra.mxu0 0
        %2535 = vmatpush.bf16.msra.mxu0 0
        %2536 = vmatpush.bf16.msra.mxu0 0
        %2537 = vmatpush.bf16.msra.mxu0 %v2525
        %2538 = vmatpush.bf16.msra.mxu0 %v2523
        %2539 = vmatmul.bf16.gmra.mxu0 %v2529
        %v2540 = vpop.f32.mrf.mxu0
        %v2541 = vadd.f32 0.0, %v2540
        %v2542 = vpop.f32.mrf.mxu0
        %v2543 = vadd.f32 0.0, %v2542
        %2544 = vdwg.mxu0
        %v2545 = vpack.c.bf16 %v2515, %v2513
        %v2546 = vpack.c.bf16 %v2543, %v2541
        %v2547 = vld [vmem:[%s597 + $0x8c] sm:$0xf]
        %v2548 = vld [vmem:[%s597 + $0xac] sm:$0xf]
        %v2549 = vld [vmem:[%s597 + $0xcc] sm:$0xf]
        %v2550 = vld [vmem:[%s597 + $0xec] sm:$0xf]
        %v2555 = vunpack.c.l.b16 %v2547
        %v2556 = vunpack.c.l.b16 %v2548
        %v2557 = vunpack.c.l.b16 %v2549
        %v2558 = vunpack.c.l.b16 %v2550
        %v2559 = vpack.c.b16 %v2556, %v2555
        %v2560 = vpack.c.b16 %v2558, %v2557
        %v2564 = vsel %vm2095, %v2545, 0
        %v2567 = vsel %vm2095, %v2546, 0
        %2569 = vmatpush.bf16.msra.mxu0 0
        %2570 = vmatpush.bf16.msra.mxu0 0
        %2571 = vmatpush.bf16.msra.mxu0 0
        %2572 = vmatpush.bf16.msra.mxu0 0
        %2573 = vmatpush.bf16.msra.mxu0 0
        %2574 = vmatpush.bf16.msra.mxu0 0
        %2575 = vmatpush.bf16.msra.mxu0 %v2560
        %2576 = vmatpush.bf16.msra.mxu0 %v2559
        %2577 = vmatmul.bf16.gmra.mxu0 %v2564
        %v2578 = vpop.f32.mrf.mxu0
        %v2579 = vadd.f32 0.0, %v2578
        %v2580 = vpop.f32.mrf.mxu0
        %v2581 = vadd.f32 0.0, %v2580
        %2582 = vmatmul.bf16.gmra.mxu0 %v2567
        %v2583 = vpop.f32.mrf.mxu0
        %v2584 = vadd.f32 0.0, %v2583
        %v2585 = vpop.f32.mrf.mxu0
        %v2586 = vadd.f32 0.0, %v2585
        %2587 = vdwg.mxu0
        %v2592 = vunpack.c.l.b16 %v2327
        %v2593 = vunpack.c.l.b16 %v2328
        %v2594 = vunpack.c.l.b16 %v2329
        %v2595 = vunpack.c.l.b16 %v2330
        %v2596 = vpack.c.b16 %v2593, %v2592
        %v2597 = vpack.c.b16 %v2595, %v2594
        %v2601 = vsel %vm2095, %v2325, 0
        %v2604 = vsel %vm2095, %v2326, 0
        %2606 = vmatpush.bf16.msra.mxu0 0
        %2607 = vmatpush.bf16.msra.mxu0 0
        %2608 = vmatpush.bf16.msra.mxu0 0
        %2609 = vmatpush.bf16.msra.mxu0 0
        %2610 = vmatpush.bf16.msra.mxu0 0
        %2611 = vmatpush.bf16.msra.mxu0 0
        %2612 = vmatpush.bf16.msra.mxu0 %v2597
        %2613 = vmatpush.bf16.msra.mxu0 %v2596
        %2614 = vmatmul.bf16.gmra.mxu0 %v2601
        %v2615 = vpop.f32.mrf.mxu0
        %v2616 = vadd.f32 %v2579, %v2615
        %v2617 = vpop.f32.mrf.mxu0
        %v2618 = vadd.f32 %v2581, %v2617
        %2619 = vmatmul.bf16.gmra.mxu0 %v2604
        %v2620 = vpop.f32.mrf.mxu0
        %v2621 = vadd.f32 %v2584, %v2620
        %v2622 = vpop.f32.mrf.mxu0
        %v2623 = vadd.f32 %v2586, %v2622
        %2624 = vdwg.mxu0
        %2625 = vrot.lane.b32.xlu0 %v2084, 64
        %v2626 = vpop.permute.xlu0 %2625
        %2627 = vrot.lane.b32.xlu0 %v2093, 64
        %v2628 = vpop.permute.xlu0 %2627
        %2629 = vrot.lane.b32.xlu0 %v2094, 64
        %v2630 = vpop.permute.xlu0 %2629
        %v2632 = vsel %vm2095, %v2626, 0
        %v2635 = vsel %vm2095, %v2628, 0
        %v2638 = vsel %vm2095, %v2630, 0
        %2640 = vmatpush.bf16.xpose.msra.mxu0 0
        %2641 = vmatpush.bf16.xpose.msra.mxu0 0
        %2642 = vmatpush.bf16.xpose.msra.mxu0 0
        %2643 = vmatpush.bf16.xpose.msra.mxu0 0
        %2644 = vmatpush.bf16.xpose.msra.mxu0 0
        %2645 = vmatpush.bf16.xpose.msra.mxu0 0
        %2646 = vmatpush.bf16.xpose.msra.mxu0 %v2638
        %2647 = vmatpush.bf16.xpose.msra.mxu0 %v2635
        %2648 = vmatmul.bf16.gmra.mxu0 %v2632
        %v2649 = vpop.f32.mrf.mxu0
        %v2650 = vadd.f32 0.0, %v2649
        %v2651 = vpop.f32.mrf.mxu0
        %v2652 = vadd.f32 0.0, %v2651
        %2653 = vdwg.mxu0
        %2654 = vrot.lane.b32.xlu0 %v2123, 64
        %v2655 = vpop.permute.xlu0 %2654
        %2656 = vrot.lane.b32.xlu0 %v2132, 64
        %v2657 = vpop.permute.xlu0 %2656
        %2658 = vrot.lane.b32.xlu0 %v2133, 64
        %v2659 = vpop.permute.xlu0 %2658
        %v2661 = vsel %vm2095, %v2655, 0
        %v2664 = vsel %vm2095, %v2657, 0
        %v2667 = vsel %vm2095, %v2659, 0
        %2669 = vmatpush.bf16.xpose.msra.mxu0 0
        %2670 = vmatpush.bf16.xpose.msra.mxu0 0
        %2671 = vmatpush.bf16.xpose.msra.mxu0 0
        %2672 = vmatpush.bf16.xpose.msra.mxu0 0
        %2673 = vmatpush.bf16.xpose.msra.mxu0 0
        %2674 = vmatpush.bf16.xpose.msra.mxu0 0
        %2675 = vmatpush.bf16.xpose.msra.mxu0 %v2667
        %2676 = vmatpush.bf16.xpose.msra.mxu0 %v2664
        %2677 = vmatmul.bf16.gmra.mxu0 %v2661
        %v2678 = vpop.f32.mrf.mxu0
        %v2679 = vadd.f32 0.0, %v2678
        %v2680 = vpop.f32.mrf.mxu0
        %v2681 = vadd.f32 0.0, %v2680
        %2682 = vdwg.mxu0
        %v2683 = vsel %vm2095, %v2650, -inf
        %2684 = vmax.xlane.f32.xlu0 %v2683
        %v2685 = vpop.xlane.xlu0 %2684
        %v2686 = vsel %vm2095, %v2652, -inf
        %2687 = vmax.xlane.f32.xlu0 %v2686
        %v2688 = vpop.xlane.xlu0 %2687
        %v2689 = vsel %vm2095, %v2679, -inf
        %2690 = vmax.xlane.f32.xlu0 %v2689
        %v2691 = vpop.xlane.xlu0 %2690
        %v2692 = vsel %vm2095, %v2681, -inf
        %2693 = vmax.xlane.f32.xlu0 %v2692
        %v2694 = vpop.xlane.xlu0 %2693
        %v2695 = vsub.f32 %v2650, %v2685
        %v2696 = vsub.f32 %v2652, %v2688
        %v2697 = vsub.f32 %v2679, %v2691
        %v2698 = vsub.f32 %v2681, %v2694
        %v2699 = vmul.f32 %v2695, 1.442695
        %v2700 = vpow.pop %v2699
        %v2701 = vmul.f32 %v2696, 1.442695
        %v2702 = vpow.pop %v2701
        %v2703 = vmul.f32 %v2697, 1.442695
        %v2704 = vpow.pop %v2703
        %v2705 = vmul.f32 %v2698, 1.442695
        %v2706 = vpow.pop %v2705
        %v2707 = vsel %vm2095, %v2700, 0.0
        %2708 = vadd.xlane.f32.xlu0 %v2707
        %v2709 = vpop.xlane.xlu0 %2708
        %v2710 = vsel %vm2095, %v2702, 0.0
        %2711 = vadd.xlane.f32.xlu0 %v2710
        %v2712 = vpop.xlane.xlu0 %2711
        %v2713 = vsel %vm2095, %v2704, 0.0
        %2714 = vadd.xlane.f32.xlu0 %v2713
        %v2715 = vpop.xlane.xlu0 %2714
        %v2716 = vsel %vm2095, %v2706, 0.0
        %2717 = vadd.xlane.f32.xlu0 %v2716
        %v2718 = vpop.xlane.xlu0 %2717
        %v2719 = vrcp.pop %v2709
        %v2720 = vmul.f32 %v2709, %v2719
        %v2721 = vsub.f32 1.0, %v2720
        %v2722 = vmul.f32 %v2719, %v2721
        %v2723 = vadd.f32 %v2719, %v2722
        %vm2724 = vweird.f32 %v2709
        %vm2725 = vweird.f32 %v2719
        %vm2726 = vmor %vm2724, %vm2725
        %v2727 = vsel %vm2726, %v2719, %v2723
        %v2728 = vand.u32 2147483647, %v2709
        %vm2729 = vcmp.eq.f32.partialorder %v2728, 8.507059e+37
        %v2730 = vand.u32 %v2709, 2147483648
        %v2731 = vor.u32 1.1754944e-38, %v2730
        %v2732 = vsel %vm2729, %v2731, %v2727
        %v2733 = vmul.f32 %v2700, %v2732
        %v2734 = vrcp.pop %v2712
        %v2735 = vmul.f32 %v2712, %v2734
        %v2736 = vsub.f32 1.0, %v2735
        %v2737 = vmul.f32 %v2734, %v2736
        %v2738 = vadd.f32 %v2734, %v2737
        %vm2739 = vweird.f32 %v2712
        %vm2740 = vweird.f32 %v2734
        %vm2741 = vmor %vm2739, %vm2740
        %v2742 = vsel %vm2741, %v2734, %v2738
        %v2743 = vand.u32 2147483647, %v2712
        %vm2744 = vcmp.eq.f32.partialorder %v2743, 8.507059e+37
        %v2745 = vand.u32 %v2712, 2147483648
        %v2746 = vor.u32 1.1754944e-38, %v2745
        %v2747 = vsel %vm2744, %v2746, %v2742
        %v2748 = vmul.f32 %v2702, %v2747
        %v2749 = vrcp.pop %v2715
        %v2750 = vmul.f32 %v2715, %v2749
        %v2751 = vsub.f32 1.0, %v2750
        %v2752 = vmul.f32 %v2749, %v2751
        %v2753 = vadd.f32 %v2749, %v2752
        %vm2754 = vweird.f32 %v2715
        %vm2755 = vweird.f32 %v2749
        %vm2756 = vmor %vm2754, %vm2755
        %v2757 = vsel %vm2756, %v2749, %v2753
        %v2758 = vand.u32 2147483647, %v2715
        %vm2759 = vcmp.eq.f32.partialorder %v2758, 8.507059e+37
        %v2760 = vand.u32 %v2715, 2147483648
        %v2761 = vor.u32 1.1754944e-38, %v2760
        %v2762 = vsel %vm2759, %v2761, %v2757
        %v2763 = vmul.f32 %v2704, %v2762
        %v2764 = vrcp.pop %v2718
        %v2765 = vmul.f32 %v2718, %v2764
        %v2766 = vsub.f32 1.0, %v2765
        %v2767 = vmul.f32 %v2764, %v2766
        %v2768 = vadd.f32 %v2764, %v2767
        %vm2769 = vweird.f32 %v2718
        %vm2770 = vweird.f32 %v2764
        %vm2771 = vmor %vm2769, %vm2770
        %v2772 = vsel %vm2771, %v2764, %v2768
        %v2773 = vand.u32 2147483647, %v2718
        %vm2774 = vcmp.eq.f32.partialorder %v2773, 8.507059e+37
        %v2775 = vand.u32 %v2718, 2147483648
        %v2776 = vor.u32 1.1754944e-38, %v2775
        %v2777 = vsel %vm2774, %v2776, %v2772
        %v2778 = vmul.f32 %v2706, %v2777
        %v2779 = vpack.c.bf16 %v2733, %v2733
        %v2780 = vpack.c.bf16 %v2748, %v2748
        %v2781 = vpack.c.bf16 %v2763, %v2763
        %v2782 = vpack.c.bf16 %v2778, %v2778
        %v2785 = vunpack.c.l.b16 %v2779
        %v2786 = vunpack.c.l.b16 %v2780
        %v2787 = vpack.c.b16 %v2786, %v2785
        %2788 = vrot.lane.b32.xlu0 %v2270, 64
        %v2789 = vpop.permute.xlu0 %2788
        %2790 = vrot.lane.b32.xlu0 %v2271, 64
        %v2791 = vpop.permute.xlu0 %2790
        %v2795 = vsel %vm2095, %v2787, 0
        %2797 = vmatpush.bf16.msra.mxu0 0
        %2798 = vmatpush.bf16.msra.mxu0 0
        %2799 = vmatpush.bf16.msra.mxu0 0
        %2800 = vmatpush.bf16.msra.mxu0 0
        %2801 = vmatpush.bf16.msra.mxu0 0
        %2802 = vmatpush.bf16.msra.mxu0 0
        %2803 = vmatpush.bf16.msra.mxu0 %v2791
        %2804 = vmatpush.bf16.msra.mxu0 %v2789
        %2805 = vmatmul.bf16.gmra.mxu0 %v2795
        %v2806 = vpop.f32.mrf.mxu0
        %v2807 = vadd.f32 0.0, %v2806
        %v2808 = vpop.f32.mrf.mxu0
        %v2809 = vadd.f32 0.0, %v2808
        %2810 = vdwg.mxu0
        %v2813 = vunpack.c.l.b16 %v2781
        %v2814 = vunpack.c.l.b16 %v2782
        %v2815 = vpack.c.b16 %v2814, %v2813
        %2816 = vrot.lane.b32.xlu0 %v2304, 64
        %v2817 = vpop.permute.xlu0 %2816
        %2818 = vrot.lane.b32.xlu0 %v2305, 64
        %v2819 = vpop.permute.xlu0 %2818
        %v2823 = vsel %vm2095, %v2815, 0
        %2825 = vmatpush.bf16.msra.mxu0 0
        %2826 = vmatpush.bf16.msra.mxu0 0
        %2827 = vmatpush.bf16.msra.mxu0 0
        %2828 = vmatpush.bf16.msra.mxu0 0
        %2829 = vmatpush.bf16.msra.mxu0 0
        %2830 = vmatpush.bf16.msra.mxu0 0
        %2831 = vmatpush.bf16.msra.mxu0 %v2819
        %2832 = vmatpush.bf16.msra.mxu0 %v2817
        %2833 = vmatmul.bf16.gmra.mxu0 %v2823
        %v2834 = vpop.f32.mrf.mxu0
        %v2835 = vadd.f32 0.0, %v2834
        %v2836 = vpop.f32.mrf.mxu0
        %v2837 = vadd.f32 0.0, %v2836
        %2838 = vdwg.mxu0
        %v2839 = vpack.c.bf16 %v2809, %v2807
        %v2840 = vpack.c.bf16 %v2837, %v2835
        %v2841 = vld [vmem:[%s597 + $0x10c] sm:$0xf]
        %v2842 = vld [vmem:[%s597 + $0x12c] sm:$0xf]
        %v2843 = vld [vmem:[%s597 + $0x14c] sm:$0xf]
        %v2844 = vld [vmem:[%s597 + $0x16c] sm:$0xf]
        %v2849 = vunpack.c.l.b16 %v2841
        %v2850 = vunpack.c.l.b16 %v2842
        %v2851 = vunpack.c.l.b16 %v2843
        %v2852 = vunpack.c.l.b16 %v2844
        %v2853 = vpack.c.b16 %v2850, %v2849
        %v2854 = vpack.c.b16 %v2852, %v2851
        %v2858 = vsel %vm2095, %v2839, 0
        %v2861 = vsel %vm2095, %v2840, 0
        %2863 = vmatpush.bf16.msra.mxu0 0
        %2864 = vmatpush.bf16.msra.mxu0 0
        %2865 = vmatpush.bf16.msra.mxu0 0
        %2866 = vmatpush.bf16.msra.mxu0 0
        %2867 = vmatpush.bf16.msra.mxu0 0
        %2868 = vmatpush.bf16.msra.mxu0 0
        %2869 = vmatpush.bf16.msra.mxu0 %v2854
        %2870 = vmatpush.bf16.msra.mxu0 %v2853
        %2871 = vmatmul.bf16.gmra.mxu0 %v2858
        %v2872 = vpop.f32.mrf.mxu0
        %v2873 = vadd.f32 0.0, %v2872
        %v2874 = vpop.f32.mrf.mxu0
        %v2875 = vadd.f32 0.0, %v2874
        %2876 = vmatmul.bf16.gmra.mxu0 %v2861
        %v2877 = vpop.f32.mrf.mxu0
        %v2878 = vadd.f32 0.0, %v2877
        %v2879 = vpop.f32.mrf.mxu0
        %v2880 = vadd.f32 0.0, %v2879
        %2881 = vdwg.mxu0
        %v2882 = vadd.f32 %v2616, %v2873
        %v2883 = vadd.f32 %v2618, %v2875
        %v2884 = vadd.f32 %v2621, %v2878
        %v2885 = vadd.f32 %v2623, %v2880
        %2886 = vrot.lane.b32.xlu0 %v2084, 32
        %v2887 = vpop.permute.xlu0 %2886
        %2888 = vrot.lane.b32.xlu0 %v2093, 32
        %v2889 = vpop.permute.xlu0 %2888
        %2890 = vrot.lane.b32.xlu0 %v2094, 32
        %v2891 = vpop.permute.xlu0 %2890
        %v2893 = vsel %vm2095, %v2887, 0
        %v2896 = vsel %vm2095, %v2889, 0
        %v2899 = vsel %vm2095, %v2891, 0
        %2901 = vmatpush.bf16.xpose.msra.mxu0 0
        %2902 = vmatpush.bf16.xpose.msra.mxu0 0
        %2903 = vmatpush.bf16.xpose.msra.mxu0 0
        %2904 = vmatpush.bf16.xpose.msra.mxu0 0
        %2905 = vmatpush.bf16.xpose.msra.mxu0 0
        %2906 = vmatpush.bf16.xpose.msra.mxu0 0
        %2907 = vmatpush.bf16.xpose.msra.mxu0 %v2899
        %2908 = vmatpush.bf16.xpose.msra.mxu0 %v2896
        %2909 = vmatmul.bf16.gmra.mxu0 %v2893
        %v2910 = vpop.f32.mrf.mxu0
        %v2911 = vadd.f32 0.0, %v2910
        %v2912 = vpop.f32.mrf.mxu0
        %v2913 = vadd.f32 0.0, %v2912
        %2914 = vdwg.mxu0
        %2915 = vrot.lane.b32.xlu0 %v2123, 32
        %v2916 = vpop.permute.xlu0 %2915
        %2917 = vrot.lane.b32.xlu0 %v2132, 32
        %v2918 = vpop.permute.xlu0 %2917
        %2919 = vrot.lane.b32.xlu0 %v2133, 32
        %v2920 = vpop.permute.xlu0 %2919
        %v2922 = vsel %vm2095, %v2916, 0
        %v2925 = vsel %vm2095, %v2918, 0
        %v2928 = vsel %vm2095, %v2920, 0
        %2930 = vmatpush.bf16.xpose.msra.mxu0 0
        %2931 = vmatpush.bf16.xpose.msra.mxu0 0
        %2932 = vmatpush.bf16.xpose.msra.mxu0 0
        %2933 = vmatpush.bf16.xpose.msra.mxu0 0
        %2934 = vmatpush.bf16.xpose.msra.mxu0 0
        %2935 = vmatpush.bf16.xpose.msra.mxu0 0
        %2936 = vmatpush.bf16.xpose.msra.mxu0 %v2928
        %2937 = vmatpush.bf16.xpose.msra.mxu0 %v2925
        %2938 = vmatmul.bf16.gmra.mxu0 %v2922
        %v2939 = vpop.f32.mrf.mxu0
        %v2940 = vadd.f32 0.0, %v2939
        %v2941 = vpop.f32.mrf.mxu0
        %v2942 = vadd.f32 0.0, %v2941
        %2943 = vdwg.mxu0
        %v2944 = vsel %vm2095, %v2911, -inf
        %2945 = vmax.xlane.f32.xlu0 %v2944
        %v2946 = vpop.xlane.xlu0 %2945
        %v2947 = vsel %vm2095, %v2913, -inf
        %2948 = vmax.xlane.f32.xlu0 %v2947
        %v2949 = vpop.xlane.xlu0 %2948
        %v2950 = vsel %vm2095, %v2940, -inf
        %2951 = vmax.xlane.f32.xlu0 %v2950
        %v2952 = vpop.xlane.xlu0 %2951
        %v2953 = vsel %vm2095, %v2942, -inf
        %2954 = vmax.xlane.f32.xlu0 %v2953
        %v2955 = vpop.xlane.xlu0 %2954
        %v2956 = vsub.f32 %v2911, %v2946
        %v2957 = vsub.f32 %v2913, %v2949
        %v2958 = vsub.f32 %v2940, %v2952
        %v2959 = vsub.f32 %v2942, %v2955
        %v2960 = vmul.f32 %v2956, 1.442695
        %v2961 = vpow.pop %v2960
        %v2962 = vmul.f32 %v2957, 1.442695
        %v2963 = vpow.pop %v2962
        %v2964 = vmul.f32 %v2958, 1.442695
        %v2965 = vpow.pop %v2964
        %v2966 = vmul.f32 %v2959, 1.442695
        %v2967 = vpow.pop %v2966
        %v2968 = vsel %vm2095, %v2961, 0.0
        %2969 = vadd.xlane.f32.xlu0 %v2968
        %v2970 = vpop.xlane.xlu0 %2969
        %v2971 = vsel %vm2095, %v2963, 0.0
        %2972 = vadd.xlane.f32.xlu0 %v2971
        %v2973 = vpop.xlane.xlu0 %2972
        %v2974 = vsel %vm2095, %v2965, 0.0
        %2975 = vadd.xlane.f32.xlu0 %v2974
        %v2976 = vpop.xlane.xlu0 %2975
        %v2977 = vsel %vm2095, %v2967, 0.0
        %2978 = vadd.xlane.f32.xlu0 %v2977
        %v2979 = vpop.xlane.xlu0 %2978
        %v2980 = vrcp.pop %v2970
        %v2981 = vmul.f32 %v2970, %v2980
        %v2982 = vsub.f32 1.0, %v2981
        %v2983 = vmul.f32 %v2980, %v2982
        %v2984 = vadd.f32 %v2980, %v2983
        %vm2985 = vweird.f32 %v2970
        %vm2986 = vweird.f32 %v2980
        %vm2987 = vmor %vm2985, %vm2986
        %v2988 = vsel %vm2987, %v2980, %v2984
        %v2989 = vand.u32 2147483647, %v2970
        %vm2990 = vcmp.eq.f32.partialorder %v2989, 8.507059e+37
        %v2991 = vand.u32 %v2970, 2147483648
        %v2992 = vor.u32 1.1754944e-38, %v2991
        %v2993 = vsel %vm2990, %v2992, %v2988
        %v2994 = vmul.f32 %v2961, %v2993
        %v2995 = vrcp.pop %v2973
        %v2996 = vmul.f32 %v2973, %v2995
        %v2997 = vsub.f32 1.0, %v2996
        %v2998 = vmul.f32 %v2995, %v2997
        %v2999 = vadd.f32 %v2995, %v2998
        %vm3000 = vweird.f32 %v2973
        %vm3001 = vweird.f32 %v2995
        %vm3002 = vmor %vm3000, %vm3001
        %v3003 = vsel %vm3002, %v2995, %v2999
        %v3004 = vand.u32 2147483647, %v2973
        %vm3005 = vcmp.eq.f32.partialorder %v3004, 8.507059e+37
        %v3006 = vand.u32 %v2973, 2147483648
        %v3007 = vor.u32 1.1754944e-38, %v3006
        %v3008 = vsel %vm3005, %v3007, %v3003
        %v3009 = vmul.f32 %v2963, %v3008
        %v3010 = vrcp.pop %v2976
        %v3011 = vmul.f32 %v2976, %v3010
        %v3012 = vsub.f32 1.0, %v3011
        %v3013 = vmul.f32 %v3010, %v3012
        %v3014 = vadd.f32 %v3010, %v3013
        %vm3015 = vweird.f32 %v2976
        %vm3016 = vweird.f32 %v3010
        %vm3017 = vmor %vm3015, %vm3016
        %v3018 = vsel %vm3017, %v3010, %v3014
        %v3019 = vand.u32 2147483647, %v2976
        %vm3020 = vcmp.eq.f32.partialorder %v3019, 8.507059e+37
        %v3021 = vand.u32 %v2976, 2147483648
        %v3022 = vor.u32 1.1754944e-38, %v3021
        %v3023 = vsel %vm3020, %v3022, %v3018
        %v3024 = vmul.f32 %v2965, %v3023
        %v3025 = vrcp.pop %v2979
        %v3026 = vmul.f32 %v2979, %v3025
        %v3027 = vsub.f32 1.0, %v3026
        %v3028 = vmul.f32 %v3025, %v3027
        %v3029 = vadd.f32 %v3025, %v3028
        %vm3030 = vweird.f32 %v2979
        %vm3031 = vweird.f32 %v3025
        %vm3032 = vmor %vm3030, %vm3031
        %v3033 = vsel %vm3032, %v3025, %v3029
        %v3034 = vand.u32 2147483647, %v2979
        %vm3035 = vcmp.eq.f32.partialorder %v3034, 8.507059e+37
        %v3036 = vand.u32 %v2979, 2147483648
        %v3037 = vor.u32 1.1754944e-38, %v3036
        %v3038 = vsel %vm3035, %v3037, %v3033
        %v3039 = vmul.f32 %v2967, %v3038
        %v3040 = vpack.c.bf16 %v2994, %v2994
        %v3041 = vpack.c.bf16 %v3009, %v3009
        %v3042 = vpack.c.bf16 %v3024, %v3024
        %v3043 = vpack.c.bf16 %v3039, %v3039
        %v3046 = vunpack.c.l.b16 %v3040
        %v3047 = vunpack.c.l.b16 %v3041
        %v3048 = vpack.c.b16 %v3047, %v3046
        %3049 = vrot.lane.b32.xlu0 %v2270, 32
        %v3050 = vpop.permute.xlu0 %3049
        %3051 = vrot.lane.b32.xlu0 %v2271, 32
        %v3052 = vpop.permute.xlu0 %3051
        %v3056 = vsel %vm2095, %v3048, 0
        %3058 = vmatpush.bf16.msra.mxu0 0
        %3059 = vmatpush.bf16.msra.mxu0 0
        %3060 = vmatpush.bf16.msra.mxu0 0
        %3061 = vmatpush.bf16.msra.mxu0 0
        %3062 = vmatpush.bf16.msra.mxu0 0
        %3063 = vmatpush.bf16.msra.mxu0 0
        %3064 = vmatpush.bf16.msra.mxu0 %v3052
        %3065 = vmatpush.bf16.msra.mxu0 %v3050
        %3066 = vmatmul.bf16.gmra.mxu0 %v3056
        %v3067 = vpop.f32.mrf.mxu0
        %v3068 = vadd.f32 0.0, %v3067
        %v3069 = vpop.f32.mrf.mxu0
        %v3070 = vadd.f32 0.0, %v3069
        %3071 = vdwg.mxu0
        %v3074 = vunpack.c.l.b16 %v3042
        %v3075 = vunpack.c.l.b16 %v3043
        %v3076 = vpack.c.b16 %v3075, %v3074
        %3077 = vrot.lane.b32.xlu0 %v2304, 32
        %v3078 = vpop.permute.xlu0 %3077
        %3079 = vrot.lane.b32.xlu0 %v2305, 32
        %v3080 = vpop.permute.xlu0 %3079
        %v3084 = vsel %vm2095, %v3076, 0
        %3086 = vmatpush.bf16.msra.mxu0 0
        %3087 = vmatpush.bf16.msra.mxu0 0
        %3088 = vmatpush.bf16.msra.mxu0 0
        %3089 = vmatpush.bf16.msra.mxu0 0
        %3090 = vmatpush.bf16.msra.mxu0 0
        %3091 = vmatpush.bf16.msra.mxu0 0
        %3092 = vmatpush.bf16.msra.mxu0 %v3080
        %3093 = vmatpush.bf16.msra.mxu0 %v3078
        %3094 = vmatmul.bf16.gmra.mxu0 %v3084
        %v3095 = vpop.f32.mrf.mxu0
        %v3096 = vadd.f32 0.0, %v3095
        %v3097 = vpop.f32.mrf.mxu0
        %v3098 = vadd.f32 0.0, %v3097
        %3099 = vdwg.mxu0
        %v3100 = vpack.c.bf16 %v3070, %v3068
        %v3101 = vpack.c.bf16 %v3098, %v3096
        %v3102 = vld [vmem:[%s597 + $0x18c] sm:$0xf]
        %v3103 = vld [vmem:[%s597 + $0x1ac] sm:$0xf]
        %v3104 = vld [vmem:[%s597 + $0x1cc] sm:$0xf]
        %v3105 = vld [vmem:[%s597 + $0x1ec] sm:$0xf]
        %v3110 = vunpack.c.l.b16 %v3102
        %v3111 = vunpack.c.l.b16 %v3103
        %v3112 = vunpack.c.l.b16 %v3104
        %v3113 = vunpack.c.l.b16 %v3105
        %v3114 = vpack.c.b16 %v3111, %v3110
        %v3115 = vpack.c.b16 %v3113, %v3112
        %v3119 = vsel %vm2095, %v3100, 0
        %v3122 = vsel %vm2095, %v3101, 0
        %3124 = vmatpush.bf16.msra.mxu0 0
        %3125 = vmatpush.bf16.msra.mxu0 0
        %3126 = vmatpush.bf16.msra.mxu0 0
        %3127 = vmatpush.bf16.msra.mxu0 0
        %3128 = vmatpush.bf16.msra.mxu0 0
        %3129 = vmatpush.bf16.msra.mxu0 0
        %3130 = vmatpush.bf16.msra.mxu0 %v3115
        %3131 = vmatpush.bf16.msra.mxu0 %v3114
        %3132 = vmatmul.bf16.gmra.mxu0 %v3119
        %v3133 = vpop.f32.mrf.mxu0
        %v3134 = vadd.f32 0.0, %v3133
        %v3135 = vpop.f32.mrf.mxu0
        %v3136 = vadd.f32 0.0, %v3135
        %3137 = vmatmul.bf16.gmra.mxu0 %v3122
        %v3138 = vpop.f32.mrf.mxu0
        %v3139 = vadd.f32 0.0, %v3138
        %v3140 = vpop.f32.mrf.mxu0
        %v3141 = vadd.f32 0.0, %v3140
        %3142 = vdwg.mxu0
        %v3143 = vadd.f32 %v2882, %v3134
        %v3144 = vadd.f32 %v2883, %v3136
        %v3145 = vadd.f32 %v2884, %v3139
        %v3146 = vadd.f32 %v2885, %v3141
        %v3147 = vadd.f32 %v1158, %v3143
        %v3148 = vadd.f32 %v1159, %v3144
        %v3149 = vadd.f32 %v1160, %v3145
        %v3150 = vadd.f32 %v1161, %v3146
        %v3151 = vld [vmem:[%s617 + $0x9] sm:$0x1]
        %v3153 = vperm.slane %v3151, 0
        %v3155 = vadd.f32 %v3147, %v3153
        %v3156 = vadd.f32 %v3148, %v3153
        %v3157 = vadd.f32 %v3149, %v3153
        %v3158 = vadd.f32 %v3150, %v3153
        %v3160 = vrot.slane %v1530, 1
        %v3162 = vrot.slane %v1543, 1
        %3164 = vadd.xlane.f32.xlu0 %v3155
        %v3165 = vpop.xlane.xlu0 %3164
        %3166 = vadd.xlane.f32.xlu0 %v3156
        %v3167 = vpop.xlane.xlu0 %3166
        %3168 = vadd.xlane.f32.xlu0 %v3157
        %v3169 = vpop.xlane.xlu0 %3168
        %3170 = vadd.xlane.f32.xlu0 %v3158
        %v3171 = vpop.xlane.xlu0 %3170
        %v3172 = vmul.f32 %v3165, %v1565
        %v3173 = vmul.f32 %v3167, %v1565
        %v3174 = vmul.f32 %v3169, %v1565
        %v3175 = vmul.f32 %v3171, %v1565
        %v3176 = vsub.f32 %v3155, %v3172
        %v3177 = vsub.f32 %v3156, %v3173
        %v3178 = vsub.f32 %v3157, %v3174
        %v3179 = vsub.f32 %v3158, %v3175
        %v3180 = vmul.f32 %v3176, %v3176
        %v3181 = vmul.f32 %v3177, %v3177
        %v3182 = vmul.f32 %v3178, %v3178
        %v3183 = vmul.f32 %v3179, %v3179
        %3184 = vadd.xlane.f32.xlu0 %v3180
        %v3185 = vpop.xlane.xlu0 %3184
        %3186 = vadd.xlane.f32.xlu0 %v3181
        %v3187 = vpop.xlane.xlu0 %3186
        %3188 = vadd.xlane.f32.xlu0 %v3182
        %v3189 = vpop.xlane.xlu0 %3188
        %3190 = vadd.xlane.f32.xlu0 %v3183
        %v3191 = vpop.xlane.xlu0 %3190
        %v3192 = vmul.f32 %v3185, %v1565
        %v3193 = vmul.f32 %v3187, %v1565
        %v3194 = vmul.f32 %v3189, %v1565
        %v3195 = vmul.f32 %v3191, %v1565
        %v3196 = vadd.f32 %v3192, 1e-06
        %v3197 = vadd.f32 %v3193, 1e-06
        %v3198 = vadd.f32 %v3194, 1e-06
        %v3199 = vadd.f32 %v3195, 1e-06
        %v3200 = vrsqrt.pop %v3196
        %v3201 = vmul.f32 %v3200, %v3196
        %v3202 = vmul.f32 %v3201, %v3200
        %v3203 = vmul.f32 0.5, %v3202
        %v3204 = vsub.f32 1.5, %v3203
        %v3205 = vmul.f32 %v3200, %v3204
        %vm3206 = vweird.f32 %v3196
        %vm3207 = vweird.f32 %v3200
        %vm3208 = vmor %vm3206, %vm3207
        %v3209 = vsel %vm3208, %v3200, %v3205
        %v3210 = vrsqrt.pop %v3197
        %v3211 = vmul.f32 %v3210, %v3197
        %v3212 = vmul.f32 %v3211, %v3210
        %v3213 = vmul.f32 0.5, %v3212
        %v3214 = vsub.f32 1.5, %v3213
        %v3215 = vmul.f32 %v3210, %v3214
        %vm3216 = vweird.f32 %v3197
        %vm3217 = vweird.f32 %v3210
        %vm3218 = vmor %vm3216, %vm3217
        %v3219 = vsel %vm3218, %v3210, %v3215
        %v3220 = vrsqrt.pop %v3198
        %v3221 = vmul.f32 %v3220, %v3198
        %v3222 = vmul.f32 %v3221, %v3220
        %v3223 = vmul.f32 0.5, %v3222
        %v3224 = vsub.f32 1.5, %v3223
        %v3225 = vmul.f32 %v3220, %v3224
        %vm3226 = vweird.f32 %v3198
        %vm3227 = vweird.f32 %v3220
        %vm3228 = vmor %vm3226, %vm3227
        %v3229 = vsel %vm3228, %v3220, %v3225
        %v3230 = vrsqrt.pop %v3199
        %v3231 = vmul.f32 %v3230, %v3199
        %v3232 = vmul.f32 %v3231, %v3230
        %v3233 = vmul.f32 0.5, %v3232
        %v3234 = vsub.f32 1.5, %v3233
        %v3235 = vmul.f32 %v3230, %v3234
        %vm3236 = vweird.f32 %v3199
        %vm3237 = vweird.f32 %v3230
        %vm3238 = vmor %vm3236, %vm3237
        %v3239 = vsel %vm3238, %v3230, %v3235
        %v3240 = vmul.f32 %v3176, %v3209
        %v3241 = vmul.f32 %v3177, %v3219
        %v3242 = vmul.f32 %v3178, %v3229
        %v3243 = vmul.f32 %v3179, %v3239
        %v3244 = vadd.f32 %v1543, 1.0
        %v3245 = vadd.f32 %v3162, 1.0
        %v3248 = vperm.slane %v3244, 0
        %v3249 = vperm.slane %v3245, 0
        %v3252 = vmul.f32 %v3240, %v3248
        %v3253 = vmul.f32 %v3241, %v3248
        %v3254 = vmul.f32 %v3242, %v3249
        %v3255 = vmul.f32 %v3243, %v3249
        %v3256 = vperm.slane %v1530, 0
        %v3257 = vperm.slane %v3160, 0
        %v3260 = vadd.f32 %v3252, %v3256
        %v3261 = vadd.f32 %v3253, %v3256
        %v3262 = vadd.f32 %v3254, %v3257
        %v3263 = vadd.f32 %v3255, %v3257
        %v3264 = vpack.c.bf16 %v3261, %v3260
        %v3265 = vpack.c.bf16 %v3263, %v3262
        %v3266 = vld [vmem:[%s597 + $0x10] sm:$0xff]
        %v3267 = vld [vmem:[%s597 + $0x18] sm:$0xff]
        %v3268 = vld [vmem:[%s597 + $0x30] sm:$0xff]
        %v3269 = vld [vmem:[%s597 + $0x38] sm:$0xff]
        %v3270 = vld [vmem:[%s597 + $0x50] sm:$0xff]
        %v3271 = vld [vmem:[%s597 + $0x58] sm:$0xff]
        %v3272 = vld [vmem:[%s597 + $0x70] sm:$0xff]
        %v3273 = vld [vmem:[%s597 + $0x78] sm:$0xff]
        %v3274 = vld [vmem:[%s597 + $0x90] sm:$0xff]
        %v3275 = vld [vmem:[%s597 + $0x98] sm:$0xff]
        %v3276 = vld [vmem:[%s597 + $0xb0] sm:$0xff]
        %v3277 = vld [vmem:[%s597 + $0xb8] sm:$0xff]
        %v3278 = vld [vmem:[%s597 + $0xd0] sm:$0xff]
        %v3279 = vld [vmem:[%s597 + $0xd8] sm:$0xff]
        %v3280 = vld [vmem:[%s597 + $0xf0] sm:$0xff]
        %v3281 = vld [vmem:[%s597 + $0xf8] sm:$0xff]
        %v3282 = vld [vmem:[%s597 + $0x110] sm:$0xff]
        %v3283 = vld [vmem:[%s597 + $0x118] sm:$0xff]
        %v3284 = vld [vmem:[%s597 + $0x130] sm:$0xff]
        %v3285 = vld [vmem:[%s597 + $0x138] sm:$0xff]
        %v3286 = vld [vmem:[%s597 + $0x150] sm:$0xff]
        %v3287 = vld [vmem:[%s597 + $0x158] sm:$0xff]
        %v3288 = vld [vmem:[%s597 + $0x170] sm:$0xff]
        %v3289 = vld [vmem:[%s597 + $0x178] sm:$0xff]
        %v3290 = vld [vmem:[%s597 + $0x190] sm:$0xff]
        %v3291 = vld [vmem:[%s597 + $0x198] sm:$0xff]
        %v3292 = vld [vmem:[%s597 + $0x1b0] sm:$0xff]
        %v3293 = vld [vmem:[%s597 + $0x1b8] sm:$0xff]
        %v3294 = vld [vmem:[%s597 + $0x1d0] sm:$0xff]
        %v3295 = vld [vmem:[%s597 + $0x1d8] sm:$0xff]
        %v3296 = vld [vmem:[%s597 + $0x1f0] sm:$0xff]
        %v3297 = vld [vmem:[%s597 + $0x1f8] sm:$0xff]
        %v3298 = vld [vmem:[%s617 + $0xa] sm:$0xf]
        %v3300 = vperm.slane %v3298, 0
        %v3301 = vperm.slane %v3298, 1
        %v3302 = vperm.slane %v3298, 2
        %v3303 = vperm.slane %v3298, 3
        %v3340 = vunpack.c.l.b16 %v3266
        %v3341 = vunpack.c.h.b16 %v3266
        %v3342 = vunpack.c.l.b16 %v3267
        %v3343 = vunpack.c.h.b16 %v3267
        %v3344 = vunpack.c.l.b16 %v3268
        %v3345 = vunpack.c.h.b16 %v3268
        %v3346 = vunpack.c.l.b16 %v3269
        %v3347 = vunpack.c.h.b16 %v3269
        %v3348 = vunpack.c.l.b16 %v3270
        %v3349 = vunpack.c.h.b16 %v3270
        %v3350 = vunpack.c.l.b16 %v3271
        %v3351 = vunpack.c.h.b16 %v3271
        %v3352 = vunpack.c.l.b16 %v3272
        %v3353 = vunpack.c.h.b16 %v3272
        %v3354 = vunpack.c.l.b16 %v3273
        %v3355 = vunpack.c.h.b16 %v3273
        %v3356 = vunpack.c.l.b16 %v3274
        %v3357 = vunpack.c.h.b16 %v3274
        %v3358 = vunpack.c.l.b16 %v3275
        %v3359 = vunpack.c.h.b16 %v3275
        %v3360 = vunpack.c.l.b16 %v3276
        %v3361 = vunpack.c.h.b16 %v3276
        %v3362 = vunpack.c.l.b16 %v3277
        %v3363 = vunpack.c.h.b16 %v3277
        %v3364 = vunpack.c.l.b16 %v3278
        %v3365 = vunpack.c.h.b16 %v3278
        %v3366 = vunpack.c.l.b16 %v3279
        %v3367 = vunpack.c.h.b16 %v3279
        %v3368 = vunpack.c.l.b16 %v3280
        %v3369 = vunpack.c.h.b16 %v3280
        %v3370 = vunpack.c.l.b16 %v3281
        %v3371 = vunpack.c.h.b16 %v3281
        %v3372 = vunpack.c.l.b16 %v3282
        %v3373 = vunpack.c.h.b16 %v3282
        %v3374 = vunpack.c.l.b16 %v3283
        %v3375 = vunpack.c.h.b16 %v3283
        %v3376 = vunpack.c.l.b16 %v3284
        %v3377 = vunpack.c.h.b16 %v3284
        %v3378 = vunpack.c.l.b16 %v3285
        %v3379 = vunpack.c.h.b16 %v3285
        %v3380 = vunpack.c.l.b16 %v3286
        %v3381 = vunpack.c.h.b16 %v3286
        %v3382 = vunpack.c.l.b16 %v3287
        %v3383 = vunpack.c.h.b16 %v3287
        %v3384 = vunpack.c.l.b16 %v3288
        %v3385 = vunpack.c.h.b16 %v3288
        %v3386 = vunpack.c.l.b16 %v3289
        %v3387 = vunpack.c.h.b16 %v3289
        %v3388 = vunpack.c.l.b16 %v3290
        %v3389 = vunpack.c.h.b16 %v3290
        %v3390 = vunpack.c.l.b16 %v3291
        %v3391 = vunpack.c.h.b16 %v3291
        %v3392 = vunpack.c.l.b16 %v3292
        %v3393 = vunpack.c.h.b16 %v3292
        %v3394 = vunpack.c.l.b16 %v3293
        %v3395 = vunpack.c.h.b16 %v3293
        %v3396 = vunpack.c.l.b16 %v3294
        %v3397 = vunpack.c.h.b16 %v3294
        %v3398 = vunpack.c.l.b16 %v3295
        %v3399 = vunpack.c.h.b16 %v3295
        %v3400 = vunpack.c.l.b16 %v3296
        %v3401 = vunpack.c.h.b16 %v3296
        %v3402 = vunpack.c.l.b16 %v3297
        %v3403 = vunpack.c.h.b16 %v3297
        %v3404 = vpack.c.b16 %v3344, %v3340
        %v3405 = vpack.c.b16 %v3345, %v3341
        %v3406 = vpack.c.b16 %v3346, %v3342
        %v3407 = vpack.c.b16 %v3347, %v3343
        %v3408 = vpack.c.b16 %v3352, %v3348
        %v3409 = vpack.c.b16 %v3353, %v3349
        %v3410 = vpack.c.b16 %v3354, %v3350
        %v3411 = vpack.c.b16 %v3355, %v3351
        %v3412 = vpack.c.b16 %v3360, %v3356
        %v3413 = vpack.c.b16 %v3361, %v3357
        %v3414 = vpack.c.b16 %v3362, %v3358
        %v3415 = vpack.c.b16 %v3363, %v3359
        %v3416 = vpack.c.b16 %v3368, %v3364
        %v3417 = vpack.c.b16 %v3369, %v3365
        %v3418 = vpack.c.b16 %v3370, %v3366
        %v3419 = vpack.c.b16 %v3371, %v3367
        %v3420 = vpack.c.b16 %v3376, %v3372
        %v3421 = vpack.c.b16 %v3377, %v3373
        %v3422 = vpack.c.b16 %v3378, %v3374
        %v3423 = vpack.c.b16 %v3379, %v3375
        %v3424 = vpack.c.b16 %v3384, %v3380
        %v3425 = vpack.c.b16 %v3385, %v3381
        %v3426 = vpack.c.b16 %v3386, %v3382
        %v3427 = vpack.c.b16 %v3387, %v3383
        %v3428 = vpack.c.b16 %v3392, %v3388
        %v3429 = vpack.c.b16 %v3393, %v3389
        %v3430 = vpack.c.b16 %v3394, %v3390
        %v3431 = vpack.c.b16 %v3395, %v3391
        %v3432 = vpack.c.b16 %v3400, %v3396
        %v3433 = vpack.c.b16 %v3401, %v3397
        %v3434 = vpack.c.b16 %v3402, %v3398
        %v3435 = vpack.c.b16 %v3403, %v3399
        %3468 = vmatpush.bf16.msra.mxu0 %v3432
        %3469 = vmatpush.bf16.msra.mxu0 %v3428
        %3470 = vmatpush.bf16.msra.mxu0 %v3424
        %3471 = vmatpush.bf16.msra.mxu0 %v3420
        %3472 = vmatpush.bf16.msra.mxu0 %v3416
        %3473 = vmatpush.bf16.msra.mxu0 %v3412
        %3474 = vmatpush.bf16.msra.mxu0 %v3408
        %3475 = vmatpush.bf16.msra.mxu0 %v3404
        %3476 = vmatmul.bf16.gmra.mxu0 %v3264
        %v3477 = vpop.f32.mrf.mxu0
        %v3478 = vadd.f32 %v3300, %v3477
        %v3479 = vpop.f32.mrf.mxu0
        %v3480 = vadd.f32 %v3300, %v3479
        %3481 = vmatmul.bf16.gmra.mxu0 %v3265
        %v3482 = vpop.f32.mrf.mxu0
        %v3483 = vadd.f32 %v3300, %v3482
        %v3484 = vpop.f32.mrf.mxu0
        %v3485 = vadd.f32 %v3300, %v3484
        %3486 = vdwg.mxu0
        %3487 = vmatpush.bf16.msra.mxu0 %v3433
        %3488 = vmatpush.bf16.msra.mxu0 %v3429
        %3489 = vmatpush.bf16.msra.mxu0 %v3425
        %3490 = vmatpush.bf16.msra.mxu0 %v3421
        %3491 = vmatpush.bf16.msra.mxu0 %v3417
        %3492 = vmatpush.bf16.msra.mxu0 %v3413
        %3493 = vmatpush.bf16.msra.mxu0 %v3409
        %3494 = vmatpush.bf16.msra.mxu0 %v3405
        %3495 = vmatmul.bf16.gmra.mxu0 %v3264
        %v3496 = vpop.f32.mrf.mxu0
        %v3497 = vadd.f32 %v3301, %v3496
        %v3498 = vpop.f32.mrf.mxu0
        %v3499 = vadd.f32 %v3301, %v3498
        %3500 = vmatmul.bf16.gmra.mxu0 %v3265
        %v3501 = vpop.f32.mrf.mxu0
        %v3502 = vadd.f32 %v3301, %v3501
        %v3503 = vpop.f32.mrf.mxu0
        %v3504 = vadd.f32 %v3301, %v3503
        %3505 = vdwg.mxu0
        %3506 = vmatpush.bf16.msra.mxu0 %v3434
        %3507 = vmatpush.bf16.msra.mxu0 %v3430
        %3508 = vmatpush.bf16.msra.mxu0 %v3426
        %3509 = vmatpush.bf16.msra.mxu0 %v3422
        %3510 = vmatpush.bf16.msra.mxu0 %v3418
        %3511 = vmatpush.bf16.msra.mxu0 %v3414
        %3512 = vmatpush.bf16.msra.mxu0 %v3410
        %3513 = vmatpush.bf16.msra.mxu0 %v3406
        %3514 = vmatmul.bf16.gmra.mxu0 %v3264
        %v3515 = vpop.f32.mrf.mxu0
        %v3516 = vadd.f32 %v3302, %v3515
        %v3517 = vpop.f32.mrf.mxu0
        %v3518 = vadd.f32 %v3302, %v3517
        %3519 = vmatmul.bf16.gmra.mxu0 %v3265
        %v3520 = vpop.f32.mrf.mxu0
        %v3521 = vadd.f32 %v3302, %v3520
        %v3522 = vpop.f32.mrf.mxu0
        %v3523 = vadd.f32 %v3302, %v3522
        %3524 = vdwg.mxu0
        %3525 = vmatpush.bf16.msra.mxu0 %v3435
        %3526 = vmatpush.bf16.msra.mxu0 %v3431
        %3527 = vmatpush.bf16.msra.mxu0 %v3427
        %3528 = vmatpush.bf16.msra.mxu0 %v3423
        %3529 = vmatpush.bf16.msra.mxu0 %v3419
        %3530 = vmatpush.bf16.msra.mxu0 %v3415
        %3531 = vmatpush.bf16.msra.mxu0 %v3411
        %3532 = vmatpush.bf16.msra.mxu0 %v3407
        %3533 = vmatmul.bf16.gmra.mxu0 %v3264
        %v3534 = vpop.f32.mrf.mxu0
        %v3535 = vadd.f32 %v3303, %v3534
        %v3536 = vpop.f32.mrf.mxu0
        %v3537 = vadd.f32 %v3303, %v3536
        %3538 = vmatmul.bf16.gmra.mxu0 %v3265
        %v3539 = vpop.f32.mrf.mxu0
        %v3540 = vadd.f32 %v3303, %v3539
        %v3541 = vpop.f32.mrf.mxu0
        %v3542 = vadd.f32 %v3303, %v3541
        %3543 = vdwg.mxu0
        %v3544 = vmax.f32 %v3478, 0.0
        %v3545 = vmax.f32 %v3497, 0.0
        %v3546 = vmax.f32 %v3516, 0.0
        %v3547 = vmax.f32 %v3535, 0.0
        %v3548 = vmax.f32 %v3480, 0.0
        %v3549 = vmax.f32 %v3499, 0.0
        %v3550 = vmax.f32 %v3518, 0.0
        %v3551 = vmax.f32 %v3537, 0.0
        %v3552 = vmax.f32 %v3483, 0.0
        %v3553 = vmax.f32 %v3502, 0.0
        %v3554 = vmax.f32 %v3521, 0.0
        %v3555 = vmax.f32 %v3540, 0.0
        %v3556 = vmax.f32 %v3485, 0.0
        %v3557 = vmax.f32 %v3504, 0.0
        %v3558 = vmax.f32 %v3523, 0.0
        %v3559 = vmax.f32 %v3542, 0.0
        %v3560 = vmul.f32 %v3544, %v3544
        %v3561 = vmul.f32 %v3545, %v3545
        %v3562 = vmul.f32 %v3546, %v3546
        %v3563 = vmul.f32 %v3547, %v3547
        %v3564 = vmul.f32 %v3548, %v3548
        %v3565 = vmul.f32 %v3549, %v3549
        %v3566 = vmul.f32 %v3550, %v3550
        %v3567 = vmul.f32 %v3551, %v3551
        %v3568 = vmul.f32 %v3552, %v3552
        %v3569 = vmul.f32 %v3553, %v3553
        %v3570 = vmul.f32 %v3554, %v3554
        %v3571 = vmul.f32 %v3555, %v3555
        %v3572 = vmul.f32 %v3556, %v3556
        %v3573 = vmul.f32 %v3557, %v3557
        %v3574 = vmul.f32 %v3558, %v3558
        %v3575 = vmul.f32 %v3559, %v3559
        %v3576 = vpack.c.bf16 %v3564, %v3560
        %v3577 = vpack.c.bf16 %v3565, %v3561
        %v3578 = vpack.c.bf16 %v3566, %v3562
        %v3579 = vpack.c.bf16 %v3567, %v3563
        %v3580 = vpack.c.bf16 %v3572, %v3568
        %v3581 = vpack.c.bf16 %v3573, %v3569
        %v3582 = vpack.c.bf16 %v3574, %v3570
        %v3583 = vpack.c.bf16 %v3575, %v3571
        %v3584 = vld [vmem:[%s607] sm:$0xf]
        %v3585 = vld [vmem:[%s607 + $0x4] sm:$0xf]
        %v3586 = vld [vmem:[%s607 + $0x8] sm:$0xf]
        %v3587 = vld [vmem:[%s607 + $0xc] sm:$0xf]
        %v3588 = vld [vmem:[%s607 + $0x10] sm:$0xf]
        %v3589 = vld [vmem:[%s607 + $0x14] sm:$0xf]
        %v3590 = vld [vmem:[%s607 + $0x18] sm:$0xf]
        %v3591 = vld [vmem:[%s607 + $0x1c] sm:$0xf]
        %v3592 = vld [vmem:[%s607 + $0x20] sm:$0xf]
        %v3593 = vld [vmem:[%s607 + $0x24] sm:$0xf]
        %v3594 = vld [vmem:[%s607 + $0x28] sm:$0xf]
        %v3595 = vld [vmem:[%s607 + $0x2c] sm:$0xf]
        %v3596 = vld [vmem:[%s607 + $0x30] sm:$0xf]
        %v3597 = vld [vmem:[%s607 + $0x34] sm:$0xf]
        %v3598 = vld [vmem:[%s607 + $0x38] sm:$0xf]
        %v3599 = vld [vmem:[%s607 + $0x3c] sm:$0xf]
        %v3600 = vld [vmem:[%s607 + $0x40] sm:$0xf]
        %v3601 = vld [vmem:[%s607 + $0x44] sm:$0xf]
        %v3602 = vld [vmem:[%s607 + $0x48] sm:$0xf]
        %v3603 = vld [vmem:[%s607 + $0x4c] sm:$0xf]
        %v3604 = vld [vmem:[%s607 + $0x50] sm:$0xf]
        %v3605 = vld [vmem:[%s607 + $0x54] sm:$0xf]
        %v3606 = vld [vmem:[%s607 + $0x58] sm:$0xf]
        %v3607 = vld [vmem:[%s607 + $0x5c] sm:$0xf]
        %v3608 = vld [vmem:[%s607 + $0x60] sm:$0xf]
        %v3609 = vld [vmem:[%s607 + $0x64] sm:$0xf]
        %v3610 = vld [vmem:[%s607 + $0x68] sm:$0xf]
        %v3611 = vld [vmem:[%s607 + $0x6c] sm:$0xf]
        %v3612 = vld [vmem:[%s607 + $0x70] sm:$0xf]
        %v3613 = vld [vmem:[%s607 + $0x74] sm:$0xf]
        %v3614 = vld [vmem:[%s607 + $0x78] sm:$0xf]
        %v3615 = vld [vmem:[%s607 + $0x7c] sm:$0xf]
        %v3616 = vld [vmem:[%s607 + $0x80] sm:$0xf]
        %v3617 = vld [vmem:[%s607 + $0x84] sm:$0xf]
        %v3618 = vld [vmem:[%s607 + $0x88] sm:$0xf]
        %v3619 = vld [vmem:[%s607 + $0x8c] sm:$0xf]
        %v3620 = vld [vmem:[%s607 + $0x90] sm:$0xf]
        %v3621 = vld [vmem:[%s607 + $0x94] sm:$0xf]
        %v3622 = vld [vmem:[%s607 + $0x98] sm:$0xf]
        %v3623 = vld [vmem:[%s607 + $0x9c] sm:$0xf]
        %v3624 = vld [vmem:[%s607 + $0xa0] sm:$0xf]
        %v3625 = vld [vmem:[%s607 + $0xa4] sm:$0xf]
        %v3626 = vld [vmem:[%s607 + $0xa8] sm:$0xf]
        %v3627 = vld [vmem:[%s607 + $0xac] sm:$0xf]
        %v3628 = vld [vmem:[%s607 + $0xb0] sm:$0xf]
        %v3629 = vld [vmem:[%s607 + $0xb4] sm:$0xf]
        %v3630 = vld [vmem:[%s607 + $0xb8] sm:$0xf]
        %v3631 = vld [vmem:[%s607 + $0xbc] sm:$0xf]
        %v3632 = vld [vmem:[%s607 + $0xc0] sm:$0xf]
        %v3633 = vld [vmem:[%s607 + $0xc4] sm:$0xf]
        %v3634 = vld [vmem:[%s607 + $0xc8] sm:$0xf]
        %v3635 = vld [vmem:[%s607 + $0xcc] sm:$0xf]
        %v3636 = vld [vmem:[%s607 + $0xd0] sm:$0xf]
        %v3637 = vld [vmem:[%s607 + $0xd4] sm:$0xf]
        %v3638 = vld [vmem:[%s607 + $0xd8] sm:$0xf]
        %v3639 = vld [vmem:[%s607 + $0xdc] sm:$0xf]
        %v3640 = vld [vmem:[%s607 + $0xe0] sm:$0xf]
        %v3641 = vld [vmem:[%s607 + $0xe4] sm:$0xf]
        %v3642 = vld [vmem:[%s607 + $0xe8] sm:$0xf]
        %v3643 = vld [vmem:[%s607 + $0xec] sm:$0xf]
        %v3644 = vld [vmem:[%s607 + $0xf0] sm:$0xf]
        %v3645 = vld [vmem:[%s607 + $0xf4] sm:$0xf]
        %v3646 = vld [vmem:[%s607 + $0xf8] sm:$0xf]
        %v3647 = vld [vmem:[%s607 + $0xfc] sm:$0xf]
        %v3648 = vld [vmem:[%s617 + $0xe] sm:$0x1]
        %v3650 = vperm.slane %v3648, 0
        %v3716 = vunpack.c.l.b16 %v3584
        %v3717 = vunpack.c.l.b16 %v3585
        %v3718 = vunpack.c.l.b16 %v3586
        %v3719 = vunpack.c.l.b16 %v3587
        %v3720 = vunpack.c.l.b16 %v3588
        %v3721 = vunpack.c.l.b16 %v3589
        %v3722 = vunpack.c.l.b16 %v3590
        %v3723 = vunpack.c.l.b16 %v3591
        %v3724 = vunpack.c.l.b16 %v3592
        %v3725 = vunpack.c.l.b16 %v3593
        %v3726 = vunpack.c.l.b16 %v3594
        %v3727 = vunpack.c.l.b16 %v3595
        %v3728 = vunpack.c.l.b16 %v3596
        %v3729 = vunpack.c.l.b16 %v3597
        %v3730 = vunpack.c.l.b16 %v3598
        %v3731 = vunpack.c.l.b16 %v3599
        %v3732 = vunpack.c.l.b16 %v3600
        %v3733 = vunpack.c.l.b16 %v3601
        %v3734 = vunpack.c.l.b16 %v3602
        %v3735 = vunpack.c.l.b16 %v3603
        %v3736 = vunpack.c.l.b16 %v3604
        %v3737 = vunpack.c.l.b16 %v3605
        %v3738 = vunpack.c.l.b16 %v3606
        %v3739 = vunpack.c.l.b16 %v3607
        %v3740 = vunpack.c.l.b16 %v3608
        %v3741 = vunpack.c.l.b16 %v3609
        %v3742 = vunpack.c.l.b16 %v3610
        %v3743 = vunpack.c.l.b16 %v3611
        %v3744 = vunpack.c.l.b16 %v3612
        %v3745 = vunpack.c.l.b16 %v3613
        %v3746 = vunpack.c.l.b16 %v3614
        %v3747 = vunpack.c.l.b16 %v3615
        %v3748 = vunpack.c.l.b16 %v3616
        %v3749 = vunpack.c.l.b16 %v3617
        %v3750 = vunpack.c.l.b16 %v3618
        %v3751 = vunpack.c.l.b16 %v3619
        %v3752 = vunpack.c.l.b16 %v3620
        %v3753 = vunpack.c.l.b16 %v3621
        %v3754 = vunpack.c.l.b16 %v3622
        %v3755 = vunpack.c.l.b16 %v3623
        %v3756 = vunpack.c.l.b16 %v3624
        %v3757 = vunpack.c.l.b16 %v3625
        %v3758 = vunpack.c.l.b16 %v3626
        %v3759 = vunpack.c.l.b16 %v3627
        %v3760 = vunpack.c.l.b16 %v3628
        %v3761 = vunpack.c.l.b16 %v3629
        %v3762 = vunpack.c.l.b16 %v3630
        %v3763 = vunpack.c.l.b16 %v3631
        %v3764 = vunpack.c.l.b16 %v3632
        %v3765 = vunpack.c.l.b16 %v3633
        %v3766 = vunpack.c.l.b16 %v3634
        %v3767 = vunpack.c.l.b16 %v3635
        %v3768 = vunpack.c.l.b16 %v3636
        %v3769 = vunpack.c.l.b16 %v3637
        %v3770 = vunpack.c.l.b16 %v3638
        %v3771 = vunpack.c.l.b16 %v3639
        %v3772 = vunpack.c.l.b16 %v3640
        %v3773 = vunpack.c.l.b16 %v3641
        %v3774 = vunpack.c.l.b16 %v3642
        %v3775 = vunpack.c.l.b16 %v3643
        %v3776 = vunpack.c.l.b16 %v3644
        %v3777 = vunpack.c.l.b16 %v3645
        %v3778 = vunpack.c.l.b16 %v3646
        %v3779 = vunpack.c.l.b16 %v3647
        %v3780 = vpack.c.b16 %v3717, %v3716
        %v3781 = vpack.c.b16 %v3719, %v3718
        %v3782 = vpack.c.b16 %v3721, %v3720
        %v3783 = vpack.c.b16 %v3723, %v3722
        %v3784 = vpack.c.b16 %v3725, %v3724
        %v3785 = vpack.c.b16 %v3727, %v3726
        %v3786 = vpack.c.b16 %v3729, %v3728
        %v3787 = vpack.c.b16 %v3731, %v3730
        %v3788 = vpack.c.b16 %v3733, %v3732
        %v3789 = vpack.c.b16 %v3735, %v3734
        %v3790 = vpack.c.b16 %v3737, %v3736
        %v3791 = vpack.c.b16 %v3739, %v3738
        %v3792 = vpack.c.b16 %v3741, %v3740
        %v3793 = vpack.c.b16 %v3743, %v3742
        %v3794 = vpack.c.b16 %v3745, %v3744
        %v3795 = vpack.c.b16 %v3747, %v3746
        %v3796 = vpack.c.b16 %v3749, %v3748
        %v3797 = vpack.c.b16 %v3751, %v3750
        %v3798 = vpack.c.b16 %v3753, %v3752
        %v3799 = vpack.c.b16 %v3755, %v3754
        %v3800 = vpack.c.b16 %v3757, %v3756
        %v3801 = vpack.c.b16 %v3759, %v3758
        %v3802 = vpack.c.b16 %v3761, %v3760
        %v3803 = vpack.c.b16 %v3763, %v3762
        %v3804 = vpack.c.b16 %v3765, %v3764
        %v3805 = vpack.c.b16 %v3767, %v3766
        %v3806 = vpack.c.b16 %v3769, %v3768
        %v3807 = vpack.c.b16 %v3771, %v3770
        %v3808 = vpack.c.b16 %v3773, %v3772
        %v3809 = vpack.c.b16 %v3775, %v3774
        %v3810 = vpack.c.b16 %v3777, %v3776
        %v3811 = vpack.c.b16 %v3779, %v3778
        %3844 = vmatpush.bf16.msra.mxu0 %v3787
        %3845 = vmatpush.bf16.msra.mxu0 %v3786
        %3846 = vmatpush.bf16.msra.mxu0 %v3785
        %3847 = vmatpush.bf16.msra.mxu0 %v3784
        %3848 = vmatpush.bf16.msra.mxu0 %v3783
        %3849 = vmatpush.bf16.msra.mxu0 %v3782
        %3850 = vmatpush.bf16.msra.mxu0 %v3781
        %3851 = vmatpush.bf16.msra.mxu0 %v3780
        %3852 = vmatmul.bf16.gmra.mxu0 %v3576
        %v3853 = vpop.f32.mrf.mxu0
        %v3854 = vadd.f32 %v3650, %v3853
        %v3855 = vpop.f32.mrf.mxu0
        %v3856 = vadd.f32 %v3650, %v3855
        %3857 = vmatmul.bf16.gmra.mxu0 %v3580
        %v3858 = vpop.f32.mrf.mxu0
        %v3859 = vadd.f32 %v3650, %v3858
        %v3860 = vpop.f32.mrf.mxu0
        %v3861 = vadd.f32 %v3650, %v3860
        %3862 = vdwg.mxu0
        %3863 = vmatpush.bf16.msra.mxu0 %v3795
        %3864 = vmatpush.bf16.msra.mxu0 %v3794
        %3865 = vmatpush.bf16.msra.mxu0 %v3793
        %3866 = vmatpush.bf16.msra.mxu0 %v3792
        %3867 = vmatpush.bf16.msra.mxu0 %v3791
        %3868 = vmatpush.bf16.msra.mxu0 %v3790
        %3869 = vmatpush.bf16.msra.mxu0 %v3789
        %3870 = vmatpush.bf16.msra.mxu0 %v3788
        %3871 = vmatmul.bf16.gmra.mxu0 %v3577
        %v3872 = vpop.f32.mrf.mxu0
        %v3873 = vadd.f32 %v3854, %v3872
        %v3874 = vpop.f32.mrf.mxu0
        %v3875 = vadd.f32 %v3856, %v3874
        %3876 = vmatmul.bf16.gmra.mxu0 %v3581
        %v3877 = vpop.f32.mrf.mxu0
        %v3878 = vadd.f32 %v3859, %v3877
        %v3879 = vpop.f32.mrf.mxu0
        %v3880 = vadd.f32 %v3861, %v3879
        %3881 = vdwg.mxu0
        %3882 = vmatpush.bf16.msra.mxu0 %v3803
        %3883 = vmatpush.bf16.msra.mxu0 %v3802
        %3884 = vmatpush.bf16.msra.mxu0 %v3801
        %3885 = vmatpush.bf16.msra.mxu0 %v3800
        %3886 = vmatpush.bf16.msra.mxu0 %v3799
        %3887 = vmatpush.bf16.msra.mxu0 %v3798
        %3888 = vmatpush.bf16.msra.mxu0 %v3797
        %3889 = vmatpush.bf16.msra.mxu0 %v3796
        %3890 = vmatmul.bf16.gmra.mxu0 %v3578
        %v3891 = vpop.f32.mrf.mxu0
        %v3892 = vadd.f32 %v3873, %v3891
        %v3893 = vpop.f32.mrf.mxu0
        %v3894 = vadd.f32 %v3875, %v3893
        %3895 = vmatmul.bf16.gmra.mxu0 %v3582
        %v3896 = vpop.f32.mrf.mxu0
        %v3897 = vadd.f32 %v3878, %v3896
        %v3898 = vpop.f32.mrf.mxu0
        %v3899 = vadd.f32 %v3880, %v3898
        %3900 = vdwg.mxu0
        %3901 = vmatpush.bf16.msra.mxu0 %v3811
        %3902 = vmatpush.bf16.msra.mxu0 %v3810
        %3903 = vmatpush.bf16.msra.mxu0 %v3809
        %3904 = vmatpush.bf16.msra.mxu0 %v3808
        %3905 = vmatpush.bf16.msra.mxu0 %v3807
        %3906 = vmatpush.bf16.msra.mxu0 %v3806
        %3907 = vmatpush.bf16.msra.mxu0 %v3805
        %3908 = vmatpush.bf16.msra.mxu0 %v3804
        %3909 = vmatmul.bf16.gmra.mxu0 %v3579
        %v3910 = vpop.f32.mrf.mxu0
        %v3911 = vadd.f32 %v3892, %v3910
        %v3912 = vpop.f32.mrf.mxu0
        %v3913 = vadd.f32 %v3894, %v3912
        %3914 = vmatmul.bf16.gmra.mxu0 %v3583
        %v3915 = vpop.f32.mrf.mxu0
        %v3916 = vadd.f32 %v3897, %v3915
        %v3917 = vpop.f32.mrf.mxu0
        %v3918 = vadd.f32 %v3899, %v3917
        %3919 = vdwg.mxu0
        %v3920 = vadd.f32 %v3155, %v3911
        %v3921 = vadd.f32 %v3156, %v3913
        %v3922 = vadd.f32 %v3157, %v3916
        %v3923 = vadd.f32 %v3158, %v3918
        %3924 = vst [vmem:[#allocation20] sm:$0xff] %v3920
        %3925 = vst [vmem:[#allocation20 + $0x8] sm:$0xff] %v3921
        %3926 = vst [vmem:[#allocation20 + $0x10] sm:$0xff] %v3922
        %3927 = vst [vmem:[#allocation20 + $0x18] sm:$0xff] %v3923
        // Predicated region
        $region113: #{artdapter_forward.1} parent=67 // pred_check
          %p3928 = pneg %p340
        $region114: #{artdapter_forward.1} parent=67 // pred_check_branch
          %3930 = sbr.rel (%p3928) target = $region116
        $region115: #{artdapter_forward.1} parent=67 // pred_region
          %s3931 = smul.u32 2, %s32
          %3933 = vsyncadd [#allocation7], 0
          %s3934 = smul.addr %s3931, 2
          %s3935 = smul.addr %s3934, 8
          %s3936 = scalar_lea.hbm %s12, %s3935
          %s3937 = sshll.u32 [#allocation20], 4
          %s3938 = int_to_ptr.vmem [resolvable:$true] %s3937
          %s3939 = sshll.u32 %s3936, 4
          %s3940 = int_to_ptr.hbm [resolvable:$true] %s3939
          %3945 = dma.vmem_to_hbm [thread:$0]  %s3938, 512, %s3940, [#allocation7], 128, 128, 8
        $region116: #{artdapter_forward.1} parent=67 // pred_fallthru
          _
        // Predicated region
        $region117: #{artdapter_forward.1} parent=67 // pred_check
          %p3946 = pneg %p340
        $region118: #{artdapter_forward.1} parent=67 // pred_check_branch
          %3948 = sbr.rel (%p3946) target = $region120
        $region119: #{artdapter_forward.1} parent=67 // pred_region
          %3950 = dma.done [#allocation7], 512
        $region120: #{artdapter_forward.1} parent=67 // pred_fallthru
          _
      $region68: #{artdapter_forward.1} parent=5 // pred_fallthru
        _
      %p3951 = scmp.le.s32.totalorder 2, %s23
      // Predicated region
      $region121: #{artdapter_forward.1} parent=5 // pred_check
        %p3952 = pneg %p3951
      $region122: #{artdapter_forward.1} parent=5 // pred_check_branch
        %3954 = sbr.rel (%p3952) target = $region124
      $region123: #{artdapter_forward.1} parent=5 // pred_region
        %s3955 = ssub.s32 %s23, 2
      $region124: #{artdapter_forward.1} parent=5 // pred_fallthru
        _
    $region6: #{artdapter_forward.1} parent=1 // loop_footer
      %s27 = sadd.s32 1, %s23
    $region7: #{artdapter_forward.1} parent=1 // loop_footer_branch
      %22 = sbr.rel target = $region3
    $region8: #{artdapter_forward.1} parent=1 // loop_exit
      _
    %3956 = vsyncpa [#allocation6], 1
    %s3957 = scalar_lea.sflag [#allocation6], 1
    %3958 = vsyncpa %s3957, 1
    %3959 = vsyncpa [#allocation9], 1
    %3960 = vsyncpa [#allocation12], 1
    %3961 = vsyncpa [#allocation15], 1
    %3962 = vsyncpa [#allocation7], 1
    %s3963 = scalar_lea.sflag [#allocation7], 1
    %3964 = vsyncpa %s3963, 1

</llo_original>
